<compile_context>
chip_gen: v6e
topology: v6e:2x2x1
jax: 0.10.0
libtpu: 0.0.40
codegen_flags: <defaults>
</compile_context>

<pallas_src>
import math
import jax
import jax.numpy as jnp
import numpy as np
from jax.experimental import pallas as pl
from jax.experimental.pallas import tpu as pltpu

# ----------------------------- configuration -------------------------------
FEAT_DIM = 32                 # cfg.tri_plane.feat_dim
HID_DIM = 32                  # cfg.tri_plane.mlp.hid_dim
OUT_DIM = 3                   # out_dim (rgb channels)
BACKBONE_OUT = OUT_DIM + 1    # has_view_cond = False  => 1 + out_dim
LRELU_SLOPE = 0.2
LRELU_GAIN = math.sqrt(2.0)   # bias_act gain for 'lrelu' (folded into W2)
MIP_SCALE = 1.0 + 2.0 * 0.001 # sigmoid(x) * (1 + 2*0.001) - 0.001
MIP_SHIFT = 0.001

MAX_TILE_N = 8192             # points per grid step (multiple of 128, VMEM-safe on all chips)


def _round_up(v: int, m: int) -> int:
    return (v + m - 1) // m * m


# ------------------------------- kernel ------------------------------------
def triplane_mlp_kernel(x_ref, w1_ref, b1_ref, w2_ref, b2_ref, out_ref):
    # x_ref: (1, 3, TILE_N, FEAT_DIM)
    x = x_ref[...]
    s = x[0, 0] + x[0, 1] + x[0, 2]                    # plane sum; 1/3 folded into w1

    # FC1: lrelu (its sqrt(2) act-gain is folded into w2, lrelu is pos. homogeneous)
    h = jnp.dot(s, w1_ref[...], preferred_element_type=jnp.float32) + b1_ref[...]
    h = jnp.maximum(h, LRELU_SLOPE * h)                # lrelu, (TILE_N, HID_DIM)

    # FC2: linear, computed in transposed orientation so the result is lane-dense:
    # (BACKBONE_OUT, TILE_N) = w2 (BACKBONE_OUT, HID_DIM) . h^T (HID_DIM, TILE_N)
    y_t = jax.lax.dot_general(w2_ref[...], h,
                              dimension_numbers=(((1,), (1,)), ((), ())),
                              preferred_element_type=jnp.float32)
    y_t = y_t + b2_ref[...]                            # bias broadcast (BACKBONE_OUT, 1)

    # mip ray-marcher head: sigmoid rows 0..OUT_DIM-1 (rgb); sigma row passes through raw.
    mapped = jax.nn.sigmoid(y_t) * MIP_SCALE - MIP_SHIFT
    row = jax.lax.broadcasted_iota(jnp.int32, y_t.shape, 0)
    out = jnp.where(row < OUT_DIM, mapped, y_t)        # (BACKBONE_OUT, TILE_N)

    out_ref[...] = out[None].astype(out_ref.dtype)


# ------------------------------- wrapper ------------------------------------
def triplane_mlp(x, w1, b1, w2, b2):
    """x: [B, 3, N, FEAT_DIM] f32.  Returns dict {'rgb': [B,N,OUT_DIM], 'sigma': [B,N,1]}."""
    B, P, N, F = x.shape
    assert P == 3 and F == FEAT_DIM

    # Adaptive point tile; ragged tail handled by Pallas block clipping (no HBM pad pass).
    tile_n = min(MAX_TILE_N, _round_up(N, 128))
    n_tiles = pl.cdiv(N, tile_n)

    # Constant folding (wrapper side, tiny weights):
    #  * StyleGAN FC runtime weight gain 1/sqrt(in_dim)
    #  * the 1/3 of the tri-plane mean into w1 (kernel sums the 3 planes)
    #  * the lrelu act-gain sqrt(2) into w2
    # w2 is kept in (out, in) orientation for the transposed (lane-dense) matmul.
    w1_eff = w1.T * (1.0 / (3.0 * math.sqrt(FEAT_DIM)))    # (FEAT_DIM, HID_DIM)
    w2_eff = w2 * (LRELU_GAIN / math.sqrt(HID_DIM))        # (BACKBONE_OUT, HID_DIM)
    b1_eff = b1.reshape(1, HID_DIM)
    b2_eff = b2.reshape(BACKBONE_OUT, 1)

    grid = (B, n_tiles)

    out = pl.pallas_call(
        triplane_mlp_kernel,
        out_shape=jax.ShapeDtypeStruct((B, BACKBONE_OUT, N), jnp.float32),
        grid_spec=pltpu.PrefetchScalarGridSpec(
            num_scalar_prefetch=0,
            grid=grid,
            in_specs=[
                pl.BlockSpec((1, 3, tile_n, FEAT_DIM), lambda b, j: (b, 0, j, 0)),
                pl.BlockSpec((FEAT_DIM, HID_DIM),      lambda b, j: (0, 0)),
                pl.BlockSpec((1, HID_DIM),             lambda b, j: (0, 0)),
                pl.BlockSpec((BACKBONE_OUT, HID_DIM),  lambda b, j: (0, 0)),
                pl.BlockSpec((BACKBONE_OUT, 1),        lambda b, j: (0, 0)),
            ],
            # Single fused lane-dense output: last dim = tile_n (multiple of 128).
            out_specs=pl.BlockSpec((1, BACKBONE_OUT, tile_n), lambda b, j: (b, 0, j)),
        ),
        compiler_params=pltpu.CompilerParams(
            dimension_semantics=("parallel", "parallel"),
            vmem_limit_bytes=32 * 1024 * 1024),
    )(x, w1_eff, b1_eff, w2_eff, b2_eff)

    rgb = jnp.transpose(out[:, :OUT_DIM, :], (0, 2, 1))     # (B, N, OUT_DIM)
    sigma = jnp.transpose(out[:, OUT_DIM:, :], (0, 2, 1))   # (B, N, 1) — layout no-op
    return {"rgb": rgb, "sigma": sigma}


# ------------------------- pure-JAX reference -------------------------------
def triplane_mlp_ref(x, w1, b1, w2, b2):
    B, _, N, F = x.shape
    h = x.mean(axis=1).reshape(B * N, F)
    h = h @ (w1.T / math.sqrt(FEAT_DIM)) + b1
    h = jnp.where(h >= 0.0, h, LRELU_SLOPE * h) * LRELU_GAIN
    y = h @ (w2.T / math.sqrt(HID_DIM)) + b2
    y = y.reshape(B, N, BACKBONE_OUT)
    rgb = jax.nn.sigmoid(y[..., :-1]) * MIP_SCALE - MIP_SHIFT
    return {"rgb": rgb, "sigma": y[:, :, -1:]}


if __name__ == "__main__":
    key = jax.random.PRNGKey(0)
    kx, kw1, kw2 = jax.random.split(key, 3)

    # N deliberately not a multiple of 128 to exercise the ragged-tail (clipped block) path.
    B, N = 2, 1000
    x = jax.random.normal(kx, (B, 3, N, FEAT_DIM), dtype=jnp.float32)

    # FullyConnectedLayer init: weight = randn([out, in]) (lr_multiplier=1), bias = 0.
    w1 = jax.random.normal(kw1, (HID_DIM, FEAT_DIM), dtype=jnp.float32)
    b1 = jnp.zeros((HID_DIM,), dtype=jnp.float32)
    w2 = jax.random.normal(kw2, (BACKBONE_OUT, HID_DIM), dtype=jnp.float32)
    b2 = jnp.zeros((BACKBONE_OUT,), dtype=jnp.float32)

    out = triplane_mlp(x, w1, b1, w2, b2)
    jax.block_until_ready(out)

    ref = triplane_mlp_ref(x, w1, b1, w2, b2)
    np.testing.assert_allclose(np.asarray(out["rgb"]), np.asarray(ref["rgb"]),
                               rtol=1e-5, atol=2e-5)
    np.testing.assert_allclose(np.asarray(out["sigma"]), np.asarray(ref["sigma"]),
                               rtol=1e-5, atol=2e-5)

    print("KERNEL_OK")
</pallas_src>

<mosaic_0001>
module attributes {stable_mosaic.version = 11 : i64} {
  func.func @triplane_mlp_kernel(%arg0: i32, %arg1: i32, %arg2: memref<1x3x1024x32xf32, #tpu.memory_space<vmem>>, %arg3: memref<32x32xf32, #tpu.memory_space<vmem>>, %arg4: memref<1x32xf32, #tpu.memory_space<vmem>>, %arg5: memref<4x32xf32, #tpu.memory_space<vmem>>, %arg6: memref<4x1xf32, #tpu.memory_space<vmem>>, %arg7: memref<1x4x1024xf32, #tpu.memory_space<vmem>>) attributes {dimension_semantics = [#tpu.dimension_semantics<parallel>, #tpu.dimension_semantics<parallel>], iteration_bounds = array<i64: 2, 1>, scalar_prefetch = 0 : i64, scratch_operands = 0 : i64, tpu.core_type = #tpu.core_type<tc>, window_params = [{transform_indices = @transform_0, window_bounds = array<i64: 1, 3, 1024, 32>}, {pipeline_mode = #tpu.pipeline_mode<synchronous>, transform_indices = @transform_1, window_bounds = array<i64: 32, 32>}, {pipeline_mode = #tpu.pipeline_mode<synchronous>, transform_indices = @transform_2, window_bounds = array<i64: 1, 32>}, {pipeline_mode = #tpu.pipeline_mode<synchronous>, transform_indices = @transform_3, window_bounds = array<i64: 4, 32>}, {pipeline_mode = #tpu.pipeline_mode<synchronous>, transform_indices = @transform_4, window_bounds = array<i64: 4, 1>}, {transform_indices = @transform_5, window_bounds = array<i64: 1, 4, 1024>}]} {
    %c0 = arith.constant 0 : index
    %c0_0 = arith.constant 0 : index
    %c0_1 = arith.constant 0 : index
    %c0_2 = arith.constant 0 : index
    %0 = vector.load %arg2[%c0, %c0_0, %c0_1, %c0_2] : memref<1x3x1024x32xf32, #tpu.memory_space<vmem>>, vector<1x3x1024x32xf32>
    %1 = vector.extract_strided_slice %0 {offsets = [0, 0, 0, 0], sizes = [1, 1, 1024, 32], strides = [1, 1, 1, 1]} : vector<1x3x1024x32xf32> to vector<1x1x1024x32xf32>
    %2 = vector.shape_cast %1 : vector<1x1x1024x32xf32> to vector<1024x32xf32>
    %3 = vector.extract_strided_slice %0 {offsets = [0, 1, 0, 0], sizes = [1, 1, 1024, 32], strides = [1, 1, 1, 1]} : vector<1x3x1024x32xf32> to vector<1x1x1024x32xf32>
    %4 = vector.shape_cast %3 : vector<1x1x1024x32xf32> to vector<1024x32xf32>
    %5 = arith.addf %2, %4 : vector<1024x32xf32>
    %6 = vector.extract_strided_slice %0 {offsets = [0, 2, 0, 0], sizes = [1, 1, 1024, 32], strides = [1, 1, 1, 1]} : vector<1x3x1024x32xf32> to vector<1x1x1024x32xf32>
    %7 = vector.shape_cast %6 : vector<1x1x1024x32xf32> to vector<1024x32xf32>
    %8 = arith.addf %5, %7 : vector<1024x32xf32>
    %c0_3 = arith.constant 0 : index
    %c0_4 = arith.constant 0 : index
    %9 = vector.load %arg3[%c0_3, %c0_4] : memref<32x32xf32, #tpu.memory_space<vmem>>, vector<32x32xf32>
    %cst = arith.constant dense<0.000000e+00> : vector<1024x32xf32>
    %10 = tpu.matmul %8, %9, %cst {dimension_numbers = #tpu.dot_dimension_numbers<[1], [0], [0], [1], [0, 0, 1, 1], [], []>} : vector<1024x32xf32>, vector<32x32xf32>, vector<1024x32xf32> -> vector<1024x32xf32>
    %c0_5 = arith.constant 0 : index
    %c0_6 = arith.constant 0 : index
    %11 = vector.load %arg4[%c0_5, %c0_6] : memref<1x32xf32, #tpu.memory_space<vmem>>, vector<1x32xf32>
    %12 = vector.broadcast %11 : vector<1x32xf32> to vector<1024x32xf32>
    %13 = arith.addf %10, %12 : vector<1024x32xf32>
    %cst_7 = arith.constant 2.000000e-01 : f32
    %14 = vector.broadcast %cst_7 : f32 to vector<1024x32xf32>
    %15 = arith.mulf %14, %13 : vector<1024x32xf32>
    %16 = arith.maximumf %13, %15 : vector<1024x32xf32>
    %c0_8 = arith.constant 0 : index
    %c0_9 = arith.constant 0 : index
    %17 = vector.load %arg5[%c0_8, %c0_9] : memref<4x32xf32, #tpu.memory_space<vmem>>, vector<4x32xf32>
    %cst_10 = arith.constant dense<0.000000e+00> : vector<4x1024xf32>
    %18 = tpu.matmul %17, %16, %cst_10 {dimension_numbers = #tpu.dot_dimension_numbers<[1], [1], [0], [0], [0, 0, 1, 0], [], []>} : vector<4x32xf32>, vector<1024x32xf32>, vector<4x1024xf32> -> vector<4x1024xf32>
    %c0_11 = arith.constant 0 : index
    %c0_12 = arith.constant 0 : index
    %19 = vector.load %arg6[%c0_11, %c0_12] : memref<4x1xf32, #tpu.memory_space<vmem>>, vector<4x1xf32>
    %20 = vector.broadcast %19 : vector<4x1xf32> to vector<4x1024xf32>
    %21 = arith.addf %18, %20 : vector<4x1024xf32>
    %22 = arith.negf %21 : vector<4x1024xf32>
    %23 = math.exp %22 : vector<4x1024xf32>
    %cst_13 = arith.constant 1.000000e+00 : f32
    %24 = vector.broadcast %cst_13 : f32 to vector<4x1024xf32>
    %25 = arith.addf %24, %23 : vector<4x1024xf32>
    %26 = arith.divf %24, %25 : vector<4x1024xf32>
    %cst_14 = arith.constant 1.002000e+00 : f32
    %27 = vector.broadcast %cst_14 : f32 to vector<4x1024xf32>
    %28 = arith.mulf %26, %27 : vector<4x1024xf32>
    %cst_15 = arith.constant 1.000000e-03 : f32
    %29 = vector.broadcast %cst_15 : f32 to vector<4x1024xf32>
    %30 = arith.subf %28, %29 : vector<4x1024xf32>
    %31 = tpu.iota {dimensions = array<i32: 0>} : vector<4x1024xi32>
    %c3_i32 = arith.constant 3 : i32
    %32 = vector.broadcast %c3_i32 : i32 to vector<4x1024xi32>
    %33 = arith.cmpi slt, %31, %32 : vector<4x1024xi32>
    %34 = arith.select %33, %30, %21 : vector<4x1024xi1>, vector<4x1024xf32>
    %35 = vector.shape_cast %34 : vector<4x1024xf32> to vector<1x4x1024xf32>
    %c0_16 = arith.constant 0 : index
    %c0_17 = arith.constant 0 : index
    %c0_18 = arith.constant 0 : index
    %36 = vector.load %arg7[%c0_16, %c0_17, %c0_18] : memref<1x4x1024xf32, #tpu.memory_space<vmem>>, vector<1x4x1024xf32>
    tpu.vector_store %arg7[%c0_16, %c0_17, %c0_18], %35 {strides = array<i32>} : memref<1x4x1024xf32, #tpu.memory_space<vmem>>, vector<1x4x1024xf32>,
    return
  }
  func.func @transform_0(%arg0: i32, %arg1: i32) -> (i32, i32, i32, i32) {
    %c0_i32 = arith.constant 0 : i32
    %c0_i32_0 = arith.constant 0 : i32
    %c0_i32_1 = arith.constant 0 : i32
    return %arg0, %c0_i32, %arg1, %c0_i32_0 : i32, i32, i32, i32
  }
  func.func @transform_1(%arg0: i32, %arg1: i32) -> (i32, i32) {
    %c0_i32 = arith.constant 0 : i32
    %c0_i32_0 = arith.constant 0 : i32
    %c0_i32_1 = arith.constant 0 : i32
    return %c0_i32, %c0_i32_0 : i32, i32
  }
  func.func @transform_2(%arg0: i32, %arg1: i32) -> (i32, i32) {
    %c0_i32 = arith.constant 0 : i32
    %c0_i32_0 = arith.constant 0 : i32
    %c0_i32_1 = arith.constant 0 : i32
    return %c0_i32, %c0_i32_0 : i32, i32
  }
  func.func @transform_3(%arg0: i32, %arg1: i32) -> (i32, i32) {
    %c0_i32 = arith.constant 0 : i32
    %c0_i32_0 = arith.constant 0 : i32
    %c0_i32_1 = arith.constant 0 : i32
    return %c0_i32, %c0_i32_0 : i32, i32
  }
  func.func @transform_4(%arg0: i32, %arg1: i32) -> (i32, i32) {
    %c0_i32 = arith.constant 0 : i32
    %c0_i32_0 = arith.constant 0 : i32
    %c0_i32_1 = arith.constant 0 : i32
    return %c0_i32, %c0_i32_0 : i32, i32
  }
  func.func @transform_5(%arg0: i32, %arg1: i32) -> (i32, i32, i32) {
    %c0_i32 = arith.constant 0 : i32
    %c0_i32_0 = arith.constant 0 : i32
    return %arg0, %c0_i32, %arg1 : i32, i32, i32
  }
}

</mosaic_0001>

<llo_original>
// kernel: tpu_custom_call.1
$region0: #{tpu_custom_call.1}
  #allocation0 [shape = 'u32[]', space=smem, size = 0x4, offset = 0x4, fixed_abs, tag = 'smem constant byte address 0x4 - core index']
  #allocation1 [shape = 'u32[144,128]{1,0:T(1,128)}', space=vmem, size = 0x12000, scoped, tag = 'internal scratch']
  %s0 = inlined_call_operand.vmem [shape: f32[2,3,1000,32], index: 0, kind: input, shape index: {}]
  %s1 = inlined_call_operand.vmem [shape: f32[32,32], index: 1, kind: input, shape index: {}]
  %s2 = inlined_call_operand.vmem [shape: f32[1,32], index: 2, kind: input, shape index: {}]
  %s3 = inlined_call_operand.vmem [shape: f32[4,32], index: 3, kind: input, shape index: {}]
  %s4 = inlined_call_operand.vmem [shape: f32[4,1], index: 4, kind: input, shape index: {}]
  %s5 = inlined_call_operand.hbm [shape: f32[2,4,1000], index: 5, kind: output, shape index: {}]
  %s6 = sld [smem:[#allocation0]]
  $region105: #{tpu_custom_call.1} parent=0
    _
  %s8 = ssub.s32 1, %s6
  %s9 = scalar_select 0, %s8, %s6
  $region1: #{tpu_custom_call.1} parent=0
    #allocation2 [shape = 'u8[3145728]{0}', space=vmem, size = 0x300000, scoped, tag = 'input window, operand 0']
    #allocation3 [shape = 'u8[32768]{0}', space=vmem, size = 0x8000, scoped, tag = 'output window, operand 0']
    #allocation4 [shape = 's32[2]{0}', space=sflag, size = 0x8, scoped, tag = 'scoped memory for tpu_custom_call.1']
    %10 = vsyncpa [#allocation4], 0
    %s11 = scalar_lea.sflag [#allocation4], 1
    %12 = vsyncpa %s11, 0
    loop: start=0, step=1, limit=4
    $region2: #{tpu_custom_call.1} parent=1 // loop_pre_header
      _
    $region3: #{tpu_custom_call.1} parent=1 // loop_header
      %s14 = sphi 0, %s18
      %p15 = scmp.ge.s32.totalorder %s14, 4
      %s21 = sphi 0, %s33
      %s22 = sphi 0, %s29
      %s23 = sphi 0, %s21
      %s24 = sphi 0, %s22
      %s25 = sphi 0, %s23
      %s26 = sphi 0, %s24
      %s38 = sphi 0, %s40
      %s41 = sphi 0, %s38
      %s42 = sphi 0, %s41
      %s58 = sphi 0, %s42
      %s62 = sphi 0, %s62
      %s64 = sphi 0, %s62
      %s65 = sphi 0, %s64
      %s79 = sphi 0, %s65
      %s83 = sphi 0, %s83
      %s85 = sphi 0, %s83
      %s86 = sphi 0, %s85
      %s100 = sphi 0, %s86
      %s104 = sphi 0, %s104
      %s106 = sphi 0, %s104
      %s107 = sphi 0, %s106
      %s121 = sphi 0, %s107
      %s125 = sphi 0, %s125
      %s127 = sphi 0, %s125
      %s128 = sphi 0, %s127
      %s142 = sphi 0, %s128
      %s150 = sphi 0, %s152
      %s153 = sphi 0, %s150
      %s154 = sphi 0, %s153
      %s170 = sphi 0, %s154
    $region4: #{tpu_custom_call.1} parent=1 // loop_header_branch
      %17 = sbr.rel (%p15) target = $region8
    $region5: #{tpu_custom_call.1} parent=1 // loop_body
      %s19 = ssub.s32 %s14, 1
      %s20 = ssub.s32 %s14, 2
      %s27 = sadd.s32 1, %s22
      %p28 = scmp.ge.s32.totalorder %s27, 1
      %s29 = scalar_select %p28, 0, %s27
      %s30 = sadd.s32 1, %s21
      %s31 = scalar_select %p28, %s30, %s21
      %p32 = scmp.ge.s32.totalorder %s31, 2
      %s33 = scalar_select %p32, 0, %s31
      %s34 = ssub.s32 %s21, %s33
      %s35 = ssub.s32 %s22, %s29
      %s36 = sor.u32 %s34, %s35
      %p37 = scmp.eq.s32.totalorder %s36, 0
      %s39 = sadd.s32 %s38, 1
      %s40 = scalar_select %p37, %s38, %s39
      %p43 = pneg %p37
      %p44 = scmp.eq.s32.totalorder %s14, 1
      %p45 = por %p43, %p44
      %p46 = scmp.ne.s32.totalorder %s38, %s41
      %p47 = scmp.eq.s32.totalorder %s14, 0
      %p48 = por %p46, %p47
      %p49 = scmp.ne.s32.totalorder %s38, %s41
      %p50 = scmp.eq.s32.totalorder %s19, 1
      %p51 = por %p49, %p50
      %p52 = scmp.ne.s32.totalorder %s41, %s42
      %p53 = scmp.eq.s32.totalorder %s19, 0
      %p54 = por %p52, %p53
      %p55 = scmp.ne.s32.totalorder %s41, %s42
      %p56 = scmp.eq.s32.totalorder %s20, 1
      %p57 = por %p55, %p56
      %p59 = scmp.ne.s32.totalorder %s42, %s58
      %p60 = scmp.eq.s32.totalorder %s20, 0
      %p61 = por %p59, %p60
      %s63 = sadd.s32 %s62, 1
      %p66 = scmp.eq.s32.totalorder %s14, 1
      %p67 = scmp.ne.s32.totalorder %s62, %s64
      %p68 = scmp.eq.s32.totalorder %s14, 0
      %p69 = por %p67, %p68
      %p70 = scmp.ne.s32.totalorder %s62, %s64
      %p71 = scmp.eq.s32.totalorder %s19, 1
      %p72 = por %p70, %p71
      %p73 = scmp.ne.s32.totalorder %s64, %s65
      %p74 = scmp.eq.s32.totalorder %s19, 0
      %p75 = por %p73, %p74
      %p76 = scmp.ne.s32.totalorder %s64, %s65
      %p77 = scmp.eq.s32.totalorder %s20, 1
      %p78 = por %p76, %p77
      %p80 = scmp.ne.s32.totalorder %s65, %s79
      %p81 = scmp.eq.s32.totalorder %s20, 0
      %p82 = por %p80, %p81
      %s84 = sadd.s32 %s83, 1
      %p87 = scmp.eq.s32.totalorder %s14, 1
      %p88 = scmp.ne.s32.totalorder %s83, %s85
      %p89 = scmp.eq.s32.totalorder %s14, 0
      %p90 = por %p88, %p89
      %p91 = scmp.ne.s32.totalorder %s83, %s85
      %p92 = scmp.eq.s32.totalorder %s19, 1
      %p93 = por %p91, %p92
      %p94 = scmp.ne.s32.totalorder %s85, %s86
      %p95 = scmp.eq.s32.totalorder %s19, 0
      %p96 = por %p94, %p95
      %p97 = scmp.ne.s32.totalorder %s85, %s86
      %p98 = scmp.eq.s32.totalorder %s20, 1
      %p99 = por %p97, %p98
      %p101 = scmp.ne.s32.totalorder %s86, %s100
      %p102 = scmp.eq.s32.totalorder %s20, 0
      %p103 = por %p101, %p102
      %s105 = sadd.s32 %s104, 1
      %p108 = scmp.eq.s32.totalorder %s14, 1
      %p109 = scmp.ne.s32.totalorder %s104, %s106
      %p110 = scmp.eq.s32.totalorder %s14, 0
      %p111 = por %p109, %p110
      %p112 = scmp.ne.s32.totalorder %s104, %s106
      %p113 = scmp.eq.s32.totalorder %s19, 1
      %p114 = por %p112, %p113
      %p115 = scmp.ne.s32.totalorder %s106, %s107
      %p116 = scmp.eq.s32.totalorder %s19, 0
      %p117 = por %p115, %p116
      %p118 = scmp.ne.s32.totalorder %s106, %s107
      %p119 = scmp.eq.s32.totalorder %s20, 1
      %p120 = por %p118, %p119
      %p122 = scmp.ne.s32.totalorder %s107, %s121
      %p123 = scmp.eq.s32.totalorder %s20, 0
      %p124 = por %p122, %p123
      %s126 = sadd.s32 %s125, 1
      %p129 = scmp.eq.s32.totalorder %s14, 1
      %p130 = scmp.ne.s32.totalorder %s125, %s127
      %p131 = scmp.eq.s32.totalorder %s14, 0
      %p132 = por %p130, %p131
      %p133 = scmp.ne.s32.totalorder %s125, %s127
      %p134 = scmp.eq.s32.totalorder %s19, 1
      %p135 = por %p133, %p134
      %p136 = scmp.ne.s32.totalorder %s127, %s128
      %p137 = scmp.eq.s32.totalorder %s19, 0
      %p138 = por %p136, %p137
      %p139 = scmp.ne.s32.totalorder %s127, %s128
      %p140 = scmp.eq.s32.totalorder %s20, 1
      %p141 = por %p139, %p140
      %p143 = scmp.ne.s32.totalorder %s128, %s142
      %p144 = scmp.eq.s32.totalorder %s20, 0
      %p145 = por %p143, %p144
      %s146 = ssub.s32 %s21, %s33
      %s147 = ssub.s32 %s22, %s29
      %s148 = sor.u32 %s146, %s147
      %p149 = scmp.eq.s32.totalorder %s148, 0
      %s151 = sadd.s32 %s150, 1
      %s152 = scalar_select %p149, %s150, %s151
      %p155 = pneg %p149
      %p156 = scmp.eq.s32.totalorder %s14, 1
      %p157 = por %p155, %p156
      %p158 = scmp.ne.s32.totalorder %s150, %s153
      %p159 = scmp.eq.s32.totalorder %s14, 0
      %p160 = por %p158, %p159
      %p161 = scmp.ne.s32.totalorder %s150, %s153
      %p162 = scmp.eq.s32.totalorder %s19, 1
      %p163 = por %p161, %p162
      %p164 = scmp.ne.s32.totalorder %s153, %s154
      %p165 = scmp.eq.s32.totalorder %s19, 0
      %p166 = por %p164, %p165
      %p167 = scmp.ne.s32.totalorder %s153, %s154
      %p168 = scmp.eq.s32.totalorder %s20, 1
      %p169 = por %p167, %p168
      %p171 = scmp.ne.s32.totalorder %s154, %s170
      %p172 = scmp.eq.s32.totalorder %s20, 0
      %p173 = por %p171, %p172
      %p174 = scmp.le.s32.totalorder 1, %s14
      %p175 = scmp.lt.s32.totalorder %s14, 3
      %p176 = pnand %p174, %p175
      %p177 = pneg %p176
      // Predicated region
      $region9: #{tpu_custom_call.1} parent=5 // pred_check
        _
      $region10: #{tpu_custom_call.1} parent=5 // pred_check_branch
        %179 = sbr.rel (%p176) target = $region12
      $region11: #{tpu_custom_call.1} parent=5 // pred_region
        %s180 = ssub.s32 %s14, 1
        // Predicated region
        $region13: #{tpu_custom_call.1} parent=11 // pred_check
          %p181 = pneg %p75
        $region14: #{tpu_custom_call.1} parent=11 // pred_check_branch
          %183 = sbr.rel (%p181) target = $region16
        $region15: #{tpu_custom_call.1} parent=11 // pred_region
          _
        $region16: #{tpu_custom_call.1} parent=11 // pred_fallthru
          _
        // Predicated region
        $region17: #{tpu_custom_call.1} parent=11 // pred_check
          %p184 = pneg %p96
        $region18: #{tpu_custom_call.1} parent=11 // pred_check_branch
          %186 = sbr.rel (%p184) target = $region20
        $region19: #{tpu_custom_call.1} parent=11 // pred_region
          _
        $region20: #{tpu_custom_call.1} parent=11 // pred_fallthru
          _
        // Predicated region
        $region21: #{tpu_custom_call.1} parent=11 // pred_check
          %p187 = pneg %p117
        $region22: #{tpu_custom_call.1} parent=11 // pred_check_branch
          %189 = sbr.rel (%p187) target = $region24
        $region23: #{tpu_custom_call.1} parent=11 // pred_region
          _
        $region24: #{tpu_custom_call.1} parent=11 // pred_fallthru
          _
        // Predicated region
        $region25: #{tpu_custom_call.1} parent=11 // pred_check
          %p190 = pneg %p138
        $region26: #{tpu_custom_call.1} parent=11 // pred_check_branch
          %192 = sbr.rel (%p190) target = $region28
        $region27: #{tpu_custom_call.1} parent=11 // pred_region
          _
        $region28: #{tpu_custom_call.1} parent=11 // pred_fallthru
          _
      $region12: #{tpu_custom_call.1} parent=5 // pred_fallthru
        _
      %p193 = scmp.lt.s32.totalorder %s14, 2
      // Predicated region
      $region29: #{tpu_custom_call.1} parent=5 // pred_check
        %p194 = pneg %p193
      $region30: #{tpu_custom_call.1} parent=5 // pred_check_branch
        %196 = sbr.rel (%p194) target = $region32
      $region31: #{tpu_custom_call.1} parent=5 // pred_region
        // Predicated region
        $region33: #{tpu_custom_call.1} parent=31 // pred_check
          %p197 = pneg %p48
        $region34: #{tpu_custom_call.1} parent=31 // pred_check_branch
          %199 = sbr.rel (%p197) target = $region36
        $region35: #{tpu_custom_call.1} parent=31 // pred_region
          %s200 = sand.u32 %s38, 1
          %s201 = sand.u32 %s38, 1
          %s202 = smul.addr %s201, 3072
          %s203 = scalar_lea.vmem [#allocation2], %s202
          %s204 = smul.u32 128, %s22
          %s205 = ssub.s32 125, %s204
          %s206 = smul.u32 384, %s205
          %p207 = scmp.ne.s32.totalorder 0, %s206
          %s208 = smul.addr %s21, 375
          %s209 = sadd.s32 %s204, %s208
          %s210 = smul.addr %s209, 8
          %s211 = scalar_lea.vmem %s0, %s210
          // Predicated region
          $region37: #{tpu_custom_call.1} parent=35 // pred_check
            %p212 = pneg %p207
          $region38: #{tpu_custom_call.1} parent=35 // pred_check_branch
            %214 = sbr.rel (%p212) target = $region40
          $region39: #{tpu_custom_call.1} parent=35 // pred_region
            // Predicated region
            $region41: #{tpu_custom_call.1} parent=39 // pred_check
              _
            $region42: #{tpu_custom_call.1} parent=39 // pred_check_branch
              %216 = sbr.rel (0) target = $region44
            $region43: #{tpu_custom_call.1} parent=39 // pred_region
              // Predicated region
              $region63: #{tpu_custom_call.1} parent=43 // pred_check
                _
              $region64: #{tpu_custom_call.1} parent=43 // pred_check_branch
                %401 = sbr.rel (0) target = $region66
              $region65: #{tpu_custom_call.1} parent=43 // pred_region
                %s402 = sdiv.u32.pop %s205, 22
                %s403 = srem.u32.pop %s205, 22
                // While loop
                $region67: #{tpu_custom_call.1} parent=65 // loop_pre_header
                  _
                $region68: #{tpu_custom_call.1} parent=65 // loop_header
                  %s405 = sphi 0, %s407
                  %p406 = scmp.ge.s32.totalorder %s405, %s402
                  %s410 = sphi 0, %s547
                  %s411 = sphi %s211, %s550
                  %s412 = sphi %s203, %s551
                $region69: #{tpu_custom_call.1} parent=65 // loop_header_branch
                  %409 = sbr.rel (%p406) target = $region73
                $region70: #{tpu_custom_call.1} parent=65 // loop_body
                  %v413 = vld [vmem:[%s411] sm:$0xff]
                  %414 = vst [vmem:[%s412] sm:$0xff] %v413
                  %v415 = vld [vmem:[%s411 + $0x8] sm:$0xff]
                  %416 = vst [vmem:[%s412 + $0x8] sm:$0xff] %v415
                  %v417 = vld [vmem:[%s411 + $0x10] sm:$0xff]
                  %418 = vst [vmem:[%s412 + $0x10] sm:$0xff] %v417
                  %v419 = vld [vmem:[%s411 + $0x18] sm:$0xff]
                  %420 = vst [vmem:[%s412 + $0x18] sm:$0xff] %v419
                  %v421 = vld [vmem:[%s411 + $0x20] sm:$0xff]
                  %422 = vst [vmem:[%s412 + $0x20] sm:$0xff] %v421
                  %v423 = vld [vmem:[%s411 + $0x28] sm:$0xff]
                  %424 = vst [vmem:[%s412 + $0x28] sm:$0xff] %v423
                  %v425 = vld [vmem:[%s411 + $0x30] sm:$0xff]
                  %426 = vst [vmem:[%s412 + $0x30] sm:$0xff] %v425
                  %v427 = vld [vmem:[%s411 + $0x38] sm:$0xff]
                  %428 = vst [vmem:[%s412 + $0x38] sm:$0xff] %v427
                  %v429 = vld [vmem:[%s411 + $0x40] sm:$0xff]
                  %430 = vst [vmem:[%s412 + $0x40] sm:$0xff] %v429
                  %v431 = vld [vmem:[%s411 + $0x48] sm:$0xff]
                  %432 = vst [vmem:[%s412 + $0x48] sm:$0xff] %v431
                  %v433 = vld [vmem:[%s411 + $0x50] sm:$0xff]
                  %434 = vst [vmem:[%s412 + $0x50] sm:$0xff] %v433
                  %v435 = vld [vmem:[%s411 + $0x58] sm:$0xff]
                  %436 = vst [vmem:[%s412 + $0x58] sm:$0xff] %v435
                  %v437 = vld [vmem:[%s411 + $0x60] sm:$0xff]
                  %438 = vst [vmem:[%s412 + $0x60] sm:$0xff] %v437
                  %v439 = vld [vmem:[%s411 + $0x68] sm:$0xff]
                  %440 = vst [vmem:[%s412 + $0x68] sm:$0xff] %v439
                  %v441 = vld [vmem:[%s411 + $0x70] sm:$0xff]
                  %442 = vst [vmem:[%s412 + $0x70] sm:$0xff] %v441
                  %v443 = vld [vmem:[%s411 + $0x78] sm:$0xff]
                  %444 = vst [vmem:[%s412 + $0x78] sm:$0xff] %v443
                  %v445 = vld [vmem:[%s411 + $0x80] sm:$0xff]
                  %446 = vst [vmem:[%s412 + $0x80] sm:$0xff] %v445
                  %v447 = vld [vmem:[%s411 + $0x88] sm:$0xff]
                  %448 = vst [vmem:[%s412 + $0x88] sm:$0xff] %v447
                  %v449 = vld [vmem:[%s411 + $0x90] sm:$0xff]
                  %450 = vst [vmem:[%s412 + $0x90] sm:$0xff] %v449
                  %v451 = vld [vmem:[%s411 + $0x98] sm:$0xff]
                  %452 = vst [vmem:[%s412 + $0x98] sm:$0xff] %v451
                  %v453 = vld [vmem:[%s411 + $0xa0] sm:$0xff]
                  %454 = vst [vmem:[%s412 + $0xa0] sm:$0xff] %v453
                  %v455 = vld [vmem:[%s411 + $0xa8] sm:$0xff]
                  %456 = vst [vmem:[%s412 + $0xa8] sm:$0xff] %v455
                  %v457 = vld [vmem:[%s411 + $0x3e8] sm:$0xff]
                  %458 = vst [vmem:[%s412 + $0x400] sm:$0xff] %v457
                  %v459 = vld [vmem:[%s411 + $0x3f0] sm:$0xff]
                  %460 = vst [vmem:[%s412 + $0x408] sm:$0xff] %v459
                  %v461 = vld [vmem:[%s411 + $0x3f8] sm:$0xff]
                  %462 = vst [vmem:[%s412 + $0x410] sm:$0xff] %v461
                  %v463 = vld [vmem:[%s411 + $0x400] sm:$0xff]
                  %464 = vst [vmem:[%s412 + $0x418] sm:$0xff] %v463
                  %v465 = vld [vmem:[%s411 + $0x408] sm:$0xff]
                  %466 = vst [vmem:[%s412 + $0x420] sm:$0xff] %v465
                  %v467 = vld [vmem:[%s411 + $0x410] sm:$0xff]
                  %468 = vst [vmem:[%s412 + $0x428] sm:$0xff] %v467
                  %v469 = vld [vmem:[%s411 + $0x418] sm:$0xff]
                  %470 = vst [vmem:[%s412 + $0x430] sm:$0xff] %v469
                  %v471 = vld [vmem:[%s411 + $0x420] sm:$0xff]
                  %472 = vst [vmem:[%s412 + $0x438] sm:$0xff] %v471
                  %v473 = vld [vmem:[%s411 + $0x428] sm:$0xff]
                  %474 = vst [vmem:[%s412 + $0x440] sm:$0xff] %v473
                  %v475 = vld [vmem:[%s411 + $0x430] sm:$0xff]
                  %476 = vst [vmem:[%s412 + $0x448] sm:$0xff] %v475
                  %v477 = vld [vmem:[%s411 + $0x438] sm:$0xff]
                  %478 = vst [vmem:[%s412 + $0x450] sm:$0xff] %v477
                  %v479 = vld [vmem:[%s411 + $0x440] sm:$0xff]
                  %480 = vst [vmem:[%s412 + $0x458] sm:$0xff] %v479
                  %v481 = vld [vmem:[%s411 + $0x448] sm:$0xff]
                  %482 = vst [vmem:[%s412 + $0x460] sm:$0xff] %v481
                  %v483 = vld [vmem:[%s411 + $0x450] sm:$0xff]
                  %484 = vst [vmem:[%s412 + $0x468] sm:$0xff] %v483
                  %v485 = vld [vmem:[%s411 + $0x458] sm:$0xff]
                  %486 = vst [vmem:[%s412 + $0x470] sm:$0xff] %v485
                  %v487 = vld [vmem:[%s411 + $0x460] sm:$0xff]
                  %488 = vst [vmem:[%s412 + $0x478] sm:$0xff] %v487
                  %v489 = vld [vmem:[%s411 + $0x468] sm:$0xff]
                  %490 = vst [vmem:[%s412 + $0x480] sm:$0xff] %v489
                  %v491 = vld [vmem:[%s411 + $0x470] sm:$0xff]
                  %492 = vst [vmem:[%s412 + $0x488] sm:$0xff] %v491
                  %v493 = vld [vmem:[%s411 + $0x478] sm:$0xff]
                  %494 = vst [vmem:[%s412 + $0x490] sm:$0xff] %v493
                  %v495 = vld [vmem:[%s411 + $0x480] sm:$0xff]
                  %496 = vst [vmem:[%s412 + $0x498] sm:$0xff] %v495
                  %v497 = vld [vmem:[%s411 + $0x488] sm:$0xff]
                  %498 = vst [vmem:[%s412 + $0x4a0] sm:$0xff] %v497
                  %v499 = vld [vmem:[%s411 + $0x490] sm:$0xff]
                  %500 = vst [vmem:[%s412 + $0x4a8] sm:$0xff] %v499
                  %v501 = vld [vmem:[%s411 + $0x7d0] sm:$0xff]
                  %502 = vst [vmem:[%s412 + $0x800] sm:$0xff] %v501
                  %v503 = vld [vmem:[%s411 + $0x7d8] sm:$0xff]
                  %504 = vst [vmem:[%s412 + $0x808] sm:$0xff] %v503
                  %v505 = vld [vmem:[%s411 + $0x7e0] sm:$0xff]
                  %506 = vst [vmem:[%s412 + $0x810] sm:$0xff] %v505
                  %v507 = vld [vmem:[%s411 + $0x7e8] sm:$0xff]
                  %508 = vst [vmem:[%s412 + $0x818] sm:$0xff] %v507
                  %v509 = vld [vmem:[%s411 + $0x7f0] sm:$0xff]
                  %510 = vst [vmem:[%s412 + $0x820] sm:$0xff] %v509
                  %v511 = vld [vmem:[%s411 + $0x7f8] sm:$0xff]
                  %512 = vst [vmem:[%s412 + $0x828] sm:$0xff] %v511
                  %v513 = vld [vmem:[%s411 + $0x800] sm:$0xff]
                  %514 = vst [vmem:[%s412 + $0x830] sm:$0xff] %v513
                  %v515 = vld [vmem:[%s411 + $0x808] sm:$0xff]
                  %516 = vst [vmem:[%s412 + $0x838] sm:$0xff] %v515
                  %v517 = vld [vmem:[%s411 + $0x810] sm:$0xff]
                  %518 = vst [vmem:[%s412 + $0x840] sm:$0xff] %v517
                  %v519 = vld [vmem:[%s411 + $0x818] sm:$0xff]
                  %520 = vst [vmem:[%s412 + $0x848] sm:$0xff] %v519
                  %v521 = vld [vmem:[%s411 + $0x820] sm:$0xff]
                  %522 = vst [vmem:[%s412 + $0x850] sm:$0xff] %v521
                  %v523 = vld [vmem:[%s411 + $0x828] sm:$0xff]
                  %524 = vst [vmem:[%s412 + $0x858] sm:$0xff] %v523
                  %v525 = vld [vmem:[%s411 + $0x830] sm:$0xff]
                  %526 = vst [vmem:[%s412 + $0x860] sm:$0xff] %v525
                  %v527 = vld [vmem:[%s411 + $0x838] sm:$0xff]
                  %528 = vst [vmem:[%s412 + $0x868] sm:$0xff] %v527
                  %v529 = vld [vmem:[%s411 + $0x840] sm:$0xff]
                  %530 = vst [vmem:[%s412 + $0x870] sm:$0xff] %v529
                  %v531 = vld [vmem:[%s411 + $0x848] sm:$0xff]
                  %532 = vst [vmem:[%s412 + $0x878] sm:$0xff] %v531
                  %v533 = vld [vmem:[%s411 + $0x850] sm:$0xff]
                  %534 = vst [vmem:[%s412 + $0x880] sm:$0xff] %v533
                  %v535 = vld [vmem:[%s411 + $0x858] sm:$0xff]
                  %536 = vst [vmem:[%s412 + $0x888] sm:$0xff] %v535
                  %v537 = vld [vmem:[%s411 + $0x860] sm:$0xff]
                  %538 = vst [vmem:[%s412 + $0x890] sm:$0xff] %v537
                  %v539 = vld [vmem:[%s411 + $0x868] sm:$0xff]
                  %540 = vst [vmem:[%s412 + $0x898] sm:$0xff] %v539
                  %v541 = vld [vmem:[%s411 + $0x870] sm:$0xff]
                  %542 = vst [vmem:[%s412 + $0x8a0] sm:$0xff] %v541
                  %v543 = vld [vmem:[%s411 + $0x878] sm:$0xff]
                  %544 = vst [vmem:[%s412 + $0x8a8] sm:$0xff] %v543
                  %s545 = sadd.s32 1, %s410
                  %p546 = scmp.ge.s32.totalorder %s545, %s402
                  %s547 = scalar_select %p546, 0, %s545
                  %s548 = smul.u32 %s547, 176
                  %s549 = smul.u32 %s547, 176
                  %s550 = scalar_lea.vmem %s211, %s548
                  %s551 = scalar_lea.vmem %s203, %s549 [#allocation2]
                $region71: #{tpu_custom_call.1} parent=65 // loop_footer
                  %s407 = sadd.s32 %s405, 1
                $region72: #{tpu_custom_call.1} parent=65 // loop_footer_branch
                  %404 = sbr.rel target = $region68
                $region73: #{tpu_custom_call.1} parent=65 // loop_exit
                  _
                %s552 = sdiv.u32.pop %s205, 22
                %s553 = srem.u32.pop %s205, 22
                %s554 = smul.u32 %s552, 22
                %s555 = smul.u32 8, %s554
                %s556 = scalar_lea.vmem %s211, %s555
                %s557 = smul.u32 8, %s554
                %s558 = scalar_lea.vmem %s203, %s557 [#allocation2]
                // While loop
                $region74: #{tpu_custom_call.1} parent=65 // loop_pre_header
                  _
                $region75: #{tpu_custom_call.1} parent=65 // loop_header
                  %s560 = sphi 0, %s562
                  %p561 = scmp.ge.s32.totalorder %s560, %s553
                  %s565 = sphi 0, %s576
                  %s566 = sphi %s556, %s579
                  %s567 = sphi %s558, %s580
                $region76: #{tpu_custom_call.1} parent=65 // loop_header_branch
                  %564 = sbr.rel (%p561) target = $region80
                $region77: #{tpu_custom_call.1} parent=65 // loop_body
                  %v568 = vld [vmem:[%s566] sm:$0xff]
                  %569 = vst [vmem:[%s567] sm:$0xff] %v568
                  %v570 = vld [vmem:[%s566 + $0x3e8] sm:$0xff]
                  %571 = vst [vmem:[%s567 + $0x400] sm:$0xff] %v570
                  %v572 = vld [vmem:[%s566 + $0x7d0] sm:$0xff]
                  %573 = vst [vmem:[%s567 + $0x800] sm:$0xff] %v572
                  %s574 = sadd.s32 1, %s565
                  %p575 = scmp.ge.s32.totalorder %s574, %s553
                  %s576 = scalar_select %p575, 0, %s574
                  %s577 = smul.u32 %s576, 8
                  %s578 = smul.u32 %s576, 8
                  %s579 = scalar_lea.vmem %s556, %s577
                  %s580 = scalar_lea.vmem %s558, %s578 [#allocation2]
                $region78: #{tpu_custom_call.1} parent=65 // loop_footer
                  %s562 = sadd.s32 %s560, 1
                $region79: #{tpu_custom_call.1} parent=65 // loop_footer_branch
                  %559 = sbr.rel target = $region75
                $region80: #{tpu_custom_call.1} parent=65 // loop_exit
                  _
              $region66: #{tpu_custom_call.1} parent=43 // pred_fallthru
                _
              // Predicated region
              $region81: #{tpu_custom_call.1} parent=43 // pred_check
                _
              $region82: #{tpu_custom_call.1} parent=43 // pred_check_branch
                %582 = sbr.rel target = $region84
              $region83: #{tpu_custom_call.1} parent=43 // pred_region
                _
              $region84: #{tpu_custom_call.1} parent=43 // pred_fallthru
                _
            $region44: #{tpu_custom_call.1} parent=39 // pred_fallthru
              _
            // Predicated region
            $region45: #{tpu_custom_call.1} parent=39 // pred_check
              _
            $region46: #{tpu_custom_call.1} parent=39 // pred_check_branch
              %218 = sbr.rel target = $region48
            $region47: #{tpu_custom_call.1} parent=39 // pred_region
              %s220 = ssub.s32 256, 1
              %s221 = sdiv.u32.pop %s205, 22
              %s222 = srem.u32.pop %s205, 22
              // While loop
              $region49: #{tpu_custom_call.1} parent=47 // loop_pre_header
                _
              $region50: #{tpu_custom_call.1} parent=47 // loop_header
                %s224 = sphi 0, %s226
                %p225 = scmp.ge.s32.totalorder %s224, %s221
                %s229 = sphi 0, %s366
                %s230 = sphi %s211, %s369
                %s231 = sphi %s203, %s370
              $region51: #{tpu_custom_call.1} parent=47 // loop_header_branch
                %228 = sbr.rel (%p225) target = $region55
              $region52: #{tpu_custom_call.1} parent=47 // loop_body
                %v232 = vld [vmem:[%s230] sm:%s220]
                %233 = vst [vmem:[%s231] sm:%s220] %v232
                %v234 = vld [vmem:[%s230 + $0x8] sm:%s220]
                %235 = vst [vmem:[%s231 + $0x8] sm:%s220] %v234
                %v236 = vld [vmem:[%s230 + $0x10] sm:%s220]
                %237 = vst [vmem:[%s231 + $0x10] sm:%s220] %v236
                %v238 = vld [vmem:[%s230 + $0x18] sm:%s220]
                %239 = vst [vmem:[%s231 + $0x18] sm:%s220] %v238
                %v240 = vld [vmem:[%s230 + $0x20] sm:%s220]
                %241 = vst [vmem:[%s231 + $0x20] sm:%s220] %v240
                %v242 = vld [vmem:[%s230 + $0x28] sm:%s220]
                %243 = vst [vmem:[%s231 + $0x28] sm:%s220] %v242
                %v244 = vld [vmem:[%s230 + $0x30] sm:%s220]
                %245 = vst [vmem:[%s231 + $0x30] sm:%s220] %v244
                %v246 = vld [vmem:[%s230 + $0x38] sm:%s220]
                %247 = vst [vmem:[%s231 + $0x38] sm:%s220] %v246
                %v248 = vld [vmem:[%s230 + $0x40] sm:%s220]
                %249 = vst [vmem:[%s231 + $0x40] sm:%s220] %v248
                %v250 = vld [vmem:[%s230 + $0x48] sm:%s220]
                %251 = vst [vmem:[%s231 + $0x48] sm:%s220] %v250
                %v252 = vld [vmem:[%s230 + $0x50] sm:%s220]
                %253 = vst [vmem:[%s231 + $0x50] sm:%s220] %v252
                %v254 = vld [vmem:[%s230 + $0x58] sm:%s220]
                %255 = vst [vmem:[%s231 + $0x58] sm:%s220] %v254
                %v256 = vld [vmem:[%s230 + $0x60] sm:%s220]
                %257 = vst [vmem:[%s231 + $0x60] sm:%s220] %v256
                %v258 = vld [vmem:[%s230 + $0x68] sm:%s220]
                %259 = vst [vmem:[%s231 + $0x68] sm:%s220] %v258
                %v260 = vld [vmem:[%s230 + $0x70] sm:%s220]
                %261 = vst [vmem:[%s231 + $0x70] sm:%s220] %v260
                %v262 = vld [vmem:[%s230 + $0x78] sm:%s220]
                %263 = vst [vmem:[%s231 + $0x78] sm:%s220] %v262
                %v264 = vld [vmem:[%s230 + $0x80] sm:%s220]
                %265 = vst [vmem:[%s231 + $0x80] sm:%s220] %v264
                %v266 = vld [vmem:[%s230 + $0x88] sm:%s220]
                %267 = vst [vmem:[%s231 + $0x88] sm:%s220] %v266
                %v268 = vld [vmem:[%s230 + $0x90] sm:%s220]
                %269 = vst [vmem:[%s231 + $0x90] sm:%s220] %v268
                %v270 = vld [vmem:[%s230 + $0x98] sm:%s220]
                %271 = vst [vmem:[%s231 + $0x98] sm:%s220] %v270
                %v272 = vld [vmem:[%s230 + $0xa0] sm:%s220]
                %273 = vst [vmem:[%s231 + $0xa0] sm:%s220] %v272
                %v274 = vld [vmem:[%s230 + $0xa8] sm:%s220]
                %275 = vst [vmem:[%s231 + $0xa8] sm:%s220] %v274
                %v276 = vld [vmem:[%s230 + $0x3e8] sm:%s220]
                %277 = vst [vmem:[%s231 + $0x400] sm:%s220] %v276
                %v278 = vld [vmem:[%s230 + $0x3f0] sm:%s220]
                %279 = vst [vmem:[%s231 + $0x408] sm:%s220] %v278
                %v280 = vld [vmem:[%s230 + $0x3f8] sm:%s220]
                %281 = vst [vmem:[%s231 + $0x410] sm:%s220] %v280
                %v282 = vld [vmem:[%s230 + $0x400] sm:%s220]
                %283 = vst [vmem:[%s231 + $0x418] sm:%s220] %v282
                %v284 = vld [vmem:[%s230 + $0x408] sm:%s220]
                %285 = vst [vmem:[%s231 + $0x420] sm:%s220] %v284
                %v286 = vld [vmem:[%s230 + $0x410] sm:%s220]
                %287 = vst [vmem:[%s231 + $0x428] sm:%s220] %v286
                %v288 = vld [vmem:[%s230 + $0x418] sm:%s220]
                %289 = vst [vmem:[%s231 + $0x430] sm:%s220] %v288
                %v290 = vld [vmem:[%s230 + $0x420] sm:%s220]
                %291 = vst [vmem:[%s231 + $0x438] sm:%s220] %v290
                %v292 = vld [vmem:[%s230 + $0x428] sm:%s220]
                %293 = vst [vmem:[%s231 + $0x440] sm:%s220] %v292
                %v294 = vld [vmem:[%s230 + $0x430] sm:%s220]
                %295 = vst [vmem:[%s231 + $0x448] sm:%s220] %v294
                %v296 = vld [vmem:[%s230 + $0x438] sm:%s220]
                %297 = vst [vmem:[%s231 + $0x450] sm:%s220] %v296
                %v298 = vld [vmem:[%s230 + $0x440] sm:%s220]
                %299 = vst [vmem:[%s231 + $0x458] sm:%s220] %v298
                %v300 = vld [vmem:[%s230 + $0x448] sm:%s220]
                %301 = vst [vmem:[%s231 + $0x460] sm:%s220] %v300
                %v302 = vld [vmem:[%s230 + $0x450] sm:%s220]
                %303 = vst [vmem:[%s231 + $0x468] sm:%s220] %v302
                %v304 = vld [vmem:[%s230 + $0x458] sm:%s220]
                %305 = vst [vmem:[%s231 + $0x470] sm:%s220] %v304
                %v306 = vld [vmem:[%s230 + $0x460] sm:%s220]
                %307 = vst [vmem:[%s231 + $0x478] sm:%s220] %v306
                %v308 = vld [vmem:[%s230 + $0x468] sm:%s220]
                %309 = vst [vmem:[%s231 + $0x480] sm:%s220] %v308
                %v310 = vld [vmem:[%s230 + $0x470] sm:%s220]
                %311 = vst [vmem:[%s231 + $0x488] sm:%s220] %v310
                %v312 = vld [vmem:[%s230 + $0x478] sm:%s220]
                %313 = vst [vmem:[%s231 + $0x490] sm:%s220] %v312
                %v314 = vld [vmem:[%s230 + $0x480] sm:%s220]
                %315 = vst [vmem:[%s231 + $0x498] sm:%s220] %v314
                %v316 = vld [vmem:[%s230 + $0x488] sm:%s220]
                %317 = vst [vmem:[%s231 + $0x4a0] sm:%s220] %v316
                %v318 = vld [vmem:[%s230 + $0x490] sm:%s220]
                %319 = vst [vmem:[%s231 + $0x4a8] sm:%s220] %v318
                %v320 = vld [vmem:[%s230 + $0x7d0] sm:%s220]
                %321 = vst [vmem:[%s231 + $0x800] sm:%s220] %v320
                %v322 = vld [vmem:[%s230 + $0x7d8] sm:%s220]
                %323 = vst [vmem:[%s231 + $0x808] sm:%s220] %v322
                %v324 = vld [vmem:[%s230 + $0x7e0] sm:%s220]
                %325 = vst [vmem:[%s231 + $0x810] sm:%s220] %v324
                %v326 = vld [vmem:[%s230 + $0x7e8] sm:%s220]
                %327 = vst [vmem:[%s231 + $0x818] sm:%s220] %v326
                %v328 = vld [vmem:[%s230 + $0x7f0] sm:%s220]
                %329 = vst [vmem:[%s231 + $0x820] sm:%s220] %v328
                %v330 = vld [vmem:[%s230 + $0x7f8] sm:%s220]
                %331 = vst [vmem:[%s231 + $0x828] sm:%s220] %v330
                %v332 = vld [vmem:[%s230 + $0x800] sm:%s220]
                %333 = vst [vmem:[%s231 + $0x830] sm:%s220] %v332
                %v334 = vld [vmem:[%s230 + $0x808] sm:%s220]
                %335 = vst [vmem:[%s231 + $0x838] sm:%s220] %v334
                %v336 = vld [vmem:[%s230 + $0x810] sm:%s220]
                %337 = vst [vmem:[%s231 + $0x840] sm:%s220] %v336
                %v338 = vld [vmem:[%s230 + $0x818] sm:%s220]
                %339 = vst [vmem:[%s231 + $0x848] sm:%s220] %v338
                %v340 = vld [vmem:[%s230 + $0x820] sm:%s220]
                %341 = vst [vmem:[%s231 + $0x850] sm:%s220] %v340
                %v342 = vld [vmem:[%s230 + $0x828] sm:%s220]
                %343 = vst [vmem:[%s231 + $0x858] sm:%s220] %v342
                %v344 = vld [vmem:[%s230 + $0x830] sm:%s220]
                %345 = vst [vmem:[%s231 + $0x860] sm:%s220] %v344
                %v346 = vld [vmem:[%s230 + $0x838] sm:%s220]
                %347 = vst [vmem:[%s231 + $0x868] sm:%s220] %v346
                %v348 = vld [vmem:[%s230 + $0x840] sm:%s220]
                %349 = vst [vmem:[%s231 + $0x870] sm:%s220] %v348
                %v350 = vld [vmem:[%s230 + $0x848] sm:%s220]
                %351 = vst [vmem:[%s231 + $0x878] sm:%s220] %v350
                %v352 = vld [vmem:[%s230 + $0x850] sm:%s220]
                %353 = vst [vmem:[%s231 + $0x880] sm:%s220] %v352
                %v354 = vld [vmem:[%s230 + $0x858] sm:%s220]
                %355 = vst [vmem:[%s231 + $0x888] sm:%s220] %v354
                %v356 = vld [vmem:[%s230 + $0x860] sm:%s220]
                %357 = vst [vmem:[%s231 + $0x890] sm:%s220] %v356
                %v358 = vld [vmem:[%s230 + $0x868] sm:%s220]
                %359 = vst [vmem:[%s231 + $0x898] sm:%s220] %v358
                %v360 = vld [vmem:[%s230 + $0x870] sm:%s220]
                %361 = vst [vmem:[%s231 + $0x8a0] sm:%s220] %v360
                %v362 = vld [vmem:[%s230 + $0x878] sm:%s220]
                %363 = vst [vmem:[%s231 + $0x8a8] sm:%s220] %v362
                %s364 = sadd.s32 1, %s229
                %p365 = scmp.ge.s32.totalorder %s364, %s221
                %s366 = scalar_select %p365, 0, %s364
                %s367 = smul.u32 %s366, 176
                %s368 = smul.u32 %s366, 176
                %s369 = scalar_lea.vmem %s211, %s367
                %s370 = scalar_lea.vmem %s203, %s368 [#allocation2]
              $region53: #{tpu_custom_call.1} parent=47 // loop_footer
                %s226 = sadd.s32 %s224, 1
              $region54: #{tpu_custom_call.1} parent=47 // loop_footer_branch
                %223 = sbr.rel target = $region50
              $region55: #{tpu_custom_call.1} parent=47 // loop_exit
                _
              %s371 = sdiv.u32.pop %s205, 22
              %s372 = srem.u32.pop %s205, 22
              %s373 = smul.u32 %s371, 22
              %s374 = smul.u32 8, %s373
              %s375 = scalar_lea.vmem %s211, %s374
              %s376 = smul.u32 8, %s373
              %s377 = scalar_lea.vmem %s203, %s376 [#allocation2]
              // While loop
              $region56: #{tpu_custom_call.1} parent=47 // loop_pre_header
                _
              $region57: #{tpu_custom_call.1} parent=47 // loop_header
                %s379 = sphi 0, %s381
                %p380 = scmp.ge.s32.totalorder %s379, %s372
                %s384 = sphi 0, %s395
                %s385 = sphi %s375, %s398
                %s386 = sphi %s377, %s399
              $region58: #{tpu_custom_call.1} parent=47 // loop_header_branch
                %383 = sbr.rel (%p380) target = $region62
              $region59: #{tpu_custom_call.1} parent=47 // loop_body
                %v387 = vld [vmem:[%s385] sm:%s220]
                %388 = vst [vmem:[%s386] sm:%s220] %v387
                %v389 = vld [vmem:[%s385 + $0x3e8] sm:%s220]
                %390 = vst [vmem:[%s386 + $0x400] sm:%s220] %v389
                %v391 = vld [vmem:[%s385 + $0x7d0] sm:%s220]
                %392 = vst [vmem:[%s386 + $0x800] sm:%s220] %v391
                %s393 = sadd.s32 1, %s384
                %p394 = scmp.ge.s32.totalorder %s393, %s372
                %s395 = scalar_select %p394, 0, %s393
                %s396 = smul.u32 %s395, 8
                %s397 = smul.u32 %s395, 8
                %s398 = scalar_lea.vmem %s375, %s396
                %s399 = scalar_lea.vmem %s377, %s397 [#allocation2]
              $region60: #{tpu_custom_call.1} parent=47 // loop_footer
                %s381 = sadd.s32 %s379, 1
              $region61: #{tpu_custom_call.1} parent=47 // loop_footer_branch
                %378 = sbr.rel target = $region57
              $region62: #{tpu_custom_call.1} parent=47 // loop_exit
                _
            $region48: #{tpu_custom_call.1} parent=39 // pred_fallthru
              _
          $region40: #{tpu_custom_call.1} parent=35 // pred_fallthru
            _
          %583 = vnop
        $region36: #{tpu_custom_call.1} parent=31 // pred_fallthru
          _
      $region32: #{tpu_custom_call.1} parent=5 // pred_fallthru
        _
      %p584 = scmp.le.s32.totalorder 1, %s14
      %p585 = scmp.lt.s32.totalorder %s14, 3
      %p586 = pnand %p584, %p585
      %p587 = pneg %p586
      // Predicated region
      $region85: #{tpu_custom_call.1} parent=5 // pred_check
        _
      $region86: #{tpu_custom_call.1} parent=5 // pred_check_branch
        %589 = sbr.rel (%p586) target = $region88
      $region87: #{tpu_custom_call.1} parent=5 // pred_region
        %s590 = ssub.s32 %s14, 1
        %s591 = sand.u32 %s41, 1
        %s592 = sand.u32 %s41, 1
        %s593 = smul.addr %s592, 3072
        %s594 = scalar_lea.vmem [#allocation2], %s593
        // Predicated region
        $region89: #{tpu_custom_call.1} parent=87 // pred_check
          %p595 = pneg %p54
        $region90: #{tpu_custom_call.1} parent=87 // pred_check_branch
          %597 = sbr.rel (%p595) target = $region92
        $region91: #{tpu_custom_call.1} parent=87 // pred_region
          _
        $region92: #{tpu_custom_call.1} parent=87 // pred_fallthru
          _
        %s598 = sand.u32 %s41, 1
        %s599 = sand.u32 %s41, 1
        %s600 = smul.addr %s599, 3072
        %s601 = scalar_lea.vmem [#allocation2], %s600
        %p602 = pneg %p54
        %p603 = pneg %p51
        %p604 = pneg %p75
        %p605 = pneg %p72
        %p606 = pneg %p96
        %p607 = pneg %p93
        %p608 = pneg %p117
        %p609 = pneg %p114
        %p610 = pneg %p138
        %p611 = pneg %p135
        %p612 = pneg %p166
        %p613 = pneg %p163
        %s614 = sand.u32 %s153, 1
        %s615 = scalar_lea.sflag [#allocation4], %s614
        %s616 = sand.u32 %s153, 1
        %s617 = smul.addr %s616, 32
        %s618 = scalar_lea.vmem [#allocation3], %s617
        %s619 = smul.u32 128, %s24
        %s620 = ssub.s32 125, %s619
        %s621 = smul.u32 384, %s620
        %s622 = smul.u32 8, %s24
        %v623 = vld [vmem:[%s594] sm:$0xff]
        %v624 = vld [vmem:[%s594 + $0x8] sm:$0xff]
        %v625 = vld [vmem:[%s594 + $0x10] sm:$0xff]
        %v626 = vld [vmem:[%s594 + $0x18] sm:$0xff]
        %v627 = vld [vmem:[%s594 + $0x20] sm:$0xff]
        %v628 = vld [vmem:[%s594 + $0x28] sm:$0xff]
        %v629 = vld [vmem:[%s594 + $0x30] sm:$0xff]
        %v630 = vld [vmem:[%s594 + $0x38] sm:$0xff]
        %v631 = vld [vmem:[%s594 + $0x40] sm:$0xff]
        %v632 = vld [vmem:[%s594 + $0x48] sm:$0xff]
        %v633 = vld [vmem:[%s594 + $0x50] sm:$0xff]
        %v634 = vld [vmem:[%s594 + $0x58] sm:$0xff]
        %v635 = vld [vmem:[%s594 + $0x60] sm:$0xff]
        %v636 = vld [vmem:[%s594 + $0x68] sm:$0xff]
        %v637 = vld [vmem:[%s594 + $0x70] sm:$0xff]
        %v638 = vld [vmem:[%s594 + $0x78] sm:$0xff]
        %v639 = vld [vmem:[%s594 + $0x80] sm:$0xff]
        %v640 = vld [vmem:[%s594 + $0x88] sm:$0xff]
        %v641 = vld [vmem:[%s594 + $0x90] sm:$0xff]
        %v642 = vld [vmem:[%s594 + $0x98] sm:$0xff]
        %v643 = vld [vmem:[%s594 + $0xa0] sm:$0xff]
        %v644 = vld [vmem:[%s594 + $0xa8] sm:$0xff]
        %v645 = vld [vmem:[%s594 + $0xb0] sm:$0xff]
        %v646 = vld [vmem:[%s594 + $0xb8] sm:$0xff]
        %v647 = vld [vmem:[%s594 + $0xc0] sm:$0xff]
        %v648 = vld [vmem:[%s594 + $0xc8] sm:$0xff]
        %v649 = vld [vmem:[%s594 + $0xd0] sm:$0xff]
        %v650 = vld [vmem:[%s594 + $0xd8] sm:$0xff]
        %v651 = vld [vmem:[%s594 + $0xe0] sm:$0xff]
        %v652 = vld [vmem:[%s594 + $0xe8] sm:$0xff]
        %v653 = vld [vmem:[%s594 + $0xf0] sm:$0xff]
        %v654 = vld [vmem:[%s594 + $0xf8] sm:$0xff]
        %v655 = vld [vmem:[%s594 + $0x100] sm:$0xff]
        %v656 = vld [vmem:[%s594 + $0x108] sm:$0xff]
        %v657 = vld [vmem:[%s594 + $0x110] sm:$0xff]
        %v658 = vld [vmem:[%s594 + $0x118] sm:$0xff]
        %v659 = vld [vmem:[%s594 + $0x120] sm:$0xff]
        %v660 = vld [vmem:[%s594 + $0x128] sm:$0xff]
        %v661 = vld [vmem:[%s594 + $0x130] sm:$0xff]
        %v662 = vld [vmem:[%s594 + $0x138] sm:$0xff]
        %v663 = vld [vmem:[%s594 + $0x140] sm:$0xff]
        %v664 = vld [vmem:[%s594 + $0x148] sm:$0xff]
        %v665 = vld [vmem:[%s594 + $0x150] sm:$0xff]
        %v666 = vld [vmem:[%s594 + $0x158] sm:$0xff]
        %v667 = vld [vmem:[%s594 + $0x160] sm:$0xff]
        %v668 = vld [vmem:[%s594 + $0x168] sm:$0xff]
        %v669 = vld [vmem:[%s594 + $0x170] sm:$0xff]
        %v670 = vld [vmem:[%s594 + $0x178] sm:$0xff]
        %v671 = vld [vmem:[%s594 + $0x180] sm:$0xff]
        %v672 = vld [vmem:[%s594 + $0x188] sm:$0xff]
        %v673 = vld [vmem:[%s594 + $0x190] sm:$0xff]
        %v674 = vld [vmem:[%s594 + $0x198] sm:$0xff]
        %v675 = vld [vmem:[%s594 + $0x1a0] sm:$0xff]
        %v676 = vld [vmem:[%s594 + $0x1a8] sm:$0xff]
        %v677 = vld [vmem:[%s594 + $0x1b0] sm:$0xff]
        %v678 = vld [vmem:[%s594 + $0x1b8] sm:$0xff]
        %v679 = vld [vmem:[%s594 + $0x1c0] sm:$0xff]
        %v680 = vld [vmem:[%s594 + $0x1c8] sm:$0xff]
        %v681 = vld [vmem:[%s594 + $0x1d0] sm:$0xff]
        %v682 = vld [vmem:[%s594 + $0x1d8] sm:$0xff]
        %v683 = vld [vmem:[%s594 + $0x1e0] sm:$0xff]
        %v684 = vld [vmem:[%s594 + $0x1e8] sm:$0xff]
        %v685 = vld [vmem:[%s594 + $0x1f0] sm:$0xff]
        %v686 = vld [vmem:[%s594 + $0x1f8] sm:$0xff]
        %v687 = vld [vmem:[%s594 + $0x200] sm:$0xff]
        %v688 = vld [vmem:[%s594 + $0x208] sm:$0xff]
        %v689 = vld [vmem:[%s594 + $0x210] sm:$0xff]
        %v690 = vld [vmem:[%s594 + $0x218] sm:$0xff]
        %v691 = vld [vmem:[%s594 + $0x220] sm:$0xff]
        %v692 = vld [vmem:[%s594 + $0x228] sm:$0xff]
        %v693 = vld [vmem:[%s594 + $0x230] sm:$0xff]
        %v694 = vld [vmem:[%s594 + $0x238] sm:$0xff]
        %v695 = vld [vmem:[%s594 + $0x240] sm:$0xff]
        %v696 = vld [vmem:[%s594 + $0x248] sm:$0xff]
        %v697 = vld [vmem:[%s594 + $0x250] sm:$0xff]
        %v698 = vld [vmem:[%s594 + $0x258] sm:$0xff]
        %v699 = vld [vmem:[%s594 + $0x260] sm:$0xff]
        %v700 = vld [vmem:[%s594 + $0x268] sm:$0xff]
        %v701 = vld [vmem:[%s594 + $0x270] sm:$0xff]
        %v702 = vld [vmem:[%s594 + $0x278] sm:$0xff]
        %v703 = vld [vmem:[%s594 + $0x280] sm:$0xff]
        %v704 = vld [vmem:[%s594 + $0x288] sm:$0xff]
        %v705 = vld [vmem:[%s594 + $0x290] sm:$0xff]
        %v706 = vld [vmem:[%s594 + $0x298] sm:$0xff]
        %v707 = vld [vmem:[%s594 + $0x2a0] sm:$0xff]
        %v708 = vld [vmem:[%s594 + $0x2a8] sm:$0xff]
        %v709 = vld [vmem:[%s594 + $0x2b0] sm:$0xff]
        %v710 = vld [vmem:[%s594 + $0x2b8] sm:$0xff]
        %v711 = vld [vmem:[%s594 + $0x2c0] sm:$0xff]
        %v712 = vld [vmem:[%s594 + $0x2c8] sm:$0xff]
        %v713 = vld [vmem:[%s594 + $0x2d0] sm:$0xff]
        %v714 = vld [vmem:[%s594 + $0x2d8] sm:$0xff]
        %v715 = vld [vmem:[%s594 + $0x2e0] sm:$0xff]
        %v716 = vld [vmem:[%s594 + $0x2e8] sm:$0xff]
        %v717 = vld [vmem:[%s594 + $0x2f0] sm:$0xff]
        %v718 = vld [vmem:[%s594 + $0x2f8] sm:$0xff]
        %v719 = vld [vmem:[%s594 + $0x300] sm:$0xff]
        %v720 = vld [vmem:[%s594 + $0x308] sm:$0xff]
        %v721 = vld [vmem:[%s594 + $0x310] sm:$0xff]
        %v722 = vld [vmem:[%s594 + $0x318] sm:$0xff]
        %v723 = vld [vmem:[%s594 + $0x320] sm:$0xff]
        %v724 = vld [vmem:[%s594 + $0x328] sm:$0xff]
        %v725 = vld [vmem:[%s594 + $0x330] sm:$0xff]
        %v726 = vld [vmem:[%s594 + $0x338] sm:$0xff]
        %v727 = vld [vmem:[%s594 + $0x340] sm:$0xff]
        %v728 = vld [vmem:[%s594 + $0x348] sm:$0xff]
        %v729 = vld [vmem:[%s594 + $0x350] sm:$0xff]
        %v730 = vld [vmem:[%s594 + $0x358] sm:$0xff]
        %v731 = vld [vmem:[%s594 + $0x360] sm:$0xff]
        %v732 = vld [vmem:[%s594 + $0x368] sm:$0xff]
        %v733 = vld [vmem:[%s594 + $0x370] sm:$0xff]
        %v734 = vld [vmem:[%s594 + $0x378] sm:$0xff]
        %v735 = vld [vmem:[%s594 + $0x380] sm:$0xff]
        %v736 = vld [vmem:[%s594 + $0x388] sm:$0xff]
        %v737 = vld [vmem:[%s594 + $0x390] sm:$0xff]
        %v738 = vld [vmem:[%s594 + $0x398] sm:$0xff]
        %v739 = vld [vmem:[%s594 + $0x3a0] sm:$0xff]
        %v740 = vld [vmem:[%s594 + $0x3a8] sm:$0xff]
        %v741 = vld [vmem:[%s594 + $0x3b0] sm:$0xff]
        %v742 = vld [vmem:[%s594 + $0x3b8] sm:$0xff]
        %v743 = vld [vmem:[%s594 + $0x3c0] sm:$0xff]
        %v744 = vld [vmem:[%s594 + $0x3c8] sm:$0xff]
        %v745 = vld [vmem:[%s594 + $0x3d0] sm:$0xff]
        %v746 = vld [vmem:[%s594 + $0x3d8] sm:$0xff]
        %v747 = vld [vmem:[%s594 + $0x3e0] sm:$0xff]
        %v748 = vld [vmem:[%s594 + $0x3e8] sm:$0xff]
        %v749 = vld [vmem:[%s594 + $0x3f0] sm:$0xff]
        %v750 = vld [vmem:[%s594 + $0x3f8] sm:$0xff]
        %v751 = vld [vmem:[%s594 + $0x400] sm:$0xff]
        %v752 = vld [vmem:[%s594 + $0x408] sm:$0xff]
        %v753 = vld [vmem:[%s594 + $0x410] sm:$0xff]
        %v754 = vld [vmem:[%s594 + $0x418] sm:$0xff]
        %v755 = vld [vmem:[%s594 + $0x420] sm:$0xff]
        %v756 = vld [vmem:[%s594 + $0x428] sm:$0xff]
        %v757 = vld [vmem:[%s594 + $0x430] sm:$0xff]
        %v758 = vld [vmem:[%s594 + $0x438] sm:$0xff]
        %v759 = vld [vmem:[%s594 + $0x440] sm:$0xff]
        %v760 = vld [vmem:[%s594 + $0x448] sm:$0xff]
        %v761 = vld [vmem:[%s594 + $0x450] sm:$0xff]
        %v762 = vld [vmem:[%s594 + $0x458] sm:$0xff]
        %v763 = vld [vmem:[%s594 + $0x460] sm:$0xff]
        %v764 = vld [vmem:[%s594 + $0x468] sm:$0xff]
        %v765 = vld [vmem:[%s594 + $0x470] sm:$0xff]
        %v766 = vld [vmem:[%s594 + $0x478] sm:$0xff]
        %v767 = vld [vmem:[%s594 + $0x480] sm:$0xff]
        %v768 = vld [vmem:[%s594 + $0x488] sm:$0xff]
        %v769 = vld [vmem:[%s594 + $0x490] sm:$0xff]
        %v770 = vld [vmem:[%s594 + $0x498] sm:$0xff]
        %v771 = vld [vmem:[%s594 + $0x4a0] sm:$0xff]
        %v772 = vld [vmem:[%s594 + $0x4a8] sm:$0xff]
        %v773 = vld [vmem:[%s594 + $0x4b0] sm:$0xff]
        %v774 = vld [vmem:[%s594 + $0x4b8] sm:$0xff]
        %v775 = vld [vmem:[%s594 + $0x4c0] sm:$0xff]
        %v776 = vld [vmem:[%s594 + $0x4c8] sm:$0xff]
        %v777 = vld [vmem:[%s594 + $0x4d0] sm:$0xff]
        %v778 = vld [vmem:[%s594 + $0x4d8] sm:$0xff]
        %v779 = vld [vmem:[%s594 + $0x4e0] sm:$0xff]
        %v780 = vld [vmem:[%s594 + $0x4e8] sm:$0xff]
        %v781 = vld [vmem:[%s594 + $0x4f0] sm:$0xff]
        %v782 = vld [vmem:[%s594 + $0x4f8] sm:$0xff]
        %v783 = vld [vmem:[%s594 + $0x500] sm:$0xff]
        %v784 = vld [vmem:[%s594 + $0x508] sm:$0xff]
        %v785 = vld [vmem:[%s594 + $0x510] sm:$0xff]
        %v786 = vld [vmem:[%s594 + $0x518] sm:$0xff]
        %v787 = vld [vmem:[%s594 + $0x520] sm:$0xff]
        %v788 = vld [vmem:[%s594 + $0x528] sm:$0xff]
        %v789 = vld [vmem:[%s594 + $0x530] sm:$0xff]
        %v790 = vld [vmem:[%s594 + $0x538] sm:$0xff]
        %v791 = vld [vmem:[%s594 + $0x540] sm:$0xff]
        %v792 = vld [vmem:[%s594 + $0x548] sm:$0xff]
        %v793 = vld [vmem:[%s594 + $0x550] sm:$0xff]
        %v794 = vld [vmem:[%s594 + $0x558] sm:$0xff]
        %v795 = vld [vmem:[%s594 + $0x560] sm:$0xff]
        %v796 = vld [vmem:[%s594 + $0x568] sm:$0xff]
        %v797 = vld [vmem:[%s594 + $0x570] sm:$0xff]
        %v798 = vld [vmem:[%s594 + $0x578] sm:$0xff]
        %v799 = vld [vmem:[%s594 + $0x580] sm:$0xff]
        %v800 = vld [vmem:[%s594 + $0x588] sm:$0xff]
        %v801 = vld [vmem:[%s594 + $0x590] sm:$0xff]
        %v802 = vld [vmem:[%s594 + $0x598] sm:$0xff]
        %v803 = vld [vmem:[%s594 + $0x5a0] sm:$0xff]
        %v804 = vld [vmem:[%s594 + $0x5a8] sm:$0xff]
        %v805 = vld [vmem:[%s594 + $0x5b0] sm:$0xff]
        %v806 = vld [vmem:[%s594 + $0x5b8] sm:$0xff]
        %v807 = vld [vmem:[%s594 + $0x5c0] sm:$0xff]
        %v808 = vld [vmem:[%s594 + $0x5c8] sm:$0xff]
        %v809 = vld [vmem:[%s594 + $0x5d0] sm:$0xff]
        %v810 = vld [vmem:[%s594 + $0x5d8] sm:$0xff]
        %v811 = vld [vmem:[%s594 + $0x5e0] sm:$0xff]
        %v812 = vld [vmem:[%s594 + $0x5e8] sm:$0xff]
        %v813 = vld [vmem:[%s594 + $0x5f0] sm:$0xff]
        %v814 = vld [vmem:[%s594 + $0x5f8] sm:$0xff]
        %v815 = vld [vmem:[%s594 + $0x600] sm:$0xff]
        %v816 = vld [vmem:[%s594 + $0x608] sm:$0xff]
        %v817 = vld [vmem:[%s594 + $0x610] sm:$0xff]
        %v818 = vld [vmem:[%s594 + $0x618] sm:$0xff]
        %v819 = vld [vmem:[%s594 + $0x620] sm:$0xff]
        %v820 = vld [vmem:[%s594 + $0x628] sm:$0xff]
        %v821 = vld [vmem:[%s594 + $0x630] sm:$0xff]
        %v822 = vld [vmem:[%s594 + $0x638] sm:$0xff]
        %v823 = vld [vmem:[%s594 + $0x640] sm:$0xff]
        %v824 = vld [vmem:[%s594 + $0x648] sm:$0xff]
        %v825 = vld [vmem:[%s594 + $0x650] sm:$0xff]
        %v826 = vld [vmem:[%s594 + $0x658] sm:$0xff]
        %v827 = vld [vmem:[%s594 + $0x660] sm:$0xff]
        %v828 = vld [vmem:[%s594 + $0x668] sm:$0xff]
        %v829 = vld [vmem:[%s594 + $0x670] sm:$0xff]
        %v830 = vld [vmem:[%s594 + $0x678] sm:$0xff]
        %v831 = vld [vmem:[%s594 + $0x680] sm:$0xff]
        %v832 = vld [vmem:[%s594 + $0x688] sm:$0xff]
        %v833 = vld [vmem:[%s594 + $0x690] sm:$0xff]
        %v834 = vld [vmem:[%s594 + $0x698] sm:$0xff]
        %v835 = vld [vmem:[%s594 + $0x6a0] sm:$0xff]
        %v836 = vld [vmem:[%s594 + $0x6a8] sm:$0xff]
        %v837 = vld [vmem:[%s594 + $0x6b0] sm:$0xff]
        %v838 = vld [vmem:[%s594 + $0x6b8] sm:$0xff]
        %v839 = vld [vmem:[%s594 + $0x6c0] sm:$0xff]
        %v840 = vld [vmem:[%s594 + $0x6c8] sm:$0xff]
        %v841 = vld [vmem:[%s594 + $0x6d0] sm:$0xff]
        %v842 = vld [vmem:[%s594 + $0x6d8] sm:$0xff]
        %v843 = vld [vmem:[%s594 + $0x6e0] sm:$0xff]
        %v844 = vld [vmem:[%s594 + $0x6e8] sm:$0xff]
        %v845 = vld [vmem:[%s594 + $0x6f0] sm:$0xff]
        %v846 = vld [vmem:[%s594 + $0x6f8] sm:$0xff]
        %v847 = vld [vmem:[%s594 + $0x700] sm:$0xff]
        %v848 = vld [vmem:[%s594 + $0x708] sm:$0xff]
        %v849 = vld [vmem:[%s594 + $0x710] sm:$0xff]
        %v850 = vld [vmem:[%s594 + $0x718] sm:$0xff]
        %v851 = vld [vmem:[%s594 + $0x720] sm:$0xff]
        %v852 = vld [vmem:[%s594 + $0x728] sm:$0xff]
        %v853 = vld [vmem:[%s594 + $0x730] sm:$0xff]
        %v854 = vld [vmem:[%s594 + $0x738] sm:$0xff]
        %v855 = vld [vmem:[%s594 + $0x740] sm:$0xff]
        %v856 = vld [vmem:[%s594 + $0x748] sm:$0xff]
        %v857 = vld [vmem:[%s594 + $0x750] sm:$0xff]
        %v858 = vld [vmem:[%s594 + $0x758] sm:$0xff]
        %v859 = vld [vmem:[%s594 + $0x760] sm:$0xff]
        %v860 = vld [vmem:[%s594 + $0x768] sm:$0xff]
        %v861 = vld [vmem:[%s594 + $0x770] sm:$0xff]
        %v862 = vld [vmem:[%s594 + $0x778] sm:$0xff]
        %v863 = vld [vmem:[%s594 + $0x780] sm:$0xff]
        %v864 = vld [vmem:[%s594 + $0x788] sm:$0xff]
        %v865 = vld [vmem:[%s594 + $0x790] sm:$0xff]
        %v866 = vld [vmem:[%s594 + $0x798] sm:$0xff]
        %v867 = vld [vmem:[%s594 + $0x7a0] sm:$0xff]
        %v868 = vld [vmem:[%s594 + $0x7a8] sm:$0xff]
        %v869 = vld [vmem:[%s594 + $0x7b0] sm:$0xff]
        %v870 = vld [vmem:[%s594 + $0x7b8] sm:$0xff]
        %v871 = vld [vmem:[%s594 + $0x7c0] sm:$0xff]
        %v872 = vld [vmem:[%s594 + $0x7c8] sm:$0xff]
        %v873 = vld [vmem:[%s594 + $0x7d0] sm:$0xff]
        %v874 = vld [vmem:[%s594 + $0x7d8] sm:$0xff]
        %v875 = vld [vmem:[%s594 + $0x7e0] sm:$0xff]
        %v876 = vld [vmem:[%s594 + $0x7e8] sm:$0xff]
        %v877 = vld [vmem:[%s594 + $0x7f0] sm:$0xff]
        %v878 = vld [vmem:[%s594 + $0x7f8] sm:$0xff]
        %v879 = vld [vmem:[%s594 + $0x800] sm:$0xff]
        %v880 = vld [vmem:[%s594 + $0x808] sm:$0xff]
        %v881 = vld [vmem:[%s594 + $0x810] sm:$0xff]
        %v882 = vld [vmem:[%s594 + $0x818] sm:$0xff]
        %v883 = vld [vmem:[%s594 + $0x820] sm:$0xff]
        %v884 = vld [vmem:[%s594 + $0x828] sm:$0xff]
        %v885 = vld [vmem:[%s594 + $0x830] sm:$0xff]
        %v886 = vld [vmem:[%s594 + $0x838] sm:$0xff]
        %v887 = vld [vmem:[%s594 + $0x840] sm:$0xff]
        %v888 = vld [vmem:[%s594 + $0x848] sm:$0xff]
        %v889 = vld [vmem:[%s594 + $0x850] sm:$0xff]
        %v890 = vld [vmem:[%s594 + $0x858] sm:$0xff]
        %v891 = vld [vmem:[%s594 + $0x860] sm:$0xff]
        %v892 = vld [vmem:[%s594 + $0x868] sm:$0xff]
        %v893 = vld [vmem:[%s594 + $0x870] sm:$0xff]
        %v894 = vld [vmem:[%s594 + $0x878] sm:$0xff]
        %v895 = vld [vmem:[%s594 + $0x880] sm:$0xff]
        %v896 = vld [vmem:[%s594 + $0x888] sm:$0xff]
        %v897 = vld [vmem:[%s594 + $0x890] sm:$0xff]
        %v898 = vld [vmem:[%s594 + $0x898] sm:$0xff]
        %v899 = vld [vmem:[%s594 + $0x8a0] sm:$0xff]
        %v900 = vld [vmem:[%s594 + $0x8a8] sm:$0xff]
        %v901 = vld [vmem:[%s594 + $0x8b0] sm:$0xff]
        %v902 = vld [vmem:[%s594 + $0x8b8] sm:$0xff]
        %v903 = vld [vmem:[%s594 + $0x8c0] sm:$0xff]
        %v904 = vld [vmem:[%s594 + $0x8c8] sm:$0xff]
        %v905 = vld [vmem:[%s594 + $0x8d0] sm:$0xff]
        %v906 = vld [vmem:[%s594 + $0x8d8] sm:$0xff]
        %v907 = vld [vmem:[%s594 + $0x8e0] sm:$0xff]
        %v908 = vld [vmem:[%s594 + $0x8e8] sm:$0xff]
        %v909 = vld [vmem:[%s594 + $0x8f0] sm:$0xff]
        %v910 = vld [vmem:[%s594 + $0x8f8] sm:$0xff]
        %v911 = vld [vmem:[%s594 + $0x900] sm:$0xff]
        %v912 = vld [vmem:[%s594 + $0x908] sm:$0xff]
        %v913 = vld [vmem:[%s594 + $0x910] sm:$0xff]
        %v914 = vld [vmem:[%s594 + $0x918] sm:$0xff]
        %v915 = vld [vmem:[%s594 + $0x920] sm:$0xff]
        %v916 = vld [vmem:[%s594 + $0x928] sm:$0xff]
        %v917 = vld [vmem:[%s594 + $0x930] sm:$0xff]
        %v918 = vld [vmem:[%s594 + $0x938] sm:$0xff]
        %v919 = vld [vmem:[%s594 + $0x940] sm:$0xff]
        %v920 = vld [vmem:[%s594 + $0x948] sm:$0xff]
        %v921 = vld [vmem:[%s594 + $0x950] sm:$0xff]
        %v922 = vld [vmem:[%s594 + $0x958] sm:$0xff]
        %v923 = vld [vmem:[%s594 + $0x960] sm:$0xff]
        %v924 = vld [vmem:[%s594 + $0x968] sm:$0xff]
        %v925 = vld [vmem:[%s594 + $0x970] sm:$0xff]
        %v926 = vld [vmem:[%s594 + $0x978] sm:$0xff]
        %v927 = vld [vmem:[%s594 + $0x980] sm:$0xff]
        %v928 = vld [vmem:[%s594 + $0x988] sm:$0xff]
        %v929 = vld [vmem:[%s594 + $0x990] sm:$0xff]
        %v930 = vld [vmem:[%s594 + $0x998] sm:$0xff]
        %v931 = vld [vmem:[%s594 + $0x9a0] sm:$0xff]
        %v932 = vld [vmem:[%s594 + $0x9a8] sm:$0xff]
        %v933 = vld [vmem:[%s594 + $0x9b0] sm:$0xff]
        %v934 = vld [vmem:[%s594 + $0x9b8] sm:$0xff]
        %v935 = vld [vmem:[%s594 + $0x9c0] sm:$0xff]
        %v936 = vld [vmem:[%s594 + $0x9c8] sm:$0xff]
        %v937 = vld [vmem:[%s594 + $0x9d0] sm:$0xff]
        %v938 = vld [vmem:[%s594 + $0x9d8] sm:$0xff]
        %v939 = vld [vmem:[%s594 + $0x9e0] sm:$0xff]
        %v940 = vld [vmem:[%s594 + $0x9e8] sm:$0xff]
        %v941 = vld [vmem:[%s594 + $0x9f0] sm:$0xff]
        %v942 = vld [vmem:[%s594 + $0x9f8] sm:$0xff]
        %v943 = vld [vmem:[%s594 + $0xa00] sm:$0xff]
        %v944 = vld [vmem:[%s594 + $0xa08] sm:$0xff]
        %v945 = vld [vmem:[%s594 + $0xa10] sm:$0xff]
        %v946 = vld [vmem:[%s594 + $0xa18] sm:$0xff]
        %v947 = vld [vmem:[%s594 + $0xa20] sm:$0xff]
        %v948 = vld [vmem:[%s594 + $0xa28] sm:$0xff]
        %v949 = vld [vmem:[%s594 + $0xa30] sm:$0xff]
        %v950 = vld [vmem:[%s594 + $0xa38] sm:$0xff]
        %v951 = vld [vmem:[%s594 + $0xa40] sm:$0xff]
        %v952 = vld [vmem:[%s594 + $0xa48] sm:$0xff]
        %v953 = vld [vmem:[%s594 + $0xa50] sm:$0xff]
        %v954 = vld [vmem:[%s594 + $0xa58] sm:$0xff]
        %v955 = vld [vmem:[%s594 + $0xa60] sm:$0xff]
        %v956 = vld [vmem:[%s594 + $0xa68] sm:$0xff]
        %v957 = vld [vmem:[%s594 + $0xa70] sm:$0xff]
        %v958 = vld [vmem:[%s594 + $0xa78] sm:$0xff]
        %v959 = vld [vmem:[%s594 + $0xa80] sm:$0xff]
        %v960 = vld [vmem:[%s594 + $0xa88] sm:$0xff]
        %v961 = vld [vmem:[%s594 + $0xa90] sm:$0xff]
        %v962 = vld [vmem:[%s594 + $0xa98] sm:$0xff]
        %v963 = vld [vmem:[%s594 + $0xaa0] sm:$0xff]
        %v964 = vld [vmem:[%s594 + $0xaa8] sm:$0xff]
        %v965 = vld [vmem:[%s594 + $0xab0] sm:$0xff]
        %v966 = vld [vmem:[%s594 + $0xab8] sm:$0xff]
        %v967 = vld [vmem:[%s594 + $0xac0] sm:$0xff]
        %v968 = vld [vmem:[%s594 + $0xac8] sm:$0xff]
        %v969 = vld [vmem:[%s594 + $0xad0] sm:$0xff]
        %v970 = vld [vmem:[%s594 + $0xad8] sm:$0xff]
        %v971 = vld [vmem:[%s594 + $0xae0] sm:$0xff]
        %v972 = vld [vmem:[%s594 + $0xae8] sm:$0xff]
        %v973 = vld [vmem:[%s594 + $0xaf0] sm:$0xff]
        %v974 = vld [vmem:[%s594 + $0xaf8] sm:$0xff]
        %v975 = vld [vmem:[%s594 + $0xb00] sm:$0xff]
        %v976 = vld [vmem:[%s594 + $0xb08] sm:$0xff]
        %v977 = vld [vmem:[%s594 + $0xb10] sm:$0xff]
        %v978 = vld [vmem:[%s594 + $0xb18] sm:$0xff]
        %v979 = vld [vmem:[%s594 + $0xb20] sm:$0xff]
        %v980 = vld [vmem:[%s594 + $0xb28] sm:$0xff]
        %v981 = vld [vmem:[%s594 + $0xb30] sm:$0xff]
        %v982 = vld [vmem:[%s594 + $0xb38] sm:$0xff]
        %v983 = vld [vmem:[%s594 + $0xb40] sm:$0xff]
        %v984 = vld [vmem:[%s594 + $0xb48] sm:$0xff]
        %v985 = vld [vmem:[%s594 + $0xb50] sm:$0xff]
        %v986 = vld [vmem:[%s594 + $0xb58] sm:$0xff]
        %v987 = vld [vmem:[%s594 + $0xb60] sm:$0xff]
        %v988 = vld [vmem:[%s594 + $0xb68] sm:$0xff]
        %v989 = vld [vmem:[%s594 + $0xb70] sm:$0xff]
        %v990 = vld [vmem:[%s594 + $0xb78] sm:$0xff]
        %v991 = vld [vmem:[%s594 + $0xb80] sm:$0xff]
        %v992 = vld [vmem:[%s594 + $0xb88] sm:$0xff]
        %v993 = vld [vmem:[%s594 + $0xb90] sm:$0xff]
        %v994 = vld [vmem:[%s594 + $0xb98] sm:$0xff]
        %v995 = vld [vmem:[%s594 + $0xba0] sm:$0xff]
        %v996 = vld [vmem:[%s594 + $0xba8] sm:$0xff]
        %v997 = vld [vmem:[%s594 + $0xbb0] sm:$0xff]
        %v998 = vld [vmem:[%s594 + $0xbb8] sm:$0xff]
        %v999 = vld [vmem:[%s594 + $0xbc0] sm:$0xff]
        %v1000 = vld [vmem:[%s594 + $0xbc8] sm:$0xff]
        %v1001 = vld [vmem:[%s594 + $0xbd0] sm:$0xff]
        %v1002 = vld [vmem:[%s594 + $0xbd8] sm:$0xff]
        %v1003 = vld [vmem:[%s594 + $0xbe0] sm:$0xff]
        %v1004 = vld [vmem:[%s594 + $0xbe8] sm:$0xff]
        %v1005 = vld [vmem:[%s594 + $0xbf0] sm:$0xff]
        %v1006 = vld [vmem:[%s594 + $0xbf8] sm:$0xff]
        %v1007 = vadd.f32 %v623, %v751
        %v1008 = vadd.f32 %v624, %v752
        %v1009 = vadd.f32 %v625, %v753
        %v1010 = vadd.f32 %v626, %v754
        %v1011 = vadd.f32 %v627, %v755
        %v1012 = vadd.f32 %v628, %v756
        %v1013 = vadd.f32 %v629, %v757
        %v1014 = vadd.f32 %v630, %v758
        %v1015 = vadd.f32 %v631, %v759
        %v1016 = vadd.f32 %v632, %v760
        %v1017 = vadd.f32 %v633, %v761
        %v1018 = vadd.f32 %v634, %v762
        %v1019 = vadd.f32 %v635, %v763
        %v1020 = vadd.f32 %v636, %v764
        %v1021 = vadd.f32 %v637, %v765
        %v1022 = vadd.f32 %v638, %v766
        %v1023 = vadd.f32 %v639, %v767
        %v1024 = vadd.f32 %v640, %v768
        %v1025 = vadd.f32 %v641, %v769
        %v1026 = vadd.f32 %v642, %v770
        %v1027 = vadd.f32 %v643, %v771
        %v1028 = vadd.f32 %v644, %v772
        %v1029 = vadd.f32 %v645, %v773
        %v1030 = vadd.f32 %v646, %v774
        %v1031 = vadd.f32 %v647, %v775
        %v1032 = vadd.f32 %v648, %v776
        %v1033 = vadd.f32 %v649, %v777
        %v1034 = vadd.f32 %v650, %v778
        %v1035 = vadd.f32 %v651, %v779
        %v1036 = vadd.f32 %v652, %v780
        %v1037 = vadd.f32 %v653, %v781
        %v1038 = vadd.f32 %v654, %v782
        %v1039 = vadd.f32 %v655, %v783
        %v1040 = vadd.f32 %v656, %v784
        %v1041 = vadd.f32 %v657, %v785
        %v1042 = vadd.f32 %v658, %v786
        %v1043 = vadd.f32 %v659, %v787
        %v1044 = vadd.f32 %v660, %v788
        %v1045 = vadd.f32 %v661, %v789
        %v1046 = vadd.f32 %v662, %v790
        %v1047 = vadd.f32 %v663, %v791
        %v1048 = vadd.f32 %v664, %v792
        %v1049 = vadd.f32 %v665, %v793
        %v1050 = vadd.f32 %v666, %v794
        %v1051 = vadd.f32 %v667, %v795
        %v1052 = vadd.f32 %v668, %v796
        %v1053 = vadd.f32 %v669, %v797
        %v1054 = vadd.f32 %v670, %v798
        %v1055 = vadd.f32 %v671, %v799
        %v1056 = vadd.f32 %v672, %v800
        %v1057 = vadd.f32 %v673, %v801
        %v1058 = vadd.f32 %v674, %v802
        %v1059 = vadd.f32 %v675, %v803
        %v1060 = vadd.f32 %v676, %v804
        %v1061 = vadd.f32 %v677, %v805
        %v1062 = vadd.f32 %v678, %v806
        %v1063 = vadd.f32 %v679, %v807
        %v1064 = vadd.f32 %v680, %v808
        %v1065 = vadd.f32 %v681, %v809
        %v1066 = vadd.f32 %v682, %v810
        %v1067 = vadd.f32 %v683, %v811
        %v1068 = vadd.f32 %v684, %v812
        %v1069 = vadd.f32 %v685, %v813
        %v1070 = vadd.f32 %v686, %v814
        %v1071 = vadd.f32 %v687, %v815
        %v1072 = vadd.f32 %v688, %v816
        %v1073 = vadd.f32 %v689, %v817
        %v1074 = vadd.f32 %v690, %v818
        %v1075 = vadd.f32 %v691, %v819
        %v1076 = vadd.f32 %v692, %v820
        %v1077 = vadd.f32 %v693, %v821
        %v1078 = vadd.f32 %v694, %v822
        %v1079 = vadd.f32 %v695, %v823
        %v1080 = vadd.f32 %v696, %v824
        %v1081 = vadd.f32 %v697, %v825
        %v1082 = vadd.f32 %v698, %v826
        %v1083 = vadd.f32 %v699, %v827
        %v1084 = vadd.f32 %v700, %v828
        %v1085 = vadd.f32 %v701, %v829
        %v1086 = vadd.f32 %v702, %v830
        %v1087 = vadd.f32 %v703, %v831
        %v1088 = vadd.f32 %v704, %v832
        %v1089 = vadd.f32 %v705, %v833
        %v1090 = vadd.f32 %v706, %v834
        %v1091 = vadd.f32 %v707, %v835
        %v1092 = vadd.f32 %v708, %v836
        %v1093 = vadd.f32 %v709, %v837
        %v1094 = vadd.f32 %v710, %v838
        %v1095 = vadd.f32 %v711, %v839
        %v1096 = vadd.f32 %v712, %v840
        %v1097 = vadd.f32 %v713, %v841
        %v1098 = vadd.f32 %v714, %v842
        %v1099 = vadd.f32 %v715, %v843
        %v1100 = vadd.f32 %v716, %v844
        %v1101 = vadd.f32 %v717, %v845
        %v1102 = vadd.f32 %v718, %v846
        %v1103 = vadd.f32 %v719, %v847
        %v1104 = vadd.f32 %v720, %v848
        %v1105 = vadd.f32 %v721, %v849
        %v1106 = vadd.f32 %v722, %v850
        %v1107 = vadd.f32 %v723, %v851
        %v1108 = vadd.f32 %v724, %v852
        %v1109 = vadd.f32 %v725, %v853
        %v1110 = vadd.f32 %v726, %v854
        %v1111 = vadd.f32 %v727, %v855
        %v1112 = vadd.f32 %v728, %v856
        %v1113 = vadd.f32 %v729, %v857
        %v1114 = vadd.f32 %v730, %v858
        %v1115 = vadd.f32 %v731, %v859
        %v1116 = vadd.f32 %v732, %v860
        %v1117 = vadd.f32 %v733, %v861
        %v1118 = vadd.f32 %v734, %v862
        %v1119 = vadd.f32 %v735, %v863
        %v1120 = vadd.f32 %v736, %v864
        %v1121 = vadd.f32 %v737, %v865
        %v1122 = vadd.f32 %v738, %v866
        %v1123 = vadd.f32 %v739, %v867
        %v1124 = vadd.f32 %v740, %v868
        %v1125 = vadd.f32 %v741, %v869
        %v1126 = vadd.f32 %v742, %v870
        %v1127 = vadd.f32 %v743, %v871
        %v1128 = vadd.f32 %v744, %v872
        %v1129 = vadd.f32 %v745, %v873
        %v1130 = vadd.f32 %v746, %v874
        %v1131 = vadd.f32 %v747, %v875
        %v1132 = vadd.f32 %v748, %v876
        %v1133 = vadd.f32 %v749, %v877
        %v1134 = vadd.f32 %v750, %v878
        %v1135 = vadd.f32 %v1007, %v879
        %v1136 = vadd.f32 %v1008, %v880
        %v1137 = vadd.f32 %v1009, %v881
        %v1138 = vadd.f32 %v1010, %v882
        %v1139 = vadd.f32 %v1011, %v883
        %v1140 = vadd.f32 %v1012, %v884
        %v1141 = vadd.f32 %v1013, %v885
        %v1142 = vadd.f32 %v1014, %v886
        %v1143 = vadd.f32 %v1015, %v887
        %v1144 = vadd.f32 %v1016, %v888
        %v1145 = vadd.f32 %v1017, %v889
        %v1146 = vadd.f32 %v1018, %v890
        %v1147 = vadd.f32 %v1019, %v891
        %v1148 = vadd.f32 %v1020, %v892
        %v1149 = vadd.f32 %v1021, %v893
        %v1150 = vadd.f32 %v1022, %v894
        %v1151 = vadd.f32 %v1023, %v895
        %v1152 = vadd.f32 %v1024, %v896
        %v1153 = vadd.f32 %v1025, %v897
        %v1154 = vadd.f32 %v1026, %v898
        %v1155 = vadd.f32 %v1027, %v899
        %v1156 = vadd.f32 %v1028, %v900
        %v1157 = vadd.f32 %v1029, %v901
        %v1158 = vadd.f32 %v1030, %v902
        %v1159 = vadd.f32 %v1031, %v903
        %v1160 = vadd.f32 %v1032, %v904
        %v1161 = vadd.f32 %v1033, %v905
        %v1162 = vadd.f32 %v1034, %v906
        %v1163 = vadd.f32 %v1035, %v907
        %v1164 = vadd.f32 %v1036, %v908
        %v1165 = vadd.f32 %v1037, %v909
        %v1166 = vadd.f32 %v1038, %v910
        %v1167 = vadd.f32 %v1039, %v911
        %v1168 = vadd.f32 %v1040, %v912
        %v1169 = vadd.f32 %v1041, %v913
        %v1170 = vadd.f32 %v1042, %v914
        %v1171 = vadd.f32 %v1043, %v915
        %v1172 = vadd.f32 %v1044, %v916
        %v1173 = vadd.f32 %v1045, %v917
        %v1174 = vadd.f32 %v1046, %v918
        %v1175 = vadd.f32 %v1047, %v919
        %v1176 = vadd.f32 %v1048, %v920
        %v1177 = vadd.f32 %v1049, %v921
        %v1178 = vadd.f32 %v1050, %v922
        %v1179 = vadd.f32 %v1051, %v923
        %v1180 = vadd.f32 %v1052, %v924
        %v1181 = vadd.f32 %v1053, %v925
        %v1182 = vadd.f32 %v1054, %v926
        %v1183 = vadd.f32 %v1055, %v927
        %v1184 = vadd.f32 %v1056, %v928
        %v1185 = vadd.f32 %v1057, %v929
        %v1186 = vadd.f32 %v1058, %v930
        %v1187 = vadd.f32 %v1059, %v931
        %v1188 = vadd.f32 %v1060, %v932
        %v1189 = vadd.f32 %v1061, %v933
        %v1190 = vadd.f32 %v1062, %v934
        %v1191 = vadd.f32 %v1063, %v935
        %v1192 = vadd.f32 %v1064, %v936
        %v1193 = vadd.f32 %v1065, %v937
        %v1194 = vadd.f32 %v1066, %v938
        %v1195 = vadd.f32 %v1067, %v939
        %v1196 = vadd.f32 %v1068, %v940
        %v1197 = vadd.f32 %v1069, %v941
        %v1198 = vadd.f32 %v1070, %v942
        %v1199 = vadd.f32 %v1071, %v943
        %v1200 = vadd.f32 %v1072, %v944
        %v1201 = vadd.f32 %v1073, %v945
        %v1202 = vadd.f32 %v1074, %v946
        %v1203 = vadd.f32 %v1075, %v947
        %v1204 = vadd.f32 %v1076, %v948
        %v1205 = vadd.f32 %v1077, %v949
        %v1206 = vadd.f32 %v1078, %v950
        %v1207 = vadd.f32 %v1079, %v951
        %v1208 = vadd.f32 %v1080, %v952
        %v1209 = vadd.f32 %v1081, %v953
        %v1210 = vadd.f32 %v1082, %v954
        %v1211 = vadd.f32 %v1083, %v955
        %v1212 = vadd.f32 %v1084, %v956
        %v1213 = vadd.f32 %v1085, %v957
        %v1214 = vadd.f32 %v1086, %v958
        %v1215 = vadd.f32 %v1087, %v959
        %v1216 = vadd.f32 %v1088, %v960
        %v1217 = vadd.f32 %v1089, %v961
        %v1218 = vadd.f32 %v1090, %v962
        %v1219 = vadd.f32 %v1091, %v963
        %v1220 = vadd.f32 %v1092, %v964
        %v1221 = vadd.f32 %v1093, %v965
        %v1222 = vadd.f32 %v1094, %v966
        %v1223 = vadd.f32 %v1095, %v967
        %v1224 = vadd.f32 %v1096, %v968
        %v1225 = vadd.f32 %v1097, %v969
        %v1226 = vadd.f32 %v1098, %v970
        %v1227 = vadd.f32 %v1099, %v971
        %v1228 = vadd.f32 %v1100, %v972
        %v1229 = vadd.f32 %v1101, %v973
        %v1230 = vadd.f32 %v1102, %v974
        %v1231 = vadd.f32 %v1103, %v975
        %v1232 = vadd.f32 %v1104, %v976
        %v1233 = vadd.f32 %v1105, %v977
        %v1234 = vadd.f32 %v1106, %v978
        %v1235 = vadd.f32 %v1107, %v979
        %v1236 = vadd.f32 %v1108, %v980
        %v1237 = vadd.f32 %v1109, %v981
        %v1238 = vadd.f32 %v1110, %v982
        %v1239 = vadd.f32 %v1111, %v983
        %v1240 = vadd.f32 %v1112, %v984
        %v1241 = vadd.f32 %v1113, %v985
        %v1242 = vadd.f32 %v1114, %v986
        %v1243 = vadd.f32 %v1115, %v987
        %v1244 = vadd.f32 %v1116, %v988
        %v1245 = vadd.f32 %v1117, %v989
        %v1246 = vadd.f32 %v1118, %v990
        %v1247 = vadd.f32 %v1119, %v991
        %v1248 = vadd.f32 %v1120, %v992
        %v1249 = vadd.f32 %v1121, %v993
        %v1250 = vadd.f32 %v1122, %v994
        %v1251 = vadd.f32 %v1123, %v995
        %v1252 = vadd.f32 %v1124, %v996
        %v1253 = vadd.f32 %v1125, %v997
        %v1254 = vadd.f32 %v1126, %v998
        %v1255 = vadd.f32 %v1127, %v999
        %v1256 = vadd.f32 %v1128, %v1000
        %v1257 = vadd.f32 %v1129, %v1001
        %v1258 = vadd.f32 %v1130, %v1002
        %v1259 = vadd.f32 %v1131, %v1003
        %v1260 = vadd.f32 %v1132, %v1004
        %v1261 = vadd.f32 %v1133, %v1005
        %v1262 = vadd.f32 %v1134, %v1006
        %v1263 = vld [vmem:[%s1] sm:$0xff]
        %v1264 = vld [vmem:[%s1 + $0x8] sm:$0xff]
        %v1265 = vld [vmem:[%s1 + $0x10] sm:$0xff]
        %v1266 = vld [vmem:[%s1 + $0x18] sm:$0xff]
        %v1267 = vld [vmem:[%s2] sm:$0x1]
        %v1269 = vlaneseq
        %v1270 = vshrl.u32 %v1269, 7
        %v1271 = vsub.s32 0, %v1270
        %v1272 = vrot.slane %v1267, %v1271
        %vm1274 = vcmask 261120
        %v1276 = vsel %vm1274, %v1135, 0
        %v1279 = vsel %vm1274, %v1136, 0
        %v1282 = vsel %vm1274, %v1137, 0
        %v1285 = vsel %vm1274, %v1138, 0
        %v1288 = vsel %vm1274, %v1139, 0
        %v1291 = vsel %vm1274, %v1140, 0
        %v1294 = vsel %vm1274, %v1141, 0
        %v1297 = vsel %vm1274, %v1142, 0
        %v1300 = vsel %vm1274, %v1143, 0
        %v1303 = vsel %vm1274, %v1144, 0
        %v1306 = vsel %vm1274, %v1145, 0
        %v1309 = vsel %vm1274, %v1146, 0
        %v1312 = vsel %vm1274, %v1147, 0
        %v1315 = vsel %vm1274, %v1148, 0
        %v1318 = vsel %vm1274, %v1149, 0
        %v1321 = vsel %vm1274, %v1150, 0
        %v1324 = vsel %vm1274, %v1151, 0
        %v1327 = vsel %vm1274, %v1152, 0
        %v1330 = vsel %vm1274, %v1153, 0
        %v1333 = vsel %vm1274, %v1154, 0
        %v1336 = vsel %vm1274, %v1155, 0
        %v1339 = vsel %vm1274, %v1156, 0
        %v1342 = vsel %vm1274, %v1157, 0
        %v1345 = vsel %vm1274, %v1158, 0
        %v1348 = vsel %vm1274, %v1159, 0
        %v1351 = vsel %vm1274, %v1160, 0
        %v1354 = vsel %vm1274, %v1161, 0
        %v1357 = vsel %vm1274, %v1162, 0
        %v1360 = vsel %vm1274, %v1163, 0
        %v1363 = vsel %vm1274, %v1164, 0
        %v1366 = vsel %vm1274, %v1165, 0
        %v1369 = vsel %vm1274, %v1166, 0
        %v1372 = vsel %vm1274, %v1167, 0
        %v1375 = vsel %vm1274, %v1168, 0
        %v1378 = vsel %vm1274, %v1169, 0
        %v1381 = vsel %vm1274, %v1170, 0
        %v1384 = vsel %vm1274, %v1171, 0
        %v1387 = vsel %vm1274, %v1172, 0
        %v1390 = vsel %vm1274, %v1173, 0
        %v1393 = vsel %vm1274, %v1174, 0
        %v1396 = vsel %vm1274, %v1175, 0
        %v1399 = vsel %vm1274, %v1176, 0
        %v1402 = vsel %vm1274, %v1177, 0
        %v1405 = vsel %vm1274, %v1178, 0
        %v1408 = vsel %vm1274, %v1179, 0
        %v1411 = vsel %vm1274, %v1180, 0
        %v1414 = vsel %vm1274, %v1181, 0
        %v1417 = vsel %vm1274, %v1182, 0
        %v1420 = vsel %vm1274, %v1183, 0
        %v1423 = vsel %vm1274, %v1184, 0
        %v1426 = vsel %vm1274, %v1185, 0
        %v1429 = vsel %vm1274, %v1186, 0
        %v1432 = vsel %vm1274, %v1187, 0
        %v1435 = vsel %vm1274, %v1188, 0
        %v1438 = vsel %vm1274, %v1189, 0
        %v1441 = vsel %vm1274, %v1190, 0
        %v1444 = vsel %vm1274, %v1191, 0
        %v1447 = vsel %vm1274, %v1192, 0
        %v1450 = vsel %vm1274, %v1193, 0
        %v1453 = vsel %vm1274, %v1194, 0
        %v1456 = vsel %vm1274, %v1195, 0
        %v1459 = vsel %vm1274, %v1196, 0
        %v1462 = vsel %vm1274, %v1197, 0
        %v1465 = vsel %vm1274, %v1198, 0
        %v1468 = vsel %vm1274, %v1199, 0
        %v1471 = vsel %vm1274, %v1200, 0
        %v1474 = vsel %vm1274, %v1201, 0
        %v1477 = vsel %vm1274, %v1202, 0
        %v1480 = vsel %vm1274, %v1203, 0
        %v1483 = vsel %vm1274, %v1204, 0
        %v1486 = vsel %vm1274, %v1205, 0
        %v1489 = vsel %vm1274, %v1206, 0
        %v1492 = vsel %vm1274, %v1207, 0
        %v1495 = vsel %vm1274, %v1208, 0
        %v1498 = vsel %vm1274, %v1209, 0
        %v1501 = vsel %vm1274, %v1210, 0
        %v1504 = vsel %vm1274, %v1211, 0
        %v1507 = vsel %vm1274, %v1212, 0
        %v1510 = vsel %vm1274, %v1213, 0
        %v1513 = vsel %vm1274, %v1214, 0
        %v1516 = vsel %vm1274, %v1215, 0
        %v1519 = vsel %vm1274, %v1216, 0
        %v1522 = vsel %vm1274, %v1217, 0
        %v1525 = vsel %vm1274, %v1218, 0
        %v1528 = vsel %vm1274, %v1219, 0
        %v1531 = vsel %vm1274, %v1220, 0
        %v1534 = vsel %vm1274, %v1221, 0
        %v1537 = vsel %vm1274, %v1222, 0
        %v1540 = vsel %vm1274, %v1223, 0
        %v1543 = vsel %vm1274, %v1224, 0
        %v1546 = vsel %vm1274, %v1225, 0
        %v1549 = vsel %vm1274, %v1226, 0
        %v1552 = vsel %vm1274, %v1227, 0
        %v1555 = vsel %vm1274, %v1228, 0
        %v1558 = vsel %vm1274, %v1229, 0
        %v1561 = vsel %vm1274, %v1230, 0
        %v1564 = vsel %vm1274, %v1231, 0
        %v1567 = vsel %vm1274, %v1232, 0
        %v1570 = vsel %vm1274, %v1233, 0
        %v1573 = vsel %vm1274, %v1234, 0
        %v1576 = vsel %vm1274, %v1235, 0
        %v1579 = vsel %vm1274, %v1236, 0
        %v1582 = vsel %vm1274, %v1237, 0
        %v1585 = vsel %vm1274, %v1238, 0
        %v1588 = vsel %vm1274, %v1239, 0
        %v1591 = vsel %vm1274, %v1240, 0
        %v1594 = vsel %vm1274, %v1241, 0
        %v1597 = vsel %vm1274, %v1242, 0
        %v1600 = vsel %vm1274, %v1243, 0
        %v1603 = vsel %vm1274, %v1244, 0
        %v1606 = vsel %vm1274, %v1245, 0
        %v1609 = vsel %vm1274, %v1246, 0
        %v1612 = vsel %vm1274, %v1247, 0
        %v1615 = vsel %vm1274, %v1248, 0
        %v1618 = vsel %vm1274, %v1249, 0
        %v1621 = vsel %vm1274, %v1250, 0
        %v1624 = vsel %vm1274, %v1251, 0
        %v1627 = vsel %vm1274, %v1252, 0
        %v1630 = vsel %vm1274, %v1253, 0
        %v1633 = vsel %vm1274, %v1254, 0
        %v1636 = vsel %vm1274, %v1255, 0
        %v1639 = vsel %vm1274, %v1256, 0
        %v1642 = vsel %vm1274, %v1257, 0
        %v1645 = vsel %vm1274, %v1258, 0
        %v1648 = vsel %vm1274, %v1259, 0
        %v1651 = vsel %vm1274, %v1260, 0
        %v1654 = vsel %vm1274, %v1261, 0
        %v1657 = vsel %vm1274, %v1262, 0
        %1659 = vmatprep.subr.mxu0 0.0
        %1660 = vmatpush1.msra.mxu0 0.0
        %1661 = vmatprep.subr.mxu0 0.0
        %1662 = vmatpush1.msra.mxu0 0.0
        %1663 = vmatprep.subr.mxu0 0.0
        %1664 = vmatpush1.msra.mxu0 0.0
        %1665 = vmatprep.subr.mxu0 0.0
        %1666 = vmatpush1.msra.mxu0 0.0
        %1667 = vmatprep.subr.mxu0 0.0
        %1668 = vmatpush1.msra.mxu0 0.0
        %1669 = vmatprep.subr.mxu0 0.0
        %1670 = vmatpush1.msra.mxu0 0.0
        %1671 = vmatprep.subr.mxu0 0.0
        %1672 = vmatpush1.msra.mxu0 0.0
        %1673 = vmatprep.subr.mxu0 0.0
        %1674 = vmatpush1.msra.mxu0 0.0
        %1675 = vmatprep.subr.mxu0 0.0
        %1676 = vmatpush1.msra.mxu0 0.0
        %1677 = vmatprep.subr.mxu0 0.0
        %1678 = vmatpush1.msra.mxu0 0.0
        %1679 = vmatprep.subr.mxu0 0.0
        %1680 = vmatpush1.msra.mxu0 0.0
        %1681 = vmatprep.subr.mxu0 0.0
        %1682 = vmatpush1.msra.mxu0 0.0
        %1683 = vmatprep.subr.mxu0 0.0
        %1684 = vmatpush1.msra.mxu0 %v1266
        %1685 = vmatprep.subr.mxu0 0.0
        %1686 = vmatpush1.msra.mxu0 %v1265
        %1687 = vmatprep.subr.mxu0 0.0
        %1688 = vmatpush1.msra.mxu0 %v1264
        %1689 = vmatprep.subr.mxu0 0.0
        %1690 = vmatpush1.msra.mxu0 %v1263
        %1691 = vmatprep.subr.mxu0 0.0
        %1692 = vmatpush2.msra.mxu0 0.0
        %1693 = vmatprep.subr.mxu0 0.0
        %1694 = vmatpush2.msra.mxu0 0.0
        %1695 = vmatprep.subr.mxu0 0.0
        %1696 = vmatpush2.msra.mxu0 0.0
        %1697 = vmatprep.subr.mxu0 0.0
        %1698 = vmatpush2.msra.mxu0 0.0
        %1699 = vmatprep.subr.mxu0 0.0
        %1700 = vmatpush2.msra.mxu0 0.0
        %1701 = vmatprep.subr.mxu0 0.0
        %1702 = vmatpush2.msra.mxu0 0.0
        %1703 = vmatprep.subr.mxu0 0.0
        %1704 = vmatpush2.msra.mxu0 0.0
        %1705 = vmatprep.subr.mxu0 0.0
        %1706 = vmatpush2.msra.mxu0 0.0
        %1707 = vmatprep.subr.mxu0 0.0
        %1708 = vmatpush2.msra.mxu0 0.0
        %1709 = vmatprep.subr.mxu0 0.0
        %1710 = vmatpush2.msra.mxu0 0.0
        %1711 = vmatprep.subr.mxu0 0.0
        %1712 = vmatpush2.msra.mxu0 0.0
        %1713 = vmatprep.subr.mxu0 0.0
        %1714 = vmatpush2.msra.mxu0 0.0
        %1715 = vmatprep.subr.mxu0 0.0
        %1716 = vmatpush2.msra.mxu0 0.0
        %1717 = vmatprep.subr.mxu0 0.0
        %1718 = vmatpush2.msra.mxu0 0.0
        %1719 = vmatprep.subr.mxu0 0.0
        %1720 = vmatpush2.msra.mxu0 0.0
        %1721 = vmatprep.subr.mxu0 0.0
        %1722 = vmatpush2.msra.mxu0 0.0
        %1723 = vmatprep.mubr.f32.mxu0 0.0
        %1724 = vmatmul.mubr.f32.gmra.mxu0 %v1276
        %v1725 = vpop.f32.mrf.mxu0
        %v1726 = vadd.f32 %v1272, %v1725
        %v1727 = vpop.f32.mrf.mxu0
        %1728 = vmatprep.mubr.f32.mxu0 0.0
        %1729 = vmatmul.mubr.f32.gmra.mxu0 %v1279
        %v1730 = vpop.f32.mrf.mxu0
        %v1731 = vadd.f32 %v1272, %v1730
        %v1732 = vpop.f32.mrf.mxu0
        %1733 = vmatprep.mubr.f32.mxu0 0.0
        %1734 = vmatmul.mubr.f32.gmra.mxu0 %v1282
        %v1735 = vpop.f32.mrf.mxu0
        %v1736 = vadd.f32 %v1272, %v1735
        %v1737 = vpop.f32.mrf.mxu0
        %1738 = vmatprep.mubr.f32.mxu0 0.0
        %1739 = vmatmul.mubr.f32.gmra.mxu0 %v1285
        %v1740 = vpop.f32.mrf.mxu0
        %v1741 = vadd.f32 %v1272, %v1740
        %v1742 = vpop.f32.mrf.mxu0
        %1743 = vmatprep.mubr.f32.mxu0 0.0
        %1744 = vmatmul.mubr.f32.gmra.mxu0 %v1288
        %v1745 = vpop.f32.mrf.mxu0
        %v1746 = vadd.f32 %v1272, %v1745
        %v1747 = vpop.f32.mrf.mxu0
        %1748 = vmatprep.mubr.f32.mxu0 0.0
        %1749 = vmatmul.mubr.f32.gmra.mxu0 %v1291
        %v1750 = vpop.f32.mrf.mxu0
        %v1751 = vadd.f32 %v1272, %v1750
        %v1752 = vpop.f32.mrf.mxu0
        %1753 = vmatprep.mubr.f32.mxu0 0.0
        %1754 = vmatmul.mubr.f32.gmra.mxu0 %v1294
        %v1755 = vpop.f32.mrf.mxu0
        %v1756 = vadd.f32 %v1272, %v1755
        %v1757 = vpop.f32.mrf.mxu0
        %1758 = vmatprep.mubr.f32.mxu0 0.0
        %1759 = vmatmul.mubr.f32.gmra.mxu0 %v1297
        %v1760 = vpop.f32.mrf.mxu0
        %v1761 = vadd.f32 %v1272, %v1760
        %v1762 = vpop.f32.mrf.mxu0
        %1763 = vmatprep.mubr.f32.mxu0 0.0
        %1764 = vmatmul.mubr.f32.gmra.mxu0 %v1300
        %v1765 = vpop.f32.mrf.mxu0
        %v1766 = vadd.f32 %v1272, %v1765
        %v1767 = vpop.f32.mrf.mxu0
        %1768 = vmatprep.mubr.f32.mxu0 0.0
        %1769 = vmatmul.mubr.f32.gmra.mxu0 %v1303
        %v1770 = vpop.f32.mrf.mxu0
        %v1771 = vadd.f32 %v1272, %v1770
        %v1772 = vpop.f32.mrf.mxu0
        %1773 = vmatprep.mubr.f32.mxu0 0.0
        %1774 = vmatmul.mubr.f32.gmra.mxu0 %v1306
        %v1775 = vpop.f32.mrf.mxu0
        %v1776 = vadd.f32 %v1272, %v1775
        %v1777 = vpop.f32.mrf.mxu0
        %1778 = vmatprep.mubr.f32.mxu0 0.0
        %1779 = vmatmul.mubr.f32.gmra.mxu0 %v1309
        %v1780 = vpop.f32.mrf.mxu0
        %v1781 = vadd.f32 %v1272, %v1780
        %v1782 = vpop.f32.mrf.mxu0
        %1783 = vmatprep.mubr.f32.mxu0 0.0
        %1784 = vmatmul.mubr.f32.gmra.mxu0 %v1312
        %v1785 = vpop.f32.mrf.mxu0
        %v1786 = vadd.f32 %v1272, %v1785
        %v1787 = vpop.f32.mrf.mxu0
        %1788 = vmatprep.mubr.f32.mxu0 0.0
        %1789 = vmatmul.mubr.f32.gmra.mxu0 %v1315
        %v1790 = vpop.f32.mrf.mxu0
        %v1791 = vadd.f32 %v1272, %v1790
        %v1792 = vpop.f32.mrf.mxu0
        %1793 = vmatprep.mubr.f32.mxu0 0.0
        %1794 = vmatmul.mubr.f32.gmra.mxu0 %v1318
        %v1795 = vpop.f32.mrf.mxu0
        %v1796 = vadd.f32 %v1272, %v1795
        %v1797 = vpop.f32.mrf.mxu0
        %1798 = vmatprep.mubr.f32.mxu0 0.0
        %1799 = vmatmul.mubr.f32.gmra.mxu0 %v1321
        %v1800 = vpop.f32.mrf.mxu0
        %v1801 = vadd.f32 %v1272, %v1800
        %v1802 = vpop.f32.mrf.mxu0
        %1803 = vmatprep.mubr.f32.mxu0 0.0
        %1804 = vmatmul.mubr.f32.gmra.mxu0 %v1324
        %v1805 = vpop.f32.mrf.mxu0
        %v1806 = vadd.f32 %v1272, %v1805
        %v1807 = vpop.f32.mrf.mxu0
        %1808 = vmatprep.mubr.f32.mxu0 0.0
        %1809 = vmatmul.mubr.f32.gmra.mxu0 %v1327
        %v1810 = vpop.f32.mrf.mxu0
        %v1811 = vadd.f32 %v1272, %v1810
        %v1812 = vpop.f32.mrf.mxu0
        %1813 = vmatprep.mubr.f32.mxu0 0.0
        %1814 = vmatmul.mubr.f32.gmra.mxu0 %v1330
        %v1815 = vpop.f32.mrf.mxu0
        %v1816 = vadd.f32 %v1272, %v1815
        %v1817 = vpop.f32.mrf.mxu0
        %1818 = vmatprep.mubr.f32.mxu0 0.0
        %1819 = vmatmul.mubr.f32.gmra.mxu0 %v1333
        %v1820 = vpop.f32.mrf.mxu0
        %v1821 = vadd.f32 %v1272, %v1820
        %v1822 = vpop.f32.mrf.mxu0
        %1823 = vmatprep.mubr.f32.mxu0 0.0
        %1824 = vmatmul.mubr.f32.gmra.mxu0 %v1336
        %v1825 = vpop.f32.mrf.mxu0
        %v1826 = vadd.f32 %v1272, %v1825
        %v1827 = vpop.f32.mrf.mxu0
        %1828 = vmatprep.mubr.f32.mxu0 0.0
        %1829 = vmatmul.mubr.f32.gmra.mxu0 %v1339
        %v1830 = vpop.f32.mrf.mxu0
        %v1831 = vadd.f32 %v1272, %v1830
        %v1832 = vpop.f32.mrf.mxu0
        %1833 = vmatprep.mubr.f32.mxu0 0.0
        %1834 = vmatmul.mubr.f32.gmra.mxu0 %v1342
        %v1835 = vpop.f32.mrf.mxu0
        %v1836 = vadd.f32 %v1272, %v1835
        %v1837 = vpop.f32.mrf.mxu0
        %1838 = vmatprep.mubr.f32.mxu0 0.0
        %1839 = vmatmul.mubr.f32.gmra.mxu0 %v1345
        %v1840 = vpop.f32.mrf.mxu0
        %v1841 = vadd.f32 %v1272, %v1840
        %v1842 = vpop.f32.mrf.mxu0
        %1843 = vmatprep.mubr.f32.mxu0 0.0
        %1844 = vmatmul.mubr.f32.gmra.mxu0 %v1348
        %v1845 = vpop.f32.mrf.mxu0
        %v1846 = vadd.f32 %v1272, %v1845
        %v1847 = vpop.f32.mrf.mxu0
        %1848 = vmatprep.mubr.f32.mxu0 0.0
        %1849 = vmatmul.mubr.f32.gmra.mxu0 %v1351
        %v1850 = vpop.f32.mrf.mxu0
        %v1851 = vadd.f32 %v1272, %v1850
        %v1852 = vpop.f32.mrf.mxu0
        %1853 = vmatprep.mubr.f32.mxu0 0.0
        %1854 = vmatmul.mubr.f32.gmra.mxu0 %v1354
        %v1855 = vpop.f32.mrf.mxu0
        %v1856 = vadd.f32 %v1272, %v1855
        %v1857 = vpop.f32.mrf.mxu0
        %1858 = vmatprep.mubr.f32.mxu0 0.0
        %1859 = vmatmul.mubr.f32.gmra.mxu0 %v1357
        %v1860 = vpop.f32.mrf.mxu0
        %v1861 = vadd.f32 %v1272, %v1860
        %v1862 = vpop.f32.mrf.mxu0
        %1863 = vmatprep.mubr.f32.mxu0 0.0
        %1864 = vmatmul.mubr.f32.gmra.mxu0 %v1360
        %v1865 = vpop.f32.mrf.mxu0
        %v1866 = vadd.f32 %v1272, %v1865
        %v1867 = vpop.f32.mrf.mxu0
        %1868 = vmatprep.mubr.f32.mxu0 0.0
        %1869 = vmatmul.mubr.f32.gmra.mxu0 %v1363
        %v1870 = vpop.f32.mrf.mxu0
        %v1871 = vadd.f32 %v1272, %v1870
        %v1872 = vpop.f32.mrf.mxu0
        %1873 = vmatprep.mubr.f32.mxu0 0.0
        %1874 = vmatmul.mubr.f32.gmra.mxu0 %v1366
        %v1875 = vpop.f32.mrf.mxu0
        %v1876 = vadd.f32 %v1272, %v1875
        %v1877 = vpop.f32.mrf.mxu0
        %1878 = vmatprep.mubr.f32.mxu0 0.0
        %1879 = vmatmul.mubr.f32.gmra.mxu0 %v1369
        %v1880 = vpop.f32.mrf.mxu0
        %v1881 = vadd.f32 %v1272, %v1880
        %v1882 = vpop.f32.mrf.mxu0
        %1883 = vmatprep.mubr.f32.mxu0 0.0
        %1884 = vmatmul.mubr.f32.gmra.mxu0 %v1372
        %v1885 = vpop.f32.mrf.mxu0
        %v1886 = vadd.f32 %v1272, %v1885
        %v1887 = vpop.f32.mrf.mxu0
        %1888 = vmatprep.mubr.f32.mxu0 0.0
        %1889 = vmatmul.mubr.f32.gmra.mxu0 %v1375
        %v1890 = vpop.f32.mrf.mxu0
        %v1891 = vadd.f32 %v1272, %v1890
        %v1892 = vpop.f32.mrf.mxu0
        %1893 = vmatprep.mubr.f32.mxu0 0.0
        %1894 = vmatmul.mubr.f32.gmra.mxu0 %v1378
        %v1895 = vpop.f32.mrf.mxu0
        %v1896 = vadd.f32 %v1272, %v1895
        %v1897 = vpop.f32.mrf.mxu0
        %1898 = vmatprep.mubr.f32.mxu0 0.0
        %1899 = vmatmul.mubr.f32.gmra.mxu0 %v1381
        %v1900 = vpop.f32.mrf.mxu0
        %v1901 = vadd.f32 %v1272, %v1900
        %v1902 = vpop.f32.mrf.mxu0
        %1903 = vmatprep.mubr.f32.mxu0 0.0
        %1904 = vmatmul.mubr.f32.gmra.mxu0 %v1384
        %v1905 = vpop.f32.mrf.mxu0
        %v1906 = vadd.f32 %v1272, %v1905
        %v1907 = vpop.f32.mrf.mxu0
        %1908 = vmatprep.mubr.f32.mxu0 0.0
        %1909 = vmatmul.mubr.f32.gmra.mxu0 %v1387
        %v1910 = vpop.f32.mrf.mxu0
        %v1911 = vadd.f32 %v1272, %v1910
        %v1912 = vpop.f32.mrf.mxu0
        %1913 = vmatprep.mubr.f32.mxu0 0.0
        %1914 = vmatmul.mubr.f32.gmra.mxu0 %v1390
        %v1915 = vpop.f32.mrf.mxu0
        %v1916 = vadd.f32 %v1272, %v1915
        %v1917 = vpop.f32.mrf.mxu0
        %1918 = vmatprep.mubr.f32.mxu0 0.0
        %1919 = vmatmul.mubr.f32.gmra.mxu0 %v1393
        %v1920 = vpop.f32.mrf.mxu0
        %v1921 = vadd.f32 %v1272, %v1920
        %v1922 = vpop.f32.mrf.mxu0
        %1923 = vmatprep.mubr.f32.mxu0 0.0
        %1924 = vmatmul.mubr.f32.gmra.mxu0 %v1396
        %v1925 = vpop.f32.mrf.mxu0
        %v1926 = vadd.f32 %v1272, %v1925
        %v1927 = vpop.f32.mrf.mxu0
        %1928 = vmatprep.mubr.f32.mxu0 0.0
        %1929 = vmatmul.mubr.f32.gmra.mxu0 %v1399
        %v1930 = vpop.f32.mrf.mxu0
        %v1931 = vadd.f32 %v1272, %v1930
        %v1932 = vpop.f32.mrf.mxu0
        %1933 = vmatprep.mubr.f32.mxu0 0.0
        %1934 = vmatmul.mubr.f32.gmra.mxu0 %v1402
        %v1935 = vpop.f32.mrf.mxu0
        %v1936 = vadd.f32 %v1272, %v1935
        %v1937 = vpop.f32.mrf.mxu0
        %1938 = vmatprep.mubr.f32.mxu0 0.0
        %1939 = vmatmul.mubr.f32.gmra.mxu0 %v1405
        %v1940 = vpop.f32.mrf.mxu0
        %v1941 = vadd.f32 %v1272, %v1940
        %v1942 = vpop.f32.mrf.mxu0
        %1943 = vmatprep.mubr.f32.mxu0 0.0
        %1944 = vmatmul.mubr.f32.gmra.mxu0 %v1408
        %v1945 = vpop.f32.mrf.mxu0
        %v1946 = vadd.f32 %v1272, %v1945
        %v1947 = vpop.f32.mrf.mxu0
        %1948 = vmatprep.mubr.f32.mxu0 0.0
        %1949 = vmatmul.mubr.f32.gmra.mxu0 %v1411
        %v1950 = vpop.f32.mrf.mxu0
        %v1951 = vadd.f32 %v1272, %v1950
        %v1952 = vpop.f32.mrf.mxu0
        %1953 = vmatprep.mubr.f32.mxu0 0.0
        %1954 = vmatmul.mubr.f32.gmra.mxu0 %v1414
        %v1955 = vpop.f32.mrf.mxu0
        %v1956 = vadd.f32 %v1272, %v1955
        %v1957 = vpop.f32.mrf.mxu0
        %1958 = vmatprep.mubr.f32.mxu0 0.0
        %1959 = vmatmul.mubr.f32.gmra.mxu0 %v1417
        %v1960 = vpop.f32.mrf.mxu0
        %v1961 = vadd.f32 %v1272, %v1960
        %v1962 = vpop.f32.mrf.mxu0
        %1963 = vmatprep.mubr.f32.mxu0 0.0
        %1964 = vmatmul.mubr.f32.gmra.mxu0 %v1420
        %v1965 = vpop.f32.mrf.mxu0
        %v1966 = vadd.f32 %v1272, %v1965
        %v1967 = vpop.f32.mrf.mxu0
        %1968 = vmatprep.mubr.f32.mxu0 0.0
        %1969 = vmatmul.mubr.f32.gmra.mxu0 %v1423
        %v1970 = vpop.f32.mrf.mxu0
        %v1971 = vadd.f32 %v1272, %v1970
        %v1972 = vpop.f32.mrf.mxu0
        %1973 = vmatprep.mubr.f32.mxu0 0.0
        %1974 = vmatmul.mubr.f32.gmra.mxu0 %v1426
        %v1975 = vpop.f32.mrf.mxu0
        %v1976 = vadd.f32 %v1272, %v1975
        %v1977 = vpop.f32.mrf.mxu0
        %1978 = vmatprep.mubr.f32.mxu0 0.0
        %1979 = vmatmul.mubr.f32.gmra.mxu0 %v1429
        %v1980 = vpop.f32.mrf.mxu0
        %v1981 = vadd.f32 %v1272, %v1980
        %v1982 = vpop.f32.mrf.mxu0
        %1983 = vmatprep.mubr.f32.mxu0 0.0
        %1984 = vmatmul.mubr.f32.gmra.mxu0 %v1432
        %v1985 = vpop.f32.mrf.mxu0
        %v1986 = vadd.f32 %v1272, %v1985
        %v1987 = vpop.f32.mrf.mxu0
        %1988 = vmatprep.mubr.f32.mxu0 0.0
        %1989 = vmatmul.mubr.f32.gmra.mxu0 %v1435
        %v1990 = vpop.f32.mrf.mxu0
        %v1991 = vadd.f32 %v1272, %v1990
        %v1992 = vpop.f32.mrf.mxu0
        %1993 = vmatprep.mubr.f32.mxu0 0.0
        %1994 = vmatmul.mubr.f32.gmra.mxu0 %v1438
        %v1995 = vpop.f32.mrf.mxu0
        %v1996 = vadd.f32 %v1272, %v1995
        %v1997 = vpop.f32.mrf.mxu0
        %1998 = vmatprep.mubr.f32.mxu0 0.0
        %1999 = vmatmul.mubr.f32.gmra.mxu0 %v1441
        %v2000 = vpop.f32.mrf.mxu0
        %v2001 = vadd.f32 %v1272, %v2000
        %v2002 = vpop.f32.mrf.mxu0
        %2003 = vmatprep.mubr.f32.mxu0 0.0
        %2004 = vmatmul.mubr.f32.gmra.mxu0 %v1444
        %v2005 = vpop.f32.mrf.mxu0
        %v2006 = vadd.f32 %v1272, %v2005
        %v2007 = vpop.f32.mrf.mxu0
        %2008 = vmatprep.mubr.f32.mxu0 0.0
        %2009 = vmatmul.mubr.f32.gmra.mxu0 %v1447
        %v2010 = vpop.f32.mrf.mxu0
        %v2011 = vadd.f32 %v1272, %v2010
        %v2012 = vpop.f32.mrf.mxu0
        %2013 = vmatprep.mubr.f32.mxu0 0.0
        %2014 = vmatmul.mubr.f32.gmra.mxu0 %v1450
        %v2015 = vpop.f32.mrf.mxu0
        %v2016 = vadd.f32 %v1272, %v2015
        %v2017 = vpop.f32.mrf.mxu0
        %2018 = vmatprep.mubr.f32.mxu0 0.0
        %2019 = vmatmul.mubr.f32.gmra.mxu0 %v1453
        %v2020 = vpop.f32.mrf.mxu0
        %v2021 = vadd.f32 %v1272, %v2020
        %v2022 = vpop.f32.mrf.mxu0
        %2023 = vmatprep.mubr.f32.mxu0 0.0
        %2024 = vmatmul.mubr.f32.gmra.mxu0 %v1456
        %v2025 = vpop.f32.mrf.mxu0
        %v2026 = vadd.f32 %v1272, %v2025
        %v2027 = vpop.f32.mrf.mxu0
        %2028 = vmatprep.mubr.f32.mxu0 0.0
        %2029 = vmatmul.mubr.f32.gmra.mxu0 %v1459
        %v2030 = vpop.f32.mrf.mxu0
        %v2031 = vadd.f32 %v1272, %v2030
        %v2032 = vpop.f32.mrf.mxu0
        %2033 = vmatprep.mubr.f32.mxu0 0.0
        %2034 = vmatmul.mubr.f32.gmra.mxu0 %v1462
        %v2035 = vpop.f32.mrf.mxu0
        %v2036 = vadd.f32 %v1272, %v2035
        %v2037 = vpop.f32.mrf.mxu0
        %2038 = vmatprep.mubr.f32.mxu0 0.0
        %2039 = vmatmul.mubr.f32.gmra.mxu0 %v1465
        %v2040 = vpop.f32.mrf.mxu0
        %v2041 = vadd.f32 %v1272, %v2040
        %v2042 = vpop.f32.mrf.mxu0
        %2043 = vmatprep.mubr.f32.mxu0 0.0
        %2044 = vmatmul.mubr.f32.gmra.mxu0 %v1468
        %v2045 = vpop.f32.mrf.mxu0
        %v2046 = vadd.f32 %v1272, %v2045
        %v2047 = vpop.f32.mrf.mxu0
        %2048 = vmatprep.mubr.f32.mxu0 0.0
        %2049 = vmatmul.mubr.f32.gmra.mxu0 %v1471
        %v2050 = vpop.f32.mrf.mxu0
        %v2051 = vadd.f32 %v1272, %v2050
        %v2052 = vpop.f32.mrf.mxu0
        %2053 = vmatprep.mubr.f32.mxu0 0.0
        %2054 = vmatmul.mubr.f32.gmra.mxu0 %v1474
        %v2055 = vpop.f32.mrf.mxu0
        %v2056 = vadd.f32 %v1272, %v2055
        %v2057 = vpop.f32.mrf.mxu0
        %2058 = vmatprep.mubr.f32.mxu0 0.0
        %2059 = vmatmul.mubr.f32.gmra.mxu0 %v1477
        %v2060 = vpop.f32.mrf.mxu0
        %v2061 = vadd.f32 %v1272, %v2060
        %v2062 = vpop.f32.mrf.mxu0
        %2063 = vmatprep.mubr.f32.mxu0 0.0
        %2064 = vmatmul.mubr.f32.gmra.mxu0 %v1480
        %v2065 = vpop.f32.mrf.mxu0
        %v2066 = vadd.f32 %v1272, %v2065
        %v2067 = vpop.f32.mrf.mxu0
        %2068 = vmatprep.mubr.f32.mxu0 0.0
        %2069 = vmatmul.mubr.f32.gmra.mxu0 %v1483
        %v2070 = vpop.f32.mrf.mxu0
        %v2071 = vadd.f32 %v1272, %v2070
        %v2072 = vpop.f32.mrf.mxu0
        %2073 = vmatprep.mubr.f32.mxu0 0.0
        %2074 = vmatmul.mubr.f32.gmra.mxu0 %v1486
        %v2075 = vpop.f32.mrf.mxu0
        %v2076 = vadd.f32 %v1272, %v2075
        %v2077 = vpop.f32.mrf.mxu0
        %2078 = vmatprep.mubr.f32.mxu0 0.0
        %2079 = vmatmul.mubr.f32.gmra.mxu0 %v1489
        %v2080 = vpop.f32.mrf.mxu0
        %v2081 = vadd.f32 %v1272, %v2080
        %v2082 = vpop.f32.mrf.mxu0
        %2083 = vmatprep.mubr.f32.mxu0 0.0
        %2084 = vmatmul.mubr.f32.gmra.mxu0 %v1492
        %v2085 = vpop.f32.mrf.mxu0
        %v2086 = vadd.f32 %v1272, %v2085
        %v2087 = vpop.f32.mrf.mxu0
        %2088 = vmatprep.mubr.f32.mxu0 0.0
        %2089 = vmatmul.mubr.f32.gmra.mxu0 %v1495
        %v2090 = vpop.f32.mrf.mxu0
        %v2091 = vadd.f32 %v1272, %v2090
        %v2092 = vpop.f32.mrf.mxu0
        %2093 = vmatprep.mubr.f32.mxu0 0.0
        %2094 = vmatmul.mubr.f32.gmra.mxu0 %v1498
        %v2095 = vpop.f32.mrf.mxu0
        %v2096 = vadd.f32 %v1272, %v2095
        %v2097 = vpop.f32.mrf.mxu0
        %2098 = vmatprep.mubr.f32.mxu0 0.0
        %2099 = vmatmul.mubr.f32.gmra.mxu0 %v1501
        %v2100 = vpop.f32.mrf.mxu0
        %v2101 = vadd.f32 %v1272, %v2100
        %v2102 = vpop.f32.mrf.mxu0
        %2103 = vmatprep.mubr.f32.mxu0 0.0
        %2104 = vmatmul.mubr.f32.gmra.mxu0 %v1504
        %v2105 = vpop.f32.mrf.mxu0
        %v2106 = vadd.f32 %v1272, %v2105
        %v2107 = vpop.f32.mrf.mxu0
        %2108 = vmatprep.mubr.f32.mxu0 0.0
        %2109 = vmatmul.mubr.f32.gmra.mxu0 %v1507
        %v2110 = vpop.f32.mrf.mxu0
        %v2111 = vadd.f32 %v1272, %v2110
        %v2112 = vpop.f32.mrf.mxu0
        %2113 = vmatprep.mubr.f32.mxu0 0.0
        %2114 = vmatmul.mubr.f32.gmra.mxu0 %v1510
        %v2115 = vpop.f32.mrf.mxu0
        %v2116 = vadd.f32 %v1272, %v2115
        %v2117 = vpop.f32.mrf.mxu0
        %2118 = vmatprep.mubr.f32.mxu0 0.0
        %2119 = vmatmul.mubr.f32.gmra.mxu0 %v1513
        %v2120 = vpop.f32.mrf.mxu0
        %v2121 = vadd.f32 %v1272, %v2120
        %v2122 = vpop.f32.mrf.mxu0
        %2123 = vmatprep.mubr.f32.mxu0 0.0
        %2124 = vmatmul.mubr.f32.gmra.mxu0 %v1516
        %v2125 = vpop.f32.mrf.mxu0
        %v2126 = vadd.f32 %v1272, %v2125
        %v2127 = vpop.f32.mrf.mxu0
        %2128 = vmatprep.mubr.f32.mxu0 0.0
        %2129 = vmatmul.mubr.f32.gmra.mxu0 %v1519
        %v2130 = vpop.f32.mrf.mxu0
        %v2131 = vadd.f32 %v1272, %v2130
        %v2132 = vpop.f32.mrf.mxu0
        %2133 = vmatprep.mubr.f32.mxu0 0.0
        %2134 = vmatmul.mubr.f32.gmra.mxu0 %v1522
        %v2135 = vpop.f32.mrf.mxu0
        %v2136 = vadd.f32 %v1272, %v2135
        %v2137 = vpop.f32.mrf.mxu0
        %2138 = vmatprep.mubr.f32.mxu0 0.0
        %2139 = vmatmul.mubr.f32.gmra.mxu0 %v1525
        %v2140 = vpop.f32.mrf.mxu0
        %v2141 = vadd.f32 %v1272, %v2140
        %v2142 = vpop.f32.mrf.mxu0
        %2143 = vmatprep.mubr.f32.mxu0 0.0
        %2144 = vmatmul.mubr.f32.gmra.mxu0 %v1528
        %v2145 = vpop.f32.mrf.mxu0
        %v2146 = vadd.f32 %v1272, %v2145
        %v2147 = vpop.f32.mrf.mxu0
        %2148 = vmatprep.mubr.f32.mxu0 0.0
        %2149 = vmatmul.mubr.f32.gmra.mxu0 %v1531
        %v2150 = vpop.f32.mrf.mxu0
        %v2151 = vadd.f32 %v1272, %v2150
        %v2152 = vpop.f32.mrf.mxu0
        %2153 = vmatprep.mubr.f32.mxu0 0.0
        %2154 = vmatmul.mubr.f32.gmra.mxu0 %v1534
        %v2155 = vpop.f32.mrf.mxu0
        %v2156 = vadd.f32 %v1272, %v2155
        %v2157 = vpop.f32.mrf.mxu0
        %2158 = vmatprep.mubr.f32.mxu0 0.0
        %2159 = vmatmul.mubr.f32.gmra.mxu0 %v1537
        %v2160 = vpop.f32.mrf.mxu0
        %v2161 = vadd.f32 %v1272, %v2160
        %v2162 = vpop.f32.mrf.mxu0
        %2163 = vmatprep.mubr.f32.mxu0 0.0
        %2164 = vmatmul.mubr.f32.gmra.mxu0 %v1540
        %v2165 = vpop.f32.mrf.mxu0
        %v2166 = vadd.f32 %v1272, %v2165
        %v2167 = vpop.f32.mrf.mxu0
        %2168 = vmatprep.mubr.f32.mxu0 0.0
        %2169 = vmatmul.mubr.f32.gmra.mxu0 %v1543
        %v2170 = vpop.f32.mrf.mxu0
        %v2171 = vadd.f32 %v1272, %v2170
        %v2172 = vpop.f32.mrf.mxu0
        %2173 = vmatprep.mubr.f32.mxu0 0.0
        %2174 = vmatmul.mubr.f32.gmra.mxu0 %v1546
        %v2175 = vpop.f32.mrf.mxu0
        %v2176 = vadd.f32 %v1272, %v2175
        %v2177 = vpop.f32.mrf.mxu0
        %2178 = vmatprep.mubr.f32.mxu0 0.0
        %2179 = vmatmul.mubr.f32.gmra.mxu0 %v1549
        %v2180 = vpop.f32.mrf.mxu0
        %v2181 = vadd.f32 %v1272, %v2180
        %v2182 = vpop.f32.mrf.mxu0
        %2183 = vmatprep.mubr.f32.mxu0 0.0
        %2184 = vmatmul.mubr.f32.gmra.mxu0 %v1552
        %v2185 = vpop.f32.mrf.mxu0
        %v2186 = vadd.f32 %v1272, %v2185
        %v2187 = vpop.f32.mrf.mxu0
        %2188 = vmatprep.mubr.f32.mxu0 0.0
        %2189 = vmatmul.mubr.f32.gmra.mxu0 %v1555
        %v2190 = vpop.f32.mrf.mxu0
        %v2191 = vadd.f32 %v1272, %v2190
        %v2192 = vpop.f32.mrf.mxu0
        %2193 = vmatprep.mubr.f32.mxu0 0.0
        %2194 = vmatmul.mubr.f32.gmra.mxu0 %v1558
        %v2195 = vpop.f32.mrf.mxu0
        %v2196 = vadd.f32 %v1272, %v2195
        %v2197 = vpop.f32.mrf.mxu0
        %2198 = vmatprep.mubr.f32.mxu0 0.0
        %2199 = vmatmul.mubr.f32.gmra.mxu0 %v1561
        %v2200 = vpop.f32.mrf.mxu0
        %v2201 = vadd.f32 %v1272, %v2200
        %v2202 = vpop.f32.mrf.mxu0
        %2203 = vmatprep.mubr.f32.mxu0 0.0
        %2204 = vmatmul.mubr.f32.gmra.mxu0 %v1564
        %v2205 = vpop.f32.mrf.mxu0
        %v2206 = vadd.f32 %v1272, %v2205
        %v2207 = vpop.f32.mrf.mxu0
        %2208 = vmatprep.mubr.f32.mxu0 0.0
        %2209 = vmatmul.mubr.f32.gmra.mxu0 %v1567
        %v2210 = vpop.f32.mrf.mxu0
        %v2211 = vadd.f32 %v1272, %v2210
        %v2212 = vpop.f32.mrf.mxu0
        %2213 = vmatprep.mubr.f32.mxu0 0.0
        %2214 = vmatmul.mubr.f32.gmra.mxu0 %v1570
        %v2215 = vpop.f32.mrf.mxu0
        %v2216 = vadd.f32 %v1272, %v2215
        %v2217 = vpop.f32.mrf.mxu0
        %2218 = vmatprep.mubr.f32.mxu0 0.0
        %2219 = vmatmul.mubr.f32.gmra.mxu0 %v1573
        %v2220 = vpop.f32.mrf.mxu0
        %v2221 = vadd.f32 %v1272, %v2220
        %v2222 = vpop.f32.mrf.mxu0
        %2223 = vmatprep.mubr.f32.mxu0 0.0
        %2224 = vmatmul.mubr.f32.gmra.mxu0 %v1576
        %v2225 = vpop.f32.mrf.mxu0
        %v2226 = vadd.f32 %v1272, %v2225
        %v2227 = vpop.f32.mrf.mxu0
        %2228 = vmatprep.mubr.f32.mxu0 0.0
        %2229 = vmatmul.mubr.f32.gmra.mxu0 %v1579
        %v2230 = vpop.f32.mrf.mxu0
        %v2231 = vadd.f32 %v1272, %v2230
        %v2232 = vpop.f32.mrf.mxu0
        %2233 = vmatprep.mubr.f32.mxu0 0.0
        %2234 = vmatmul.mubr.f32.gmra.mxu0 %v1582
        %v2235 = vpop.f32.mrf.mxu0
        %v2236 = vadd.f32 %v1272, %v2235
        %v2237 = vpop.f32.mrf.mxu0
        %2238 = vmatprep.mubr.f32.mxu0 0.0
        %2239 = vmatmul.mubr.f32.gmra.mxu0 %v1585
        %v2240 = vpop.f32.mrf.mxu0
        %v2241 = vadd.f32 %v1272, %v2240
        %v2242 = vpop.f32.mrf.mxu0
        %2243 = vmatprep.mubr.f32.mxu0 0.0
        %2244 = vmatmul.mubr.f32.gmra.mxu0 %v1588
        %v2245 = vpop.f32.mrf.mxu0
        %v2246 = vadd.f32 %v1272, %v2245
        %v2247 = vpop.f32.mrf.mxu0
        %2248 = vmatprep.mubr.f32.mxu0 0.0
        %2249 = vmatmul.mubr.f32.gmra.mxu0 %v1591
        %v2250 = vpop.f32.mrf.mxu0
        %v2251 = vadd.f32 %v1272, %v2250
        %v2252 = vpop.f32.mrf.mxu0
        %2253 = vmatprep.mubr.f32.mxu0 0.0
        %2254 = vmatmul.mubr.f32.gmra.mxu0 %v1594
        %v2255 = vpop.f32.mrf.mxu0
        %v2256 = vadd.f32 %v1272, %v2255
        %v2257 = vpop.f32.mrf.mxu0
        %2258 = vmatprep.mubr.f32.mxu0 0.0
        %2259 = vmatmul.mubr.f32.gmra.mxu0 %v1597
        %v2260 = vpop.f32.mrf.mxu0
        %v2261 = vadd.f32 %v1272, %v2260
        %v2262 = vpop.f32.mrf.mxu0
        %2263 = vmatprep.mubr.f32.mxu0 0.0
        %2264 = vmatmul.mubr.f32.gmra.mxu0 %v1600
        %v2265 = vpop.f32.mrf.mxu0
        %v2266 = vadd.f32 %v1272, %v2265
        %v2267 = vpop.f32.mrf.mxu0
        %2268 = vmatprep.mubr.f32.mxu0 0.0
        %2269 = vmatmul.mubr.f32.gmra.mxu0 %v1603
        %v2270 = vpop.f32.mrf.mxu0
        %v2271 = vadd.f32 %v1272, %v2270
        %v2272 = vpop.f32.mrf.mxu0
        %2273 = vmatprep.mubr.f32.mxu0 0.0
        %2274 = vmatmul.mubr.f32.gmra.mxu0 %v1606
        %v2275 = vpop.f32.mrf.mxu0
        %v2276 = vadd.f32 %v1272, %v2275
        %v2277 = vpop.f32.mrf.mxu0
        %2278 = vmatprep.mubr.f32.mxu0 0.0
        %2279 = vmatmul.mubr.f32.gmra.mxu0 %v1609
        %v2280 = vpop.f32.mrf.mxu0
        %v2281 = vadd.f32 %v1272, %v2280
        %v2282 = vpop.f32.mrf.mxu0
        %2283 = vmatprep.mubr.f32.mxu0 0.0
        %2284 = vmatmul.mubr.f32.gmra.mxu0 %v1612
        %v2285 = vpop.f32.mrf.mxu0
        %v2286 = vadd.f32 %v1272, %v2285
        %v2287 = vpop.f32.mrf.mxu0
        %2288 = vmatprep.mubr.f32.mxu0 0.0
        %2289 = vmatmul.mubr.f32.gmra.mxu0 %v1615
        %v2290 = vpop.f32.mrf.mxu0
        %v2291 = vadd.f32 %v1272, %v2290
        %v2292 = vpop.f32.mrf.mxu0
        %2293 = vmatprep.mubr.f32.mxu0 0.0
        %2294 = vmatmul.mubr.f32.gmra.mxu0 %v1618
        %v2295 = vpop.f32.mrf.mxu0
        %v2296 = vadd.f32 %v1272, %v2295
        %v2297 = vpop.f32.mrf.mxu0
        %2298 = vmatprep.mubr.f32.mxu0 0.0
        %2299 = vmatmul.mubr.f32.gmra.mxu0 %v1621
        %v2300 = vpop.f32.mrf.mxu0
        %v2301 = vadd.f32 %v1272, %v2300
        %v2302 = vpop.f32.mrf.mxu0
        %2303 = vmatprep.mubr.f32.mxu0 0.0
        %2304 = vmatmul.mubr.f32.gmra.mxu0 %v1624
        %v2305 = vpop.f32.mrf.mxu0
        %v2306 = vadd.f32 %v1272, %v2305
        %v2307 = vpop.f32.mrf.mxu0
        %2308 = vmatprep.mubr.f32.mxu0 0.0
        %2309 = vmatmul.mubr.f32.gmra.mxu0 %v1627
        %v2310 = vpop.f32.mrf.mxu0
        %v2311 = vadd.f32 %v1272, %v2310
        %v2312 = vpop.f32.mrf.mxu0
        %2313 = vmatprep.mubr.f32.mxu0 0.0
        %2314 = vmatmul.mubr.f32.gmra.mxu0 %v1630
        %v2315 = vpop.f32.mrf.mxu0
        %v2316 = vadd.f32 %v1272, %v2315
        %v2317 = vpop.f32.mrf.mxu0
        %2318 = vmatprep.mubr.f32.mxu0 0.0
        %2319 = vmatmul.mubr.f32.gmra.mxu0 %v1633
        %v2320 = vpop.f32.mrf.mxu0
        %v2321 = vadd.f32 %v1272, %v2320
        %v2322 = vpop.f32.mrf.mxu0
        %2323 = vmatprep.mubr.f32.mxu0 0.0
        %2324 = vmatmul.mubr.f32.gmra.mxu0 %v1636
        %v2325 = vpop.f32.mrf.mxu0
        %v2326 = vadd.f32 %v1272, %v2325
        %v2327 = vpop.f32.mrf.mxu0
        %2328 = vmatprep.mubr.f32.mxu0 0.0
        %2329 = vmatmul.mubr.f32.gmra.mxu0 %v1639
        %v2330 = vpop.f32.mrf.mxu0
        %v2331 = vadd.f32 %v1272, %v2330
        %v2332 = vpop.f32.mrf.mxu0
        %2333 = vmatprep.mubr.f32.mxu0 0.0
        %2334 = vmatmul.mubr.f32.gmra.mxu0 %v1642
        %v2335 = vpop.f32.mrf.mxu0
        %v2336 = vadd.f32 %v1272, %v2335
        %v2337 = vpop.f32.mrf.mxu0
        %2338 = vmatprep.mubr.f32.mxu0 0.0
        %2339 = vmatmul.mubr.f32.gmra.mxu0 %v1645
        %v2340 = vpop.f32.mrf.mxu0
        %v2341 = vadd.f32 %v1272, %v2340
        %v2342 = vpop.f32.mrf.mxu0
        %2343 = vmatprep.mubr.f32.mxu0 0.0
        %2344 = vmatmul.mubr.f32.gmra.mxu0 %v1648
        %v2345 = vpop.f32.mrf.mxu0
        %v2346 = vadd.f32 %v1272, %v2345
        %v2347 = vpop.f32.mrf.mxu0
        %2348 = vmatprep.mubr.f32.mxu0 0.0
        %2349 = vmatmul.mubr.f32.gmra.mxu0 %v1651
        %v2350 = vpop.f32.mrf.mxu0
        %v2351 = vadd.f32 %v1272, %v2350
        %v2352 = vpop.f32.mrf.mxu0
        %2353 = vmatprep.mubr.f32.mxu0 0.0
        %2354 = vmatmul.mubr.f32.gmra.mxu0 %v1654
        %v2355 = vpop.f32.mrf.mxu0
        %v2356 = vadd.f32 %v1272, %v2355
        %v2357 = vpop.f32.mrf.mxu0
        %2358 = vmatprep.mubr.f32.mxu0 0.0
        %2359 = vmatmul.mubr.f32.gmra.mxu0 %v1657
        %v2360 = vpop.f32.mrf.mxu0
        %v2361 = vadd.f32 %v1272, %v2360
        %v2362 = vpop.f32.mrf.mxu0
        %2363 = vdwg.mxu0
        %v2364 = vmul.f32 %v1726, 0.2
        %v2365 = vmul.f32 %v1731, 0.2
        %v2366 = vmul.f32 %v1736, 0.2
        %v2367 = vmul.f32 %v1741, 0.2
        %v2368 = vmul.f32 %v1746, 0.2
        %v2369 = vmul.f32 %v1751, 0.2
        %v2370 = vmul.f32 %v1756, 0.2
        %v2371 = vmul.f32 %v1761, 0.2
        %v2372 = vmul.f32 %v1766, 0.2
        %v2373 = vmul.f32 %v1771, 0.2
        %v2374 = vmul.f32 %v1776, 0.2
        %v2375 = vmul.f32 %v1781, 0.2
        %v2376 = vmul.f32 %v1786, 0.2
        %v2377 = vmul.f32 %v1791, 0.2
        %v2378 = vmul.f32 %v1796, 0.2
        %v2379 = vmul.f32 %v1801, 0.2
        %v2380 = vmul.f32 %v1806, 0.2
        %v2381 = vmul.f32 %v1811, 0.2
        %v2382 = vmul.f32 %v1816, 0.2
        %v2383 = vmul.f32 %v1821, 0.2
        %v2384 = vmul.f32 %v1826, 0.2
        %v2385 = vmul.f32 %v1831, 0.2
        %v2386 = vmul.f32 %v1836, 0.2
        %v2387 = vmul.f32 %v1841, 0.2
        %v2388 = vmul.f32 %v1846, 0.2
        %v2389 = vmul.f32 %v1851, 0.2
        %v2390 = vmul.f32 %v1856, 0.2
        %v2391 = vmul.f32 %v1861, 0.2
        %v2392 = vmul.f32 %v1866, 0.2
        %v2393 = vmul.f32 %v1871, 0.2
        %v2394 = vmul.f32 %v1876, 0.2
        %v2395 = vmul.f32 %v1881, 0.2
        %v2396 = vmul.f32 %v1886, 0.2
        %v2397 = vmul.f32 %v1891, 0.2
        %v2398 = vmul.f32 %v1896, 0.2
        %v2399 = vmul.f32 %v1901, 0.2
        %v2400 = vmul.f32 %v1906, 0.2
        %v2401 = vmul.f32 %v1911, 0.2
        %v2402 = vmul.f32 %v1916, 0.2
        %v2403 = vmul.f32 %v1921, 0.2
        %v2404 = vmul.f32 %v1926, 0.2
        %v2405 = vmul.f32 %v1931, 0.2
        %v2406 = vmul.f32 %v1936, 0.2
        %v2407 = vmul.f32 %v1941, 0.2
        %v2408 = vmul.f32 %v1946, 0.2
        %v2409 = vmul.f32 %v1951, 0.2
        %v2410 = vmul.f32 %v1956, 0.2
        %v2411 = vmul.f32 %v1961, 0.2
        %v2412 = vmul.f32 %v1966, 0.2
        %v2413 = vmul.f32 %v1971, 0.2
        %v2414 = vmul.f32 %v1976, 0.2
        %v2415 = vmul.f32 %v1981, 0.2
        %v2416 = vmul.f32 %v1986, 0.2
        %v2417 = vmul.f32 %v1991, 0.2
        %v2418 = vmul.f32 %v1996, 0.2
        %v2419 = vmul.f32 %v2001, 0.2
        %v2420 = vmul.f32 %v2006, 0.2
        %v2421 = vmul.f32 %v2011, 0.2
        %v2422 = vmul.f32 %v2016, 0.2
        %v2423 = vmul.f32 %v2021, 0.2
        %v2424 = vmul.f32 %v2026, 0.2
        %v2425 = vmul.f32 %v2031, 0.2
        %v2426 = vmul.f32 %v2036, 0.2
        %v2427 = vmul.f32 %v2041, 0.2
        %v2428 = vmul.f32 %v2046, 0.2
        %v2429 = vmul.f32 %v2051, 0.2
        %v2430 = vmul.f32 %v2056, 0.2
        %v2431 = vmul.f32 %v2061, 0.2
        %v2432 = vmul.f32 %v2066, 0.2
        %v2433 = vmul.f32 %v2071, 0.2
        %v2434 = vmul.f32 %v2076, 0.2
        %v2435 = vmul.f32 %v2081, 0.2
        %v2436 = vmul.f32 %v2086, 0.2
        %v2437 = vmul.f32 %v2091, 0.2
        %v2438 = vmul.f32 %v2096, 0.2
        %v2439 = vmul.f32 %v2101, 0.2
        %v2440 = vmul.f32 %v2106, 0.2
        %v2441 = vmul.f32 %v2111, 0.2
        %v2442 = vmul.f32 %v2116, 0.2
        %v2443 = vmul.f32 %v2121, 0.2
        %v2444 = vmul.f32 %v2126, 0.2
        %v2445 = vmul.f32 %v2131, 0.2
        %v2446 = vmul.f32 %v2136, 0.2
        %v2447 = vmul.f32 %v2141, 0.2
        %v2448 = vmul.f32 %v2146, 0.2
        %v2449 = vmul.f32 %v2151, 0.2
        %v2450 = vmul.f32 %v2156, 0.2
        %v2451 = vmul.f32 %v2161, 0.2
        %v2452 = vmul.f32 %v2166, 0.2
        %v2453 = vmul.f32 %v2171, 0.2
        %v2454 = vmul.f32 %v2176, 0.2
        %v2455 = vmul.f32 %v2181, 0.2
        %v2456 = vmul.f32 %v2186, 0.2
        %v2457 = vmul.f32 %v2191, 0.2
        %v2458 = vmul.f32 %v2196, 0.2
        %v2459 = vmul.f32 %v2201, 0.2
        %v2460 = vmul.f32 %v2206, 0.2
        %v2461 = vmul.f32 %v2211, 0.2
        %v2462 = vmul.f32 %v2216, 0.2
        %v2463 = vmul.f32 %v2221, 0.2
        %v2464 = vmul.f32 %v2226, 0.2
        %v2465 = vmul.f32 %v2231, 0.2
        %v2466 = vmul.f32 %v2236, 0.2
        %v2467 = vmul.f32 %v2241, 0.2
        %v2468 = vmul.f32 %v2246, 0.2
        %v2469 = vmul.f32 %v2251, 0.2
        %v2470 = vmul.f32 %v2256, 0.2
        %v2471 = vmul.f32 %v2261, 0.2
        %v2472 = vmul.f32 %v2266, 0.2
        %v2473 = vmul.f32 %v2271, 0.2
        %v2474 = vmul.f32 %v2276, 0.2
        %v2475 = vmul.f32 %v2281, 0.2
        %v2476 = vmul.f32 %v2286, 0.2
        %v2477 = vmul.f32 %v2291, 0.2
        %v2478 = vmul.f32 %v2296, 0.2
        %v2479 = vmul.f32 %v2301, 0.2
        %v2480 = vmul.f32 %v2306, 0.2
        %v2481 = vmul.f32 %v2311, 0.2
        %v2482 = vmul.f32 %v2316, 0.2
        %v2483 = vmul.f32 %v2321, 0.2
        %v2484 = vmul.f32 %v2326, 0.2
        %v2485 = vmul.f32 %v2331, 0.2
        %v2486 = vmul.f32 %v2336, 0.2
        %v2487 = vmul.f32 %v2341, 0.2
        %v2488 = vmul.f32 %v2346, 0.2
        %v2489 = vmul.f32 %v2351, 0.2
        %v2490 = vmul.f32 %v2356, 0.2
        %v2491 = vmul.f32 %v2361, 0.2
        %v2492 = vmax.f32 %v1726, %v2364
        %v2493 = vmax.f32 %v1731, %v2365
        %v2494 = vmax.f32 %v1736, %v2366
        %v2495 = vmax.f32 %v1741, %v2367
        %v2496 = vmax.f32 %v1746, %v2368
        %v2497 = vmax.f32 %v1751, %v2369
        %v2498 = vmax.f32 %v1756, %v2370
        %v2499 = vmax.f32 %v1761, %v2371
        %v2500 = vmax.f32 %v1766, %v2372
        %v2501 = vmax.f32 %v1771, %v2373
        %v2502 = vmax.f32 %v1776, %v2374
        %v2503 = vmax.f32 %v1781, %v2375
        %v2504 = vmax.f32 %v1786, %v2376
        %v2505 = vmax.f32 %v1791, %v2377
        %v2506 = vmax.f32 %v1796, %v2378
        %v2507 = vmax.f32 %v1801, %v2379
        %v2508 = vmax.f32 %v1806, %v2380
        %v2509 = vmax.f32 %v1811, %v2381
        %v2510 = vmax.f32 %v1816, %v2382
        %v2511 = vmax.f32 %v1821, %v2383
        %v2512 = vmax.f32 %v1826, %v2384
        %v2513 = vmax.f32 %v1831, %v2385
        %v2514 = vmax.f32 %v1836, %v2386
        %v2515 = vmax.f32 %v1841, %v2387
        %v2516 = vmax.f32 %v1846, %v2388
        %v2517 = vmax.f32 %v1851, %v2389
        %v2518 = vmax.f32 %v1856, %v2390
        %v2519 = vmax.f32 %v1861, %v2391
        %v2520 = vmax.f32 %v1866, %v2392
        %v2521 = vmax.f32 %v1871, %v2393
        %v2522 = vmax.f32 %v1876, %v2394
        %v2523 = vmax.f32 %v1881, %v2395
        %v2524 = vmax.f32 %v1886, %v2396
        %v2525 = vmax.f32 %v1891, %v2397
        %v2526 = vmax.f32 %v1896, %v2398
        %v2527 = vmax.f32 %v1901, %v2399
        %v2528 = vmax.f32 %v1906, %v2400
        %v2529 = vmax.f32 %v1911, %v2401
        %v2530 = vmax.f32 %v1916, %v2402
        %v2531 = vmax.f32 %v1921, %v2403
        %v2532 = vmax.f32 %v1926, %v2404
        %v2533 = vmax.f32 %v1931, %v2405
        %v2534 = vmax.f32 %v1936, %v2406
        %v2535 = vmax.f32 %v1941, %v2407
        %v2536 = vmax.f32 %v1946, %v2408
        %v2537 = vmax.f32 %v1951, %v2409
        %v2538 = vmax.f32 %v1956, %v2410
        %v2539 = vmax.f32 %v1961, %v2411
        %v2540 = vmax.f32 %v1966, %v2412
        %v2541 = vmax.f32 %v1971, %v2413
        %v2542 = vmax.f32 %v1976, %v2414
        %v2543 = vmax.f32 %v1981, %v2415
        %v2544 = vmax.f32 %v1986, %v2416
        %v2545 = vmax.f32 %v1991, %v2417
        %v2546 = vmax.f32 %v1996, %v2418
        %v2547 = vmax.f32 %v2001, %v2419
        %v2548 = vmax.f32 %v2006, %v2420
        %v2549 = vmax.f32 %v2011, %v2421
        %v2550 = vmax.f32 %v2016, %v2422
        %v2551 = vmax.f32 %v2021, %v2423
        %v2552 = vmax.f32 %v2026, %v2424
        %v2553 = vmax.f32 %v2031, %v2425
        %v2554 = vmax.f32 %v2036, %v2426
        %v2555 = vmax.f32 %v2041, %v2427
        %v2556 = vmax.f32 %v2046, %v2428
        %v2557 = vmax.f32 %v2051, %v2429
        %v2558 = vmax.f32 %v2056, %v2430
        %v2559 = vmax.f32 %v2061, %v2431
        %v2560 = vmax.f32 %v2066, %v2432
        %v2561 = vmax.f32 %v2071, %v2433
        %v2562 = vmax.f32 %v2076, %v2434
        %v2563 = vmax.f32 %v2081, %v2435
        %v2564 = vmax.f32 %v2086, %v2436
        %v2565 = vmax.f32 %v2091, %v2437
        %v2566 = vmax.f32 %v2096, %v2438
        %v2567 = vmax.f32 %v2101, %v2439
        %v2568 = vmax.f32 %v2106, %v2440
        %v2569 = vmax.f32 %v2111, %v2441
        %v2570 = vmax.f32 %v2116, %v2442
        %v2571 = vmax.f32 %v2121, %v2443
        %v2572 = vmax.f32 %v2126, %v2444
        %v2573 = vmax.f32 %v2131, %v2445
        %v2574 = vmax.f32 %v2136, %v2446
        %v2575 = vmax.f32 %v2141, %v2447
        %v2576 = vmax.f32 %v2146, %v2448
        %v2577 = vmax.f32 %v2151, %v2449
        %v2578 = vmax.f32 %v2156, %v2450
        %v2579 = vmax.f32 %v2161, %v2451
        %v2580 = vmax.f32 %v2166, %v2452
        %v2581 = vmax.f32 %v2171, %v2453
        %v2582 = vmax.f32 %v2176, %v2454
        %v2583 = vmax.f32 %v2181, %v2455
        %v2584 = vmax.f32 %v2186, %v2456
        %v2585 = vmax.f32 %v2191, %v2457
        %v2586 = vmax.f32 %v2196, %v2458
        %v2587 = vmax.f32 %v2201, %v2459
        %v2588 = vmax.f32 %v2206, %v2460
        %v2589 = vmax.f32 %v2211, %v2461
        %v2590 = vmax.f32 %v2216, %v2462
        %v2591 = vmax.f32 %v2221, %v2463
        %v2592 = vmax.f32 %v2226, %v2464
        %v2593 = vmax.f32 %v2231, %v2465
        %v2594 = vmax.f32 %v2236, %v2466
        %v2595 = vmax.f32 %v2241, %v2467
        %v2596 = vmax.f32 %v2246, %v2468
        %v2597 = vmax.f32 %v2251, %v2469
        %v2598 = vmax.f32 %v2256, %v2470
        %v2599 = vmax.f32 %v2261, %v2471
        %v2600 = vmax.f32 %v2266, %v2472
        %v2601 = vmax.f32 %v2271, %v2473
        %v2602 = vmax.f32 %v2276, %v2474
        %v2603 = vmax.f32 %v2281, %v2475
        %v2604 = vmax.f32 %v2286, %v2476
        %v2605 = vmax.f32 %v2291, %v2477
        %v2606 = vmax.f32 %v2296, %v2478
        %v2607 = vmax.f32 %v2301, %v2479
        %v2608 = vmax.f32 %v2306, %v2480
        %v2609 = vmax.f32 %v2311, %v2481
        %v2610 = vmax.f32 %v2316, %v2482
        %v2611 = vmax.f32 %v2321, %v2483
        %v2612 = vmax.f32 %v2326, %v2484
        %v2613 = vmax.f32 %v2331, %v2485
        %v2614 = vmax.f32 %v2336, %v2486
        %v2615 = vmax.f32 %v2341, %v2487
        %v2616 = vmax.f32 %v2346, %v2488
        %v2617 = vmax.f32 %v2351, %v2489
        %v2618 = vmax.f32 %v2356, %v2490
        %v2619 = vmax.f32 %v2361, %v2491
        %v2620 = vld [vmem:[%s3] sm:$0xf]
        %v2621 = vld [vmem:[%s4] sm:$0xf]
        %2623 = vset.pattern.permute.xlu0 0
        %2624 = vperm.xlu0 %2623, %v2621
        %v2625 = vpop.permute.xlu0 %2624
        %v2628 = vsel %vm1274, %v2620, 0
        %v2631 = vsel %vm1274, %v2492, 0
        %v2634 = vsel %vm1274, %v2493, 0
        %v2637 = vsel %vm1274, %v2494, 0
        %v2640 = vsel %vm1274, %v2495, 0
        %v2643 = vsel %vm1274, %v2496, 0
        %v2646 = vsel %vm1274, %v2497, 0
        %v2649 = vsel %vm1274, %v2498, 0
        %v2652 = vsel %vm1274, %v2499, 0
        %v2655 = vsel %vm1274, %v2500, 0
        %v2658 = vsel %vm1274, %v2501, 0
        %v2661 = vsel %vm1274, %v2502, 0
        %v2664 = vsel %vm1274, %v2503, 0
        %v2667 = vsel %vm1274, %v2504, 0
        %v2670 = vsel %vm1274, %v2505, 0
        %v2673 = vsel %vm1274, %v2506, 0
        %v2676 = vsel %vm1274, %v2507, 0
        %v2679 = vsel %vm1274, %v2508, 0
        %v2682 = vsel %vm1274, %v2509, 0
        %v2685 = vsel %vm1274, %v2510, 0
        %v2688 = vsel %vm1274, %v2511, 0
        %v2691 = vsel %vm1274, %v2512, 0
        %v2694 = vsel %vm1274, %v2513, 0
        %v2697 = vsel %vm1274, %v2514, 0
        %v2700 = vsel %vm1274, %v2515, 0
        %v2703 = vsel %vm1274, %v2516, 0
        %v2706 = vsel %vm1274, %v2517, 0
        %v2709 = vsel %vm1274, %v2518, 0
        %v2712 = vsel %vm1274, %v2519, 0
        %v2715 = vsel %vm1274, %v2520, 0
        %v2718 = vsel %vm1274, %v2521, 0
        %v2721 = vsel %vm1274, %v2522, 0
        %v2724 = vsel %vm1274, %v2523, 0
        %v2727 = vsel %vm1274, %v2524, 0
        %v2730 = vsel %vm1274, %v2525, 0
        %v2733 = vsel %vm1274, %v2526, 0
        %v2736 = vsel %vm1274, %v2527, 0
        %v2739 = vsel %vm1274, %v2528, 0
        %v2742 = vsel %vm1274, %v2529, 0
        %v2745 = vsel %vm1274, %v2530, 0
        %v2748 = vsel %vm1274, %v2531, 0
        %v2751 = vsel %vm1274, %v2532, 0
        %v2754 = vsel %vm1274, %v2533, 0
        %v2757 = vsel %vm1274, %v2534, 0
        %v2760 = vsel %vm1274, %v2535, 0
        %v2763 = vsel %vm1274, %v2536, 0
        %v2766 = vsel %vm1274, %v2537, 0
        %v2769 = vsel %vm1274, %v2538, 0
        %v2772 = vsel %vm1274, %v2539, 0
        %v2775 = vsel %vm1274, %v2540, 0
        %v2778 = vsel %vm1274, %v2541, 0
        %v2781 = vsel %vm1274, %v2542, 0
        %v2784 = vsel %vm1274, %v2543, 0
        %v2787 = vsel %vm1274, %v2544, 0
        %v2790 = vsel %vm1274, %v2545, 0
        %v2793 = vsel %vm1274, %v2546, 0
        %v2796 = vsel %vm1274, %v2547, 0
        %v2799 = vsel %vm1274, %v2548, 0
        %v2802 = vsel %vm1274, %v2549, 0
        %v2805 = vsel %vm1274, %v2550, 0
        %v2808 = vsel %vm1274, %v2551, 0
        %v2811 = vsel %vm1274, %v2552, 0
        %v2814 = vsel %vm1274, %v2553, 0
        %v2817 = vsel %vm1274, %v2554, 0
        %v2820 = vsel %vm1274, %v2555, 0
        %v2823 = vsel %vm1274, %v2556, 0
        %v2826 = vsel %vm1274, %v2557, 0
        %v2829 = vsel %vm1274, %v2558, 0
        %v2832 = vsel %vm1274, %v2559, 0
        %v2835 = vsel %vm1274, %v2560, 0
        %v2838 = vsel %vm1274, %v2561, 0
        %v2841 = vsel %vm1274, %v2562, 0
        %v2844 = vsel %vm1274, %v2563, 0
        %v2847 = vsel %vm1274, %v2564, 0
        %v2850 = vsel %vm1274, %v2565, 0
        %v2853 = vsel %vm1274, %v2566, 0
        %v2856 = vsel %vm1274, %v2567, 0
        %v2859 = vsel %vm1274, %v2568, 0
        %v2862 = vsel %vm1274, %v2569, 0
        %v2865 = vsel %vm1274, %v2570, 0
        %v2868 = vsel %vm1274, %v2571, 0
        %v2871 = vsel %vm1274, %v2572, 0
        %v2874 = vsel %vm1274, %v2573, 0
        %v2877 = vsel %vm1274, %v2574, 0
        %v2880 = vsel %vm1274, %v2575, 0
        %v2883 = vsel %vm1274, %v2576, 0
        %v2886 = vsel %vm1274, %v2577, 0
        %v2889 = vsel %vm1274, %v2578, 0
        %v2892 = vsel %vm1274, %v2579, 0
        %v2895 = vsel %vm1274, %v2580, 0
        %v2898 = vsel %vm1274, %v2581, 0
        %v2901 = vsel %vm1274, %v2582, 0
        %v2904 = vsel %vm1274, %v2583, 0
        %v2907 = vsel %vm1274, %v2584, 0
        %v2910 = vsel %vm1274, %v2585, 0
        %v2913 = vsel %vm1274, %v2586, 0
        %v2916 = vsel %vm1274, %v2587, 0
        %v2919 = vsel %vm1274, %v2588, 0
        %v2922 = vsel %vm1274, %v2589, 0
        %v2925 = vsel %vm1274, %v2590, 0
        %v2928 = vsel %vm1274, %v2591, 0
        %v2931 = vsel %vm1274, %v2592, 0
        %v2934 = vsel %vm1274, %v2593, 0
        %v2937 = vsel %vm1274, %v2594, 0
        %v2940 = vsel %vm1274, %v2595, 0
        %v2943 = vsel %vm1274, %v2596, 0
        %v2946 = vsel %vm1274, %v2597, 0
        %v2949 = vsel %vm1274, %v2598, 0
        %v2952 = vsel %vm1274, %v2599, 0
        %v2955 = vsel %vm1274, %v2600, 0
        %v2958 = vsel %vm1274, %v2601, 0
        %v2961 = vsel %vm1274, %v2602, 0
        %v2964 = vsel %vm1274, %v2603, 0
        %v2967 = vsel %vm1274, %v2604, 0
        %v2970 = vsel %vm1274, %v2605, 0
        %v2973 = vsel %vm1274, %v2606, 0
        %v2976 = vsel %vm1274, %v2607, 0
        %v2979 = vsel %vm1274, %v2608, 0
        %v2982 = vsel %vm1274, %v2609, 0
        %v2985 = vsel %vm1274, %v2610, 0
        %v2988 = vsel %vm1274, %v2611, 0
        %v2991 = vsel %vm1274, %v2612, 0
        %v2994 = vsel %vm1274, %v2613, 0
        %v2997 = vsel %vm1274, %v2614, 0
        %v3000 = vsel %vm1274, %v2615, 0
        %v3003 = vsel %vm1274, %v2616, 0
        %v3006 = vsel %vm1274, %v2617, 0
        %v3009 = vsel %vm1274, %v2618, 0
        %v3012 = vsel %vm1274, %v2619, 0
        %3014 = vmatprep.subr.mxu0 0.0
        %3015 = vmatpush1.xpose.msra.mxu0 %v2676
        %3016 = vmatprep.subr.mxu0 0.0
        %3017 = vmatpush1.xpose.msra.mxu0 %v2673
        %3018 = vmatprep.subr.mxu0 0.0
        %3019 = vmatpush1.xpose.msra.mxu0 %v2670
        %3020 = vmatprep.subr.mxu0 0.0
        %3021 = vmatpush1.xpose.msra.mxu0 %v2667
        %3022 = vmatprep.subr.mxu0 0.0
        %3023 = vmatpush1.xpose.msra.mxu0 %v2664
        %3024 = vmatprep.subr.mxu0 0.0
        %3025 = vmatpush1.xpose.msra.mxu0 %v2661
        %3026 = vmatprep.subr.mxu0 0.0
        %3027 = vmatpush1.xpose.msra.mxu0 %v2658
        %3028 = vmatprep.subr.mxu0 0.0
        %3029 = vmatpush1.xpose.msra.mxu0 %v2655
        %3030 = vmatprep.subr.mxu0 0.0
        %3031 = vmatpush1.xpose.msra.mxu0 %v2652
        %3032 = vmatprep.subr.mxu0 0.0
        %3033 = vmatpush1.xpose.msra.mxu0 %v2649
        %3034 = vmatprep.subr.mxu0 0.0
        %3035 = vmatpush1.xpose.msra.mxu0 %v2646
        %3036 = vmatprep.subr.mxu0 0.0
        %3037 = vmatpush1.xpose.msra.mxu0 %v2643
        %3038 = vmatprep.subr.mxu0 0.0
        %3039 = vmatpush1.xpose.msra.mxu0 %v2640
        %3040 = vmatprep.subr.mxu0 0.0
        %3041 = vmatpush1.xpose.msra.mxu0 %v2637
        %3042 = vmatprep.subr.mxu0 0.0
        %3043 = vmatpush1.xpose.msra.mxu0 %v2634
        %3044 = vmatprep.subr.mxu0 0.0
        %3045 = vmatpush1.xpose.msra.mxu0 %v2631
        %3046 = vmatprep.subr.mxu0 0.0
        %3047 = vmatpush2.xpose.msra.mxu0 %v2724
        %3048 = vmatprep.subr.mxu0 0.0
        %3049 = vmatpush2.xpose.msra.mxu0 %v2721
        %3050 = vmatprep.subr.mxu0 0.0
        %3051 = vmatpush2.xpose.msra.mxu0 %v2718
        %3052 = vmatprep.subr.mxu0 0.0
        %3053 = vmatpush2.xpose.msra.mxu0 %v2715
        %3054 = vmatprep.subr.mxu0 0.0
        %3055 = vmatpush2.xpose.msra.mxu0 %v2712
        %3056 = vmatprep.subr.mxu0 0.0
        %3057 = vmatpush2.xpose.msra.mxu0 %v2709
        %3058 = vmatprep.subr.mxu0 0.0
        %3059 = vmatpush2.xpose.msra.mxu0 %v2706
        %3060 = vmatprep.subr.mxu0 0.0
        %3061 = vmatpush2.xpose.msra.mxu0 %v2703
        %3062 = vmatprep.subr.mxu0 0.0
        %3063 = vmatpush2.xpose.msra.mxu0 %v2700
        %3064 = vmatprep.subr.mxu0 0.0
        %3065 = vmatpush2.xpose.msra.mxu0 %v2697
        %3066 = vmatprep.subr.mxu0 0.0
        %3067 = vmatpush2.xpose.msra.mxu0 %v2694
        %3068 = vmatprep.subr.mxu0 0.0
        %3069 = vmatpush2.xpose.msra.mxu0 %v2691
        %3070 = vmatprep.subr.mxu0 0.0
        %3071 = vmatpush2.xpose.msra.mxu0 %v2688
        %3072 = vmatprep.subr.mxu0 0.0
        %3073 = vmatpush2.xpose.msra.mxu0 %v2685
        %3074 = vmatprep.subr.mxu0 0.0
        %3075 = vmatpush2.xpose.msra.mxu0 %v2682
        %3076 = vmatprep.subr.mxu0 0.0
        %3077 = vmatpush2.xpose.msra.mxu0 %v2679
        %3078 = vmatprep.mubr.f32.mxu0 0.0
        %3079 = vmatmul.mubr.f32.gmra.mxu0 %v2628
        %v3080 = vpop.f32.mrf.mxu0
        %v3081 = vadd.f32 %v2625, %v3080
        %v3082 = vpop.f32.mrf.mxu0
        %v3083 = vadd.f32 %v2625, %v3082
        %3084 = vdwg.mxu0
        %3085 = vmatprep.subr.mxu0 0.0
        %3086 = vmatpush1.xpose.msra.mxu0 %v2772
        %3087 = vmatprep.subr.mxu0 0.0
        %3088 = vmatpush1.xpose.msra.mxu0 %v2769
        %3089 = vmatprep.subr.mxu0 0.0
        %3090 = vmatpush1.xpose.msra.mxu0 %v2766
        %3091 = vmatprep.subr.mxu0 0.0
        %3092 = vmatpush1.xpose.msra.mxu0 %v2763
        %3093 = vmatprep.subr.mxu0 0.0
        %3094 = vmatpush1.xpose.msra.mxu0 %v2760
        %3095 = vmatprep.subr.mxu0 0.0
        %3096 = vmatpush1.xpose.msra.mxu0 %v2757
        %3097 = vmatprep.subr.mxu0 0.0
        %3098 = vmatpush1.xpose.msra.mxu0 %v2754
        %3099 = vmatprep.subr.mxu0 0.0
        %3100 = vmatpush1.xpose.msra.mxu0 %v2751
        %3101 = vmatprep.subr.mxu0 0.0
        %3102 = vmatpush1.xpose.msra.mxu0 %v2748
        %3103 = vmatprep.subr.mxu0 0.0
        %3104 = vmatpush1.xpose.msra.mxu0 %v2745
        %3105 = vmatprep.subr.mxu0 0.0
        %3106 = vmatpush1.xpose.msra.mxu0 %v2742
        %3107 = vmatprep.subr.mxu0 0.0
        %3108 = vmatpush1.xpose.msra.mxu0 %v2739
        %3109 = vmatprep.subr.mxu0 0.0
        %3110 = vmatpush1.xpose.msra.mxu0 %v2736
        %3111 = vmatprep.subr.mxu0 0.0
        %3112 = vmatpush1.xpose.msra.mxu0 %v2733
        %3113 = vmatprep.subr.mxu0 0.0
        %3114 = vmatpush1.xpose.msra.mxu0 %v2730
        %3115 = vmatprep.subr.mxu0 0.0
        %3116 = vmatpush1.xpose.msra.mxu0 %v2727
        %3117 = vmatprep.subr.mxu0 0.0
        %3118 = vmatpush2.xpose.msra.mxu0 %v2820
        %3119 = vmatprep.subr.mxu0 0.0
        %3120 = vmatpush2.xpose.msra.mxu0 %v2817
        %3121 = vmatprep.subr.mxu0 0.0
        %3122 = vmatpush2.xpose.msra.mxu0 %v2814
        %3123 = vmatprep.subr.mxu0 0.0
        %3124 = vmatpush2.xpose.msra.mxu0 %v2811
        %3125 = vmatprep.subr.mxu0 0.0
        %3126 = vmatpush2.xpose.msra.mxu0 %v2808
        %3127 = vmatprep.subr.mxu0 0.0
        %3128 = vmatpush2.xpose.msra.mxu0 %v2805
        %3129 = vmatprep.subr.mxu0 0.0
        %3130 = vmatpush2.xpose.msra.mxu0 %v2802
        %3131 = vmatprep.subr.mxu0 0.0
        %3132 = vmatpush2.xpose.msra.mxu0 %v2799
        %3133 = vmatprep.subr.mxu0 0.0
        %3134 = vmatpush2.xpose.msra.mxu0 %v2796
        %3135 = vmatprep.subr.mxu0 0.0
        %3136 = vmatpush2.xpose.msra.mxu0 %v2793
        %3137 = vmatprep.subr.mxu0 0.0
        %3138 = vmatpush2.xpose.msra.mxu0 %v2790
        %3139 = vmatprep.subr.mxu0 0.0
        %3140 = vmatpush2.xpose.msra.mxu0 %v2787
        %3141 = vmatprep.subr.mxu0 0.0
        %3142 = vmatpush2.xpose.msra.mxu0 %v2784
        %3143 = vmatprep.subr.mxu0 0.0
        %3144 = vmatpush2.xpose.msra.mxu0 %v2781
        %3145 = vmatprep.subr.mxu0 0.0
        %3146 = vmatpush2.xpose.msra.mxu0 %v2778
        %3147 = vmatprep.subr.mxu0 0.0
        %3148 = vmatpush2.xpose.msra.mxu0 %v2775
        %3149 = vmatprep.mubr.f32.mxu0 0.0
        %3150 = vmatmul.mubr.f32.gmra.mxu0 %v2628
        %v3151 = vpop.f32.mrf.mxu0
        %v3152 = vadd.f32 %v2625, %v3151
        %v3153 = vpop.f32.mrf.mxu0
        %v3154 = vadd.f32 %v2625, %v3153
        %3155 = vdwg.mxu0
        %3156 = vmatprep.subr.mxu0 0.0
        %3157 = vmatpush1.xpose.msra.mxu0 %v2868
        %3158 = vmatprep.subr.mxu0 0.0
        %3159 = vmatpush1.xpose.msra.mxu0 %v2865
        %3160 = vmatprep.subr.mxu0 0.0
        %3161 = vmatpush1.xpose.msra.mxu0 %v2862
        %3162 = vmatprep.subr.mxu0 0.0
        %3163 = vmatpush1.xpose.msra.mxu0 %v2859
        %3164 = vmatprep.subr.mxu0 0.0
        %3165 = vmatpush1.xpose.msra.mxu0 %v2856
        %3166 = vmatprep.subr.mxu0 0.0
        %3167 = vmatpush1.xpose.msra.mxu0 %v2853
        %3168 = vmatprep.subr.mxu0 0.0
        %3169 = vmatpush1.xpose.msra.mxu0 %v2850
        %3170 = vmatprep.subr.mxu0 0.0
        %3171 = vmatpush1.xpose.msra.mxu0 %v2847
        %3172 = vmatprep.subr.mxu0 0.0
        %3173 = vmatpush1.xpose.msra.mxu0 %v2844
        %3174 = vmatprep.subr.mxu0 0.0
        %3175 = vmatpush1.xpose.msra.mxu0 %v2841
        %3176 = vmatprep.subr.mxu0 0.0
        %3177 = vmatpush1.xpose.msra.mxu0 %v2838
        %3178 = vmatprep.subr.mxu0 0.0
        %3179 = vmatpush1.xpose.msra.mxu0 %v2835
        %3180 = vmatprep.subr.mxu0 0.0
        %3181 = vmatpush1.xpose.msra.mxu0 %v2832
        %3182 = vmatprep.subr.mxu0 0.0
        %3183 = vmatpush1.xpose.msra.mxu0 %v2829
        %3184 = vmatprep.subr.mxu0 0.0
        %3185 = vmatpush1.xpose.msra.mxu0 %v2826
        %3186 = vmatprep.subr.mxu0 0.0
        %3187 = vmatpush1.xpose.msra.mxu0 %v2823
        %3188 = vmatprep.subr.mxu0 0.0
        %3189 = vmatpush2.xpose.msra.mxu0 %v2916
        %3190 = vmatprep.subr.mxu0 0.0
        %3191 = vmatpush2.xpose.msra.mxu0 %v2913
        %3192 = vmatprep.subr.mxu0 0.0
        %3193 = vmatpush2.xpose.msra.mxu0 %v2910
        %3194 = vmatprep.subr.mxu0 0.0
        %3195 = vmatpush2.xpose.msra.mxu0 %v2907
        %3196 = vmatprep.subr.mxu0 0.0
        %3197 = vmatpush2.xpose.msra.mxu0 %v2904
        %3198 = vmatprep.subr.mxu0 0.0
        %3199 = vmatpush2.xpose.msra.mxu0 %v2901
        %3200 = vmatprep.subr.mxu0 0.0
        %3201 = vmatpush2.xpose.msra.mxu0 %v2898
        %3202 = vmatprep.subr.mxu0 0.0
        %3203 = vmatpush2.xpose.msra.mxu0 %v2895
        %3204 = vmatprep.subr.mxu0 0.0
        %3205 = vmatpush2.xpose.msra.mxu0 %v2892
        %3206 = vmatprep.subr.mxu0 0.0
        %3207 = vmatpush2.xpose.msra.mxu0 %v2889
        %3208 = vmatprep.subr.mxu0 0.0
        %3209 = vmatpush2.xpose.msra.mxu0 %v2886
        %3210 = vmatprep.subr.mxu0 0.0
        %3211 = vmatpush2.xpose.msra.mxu0 %v2883
        %3212 = vmatprep.subr.mxu0 0.0
        %3213 = vmatpush2.xpose.msra.mxu0 %v2880
        %3214 = vmatprep.subr.mxu0 0.0
        %3215 = vmatpush2.xpose.msra.mxu0 %v2877
        %3216 = vmatprep.subr.mxu0 0.0
        %3217 = vmatpush2.xpose.msra.mxu0 %v2874
        %3218 = vmatprep.subr.mxu0 0.0
        %3219 = vmatpush2.xpose.msra.mxu0 %v2871
        %3220 = vmatprep.mubr.f32.mxu0 0.0
        %3221 = vmatmul.mubr.f32.gmra.mxu0 %v2628
        %v3222 = vpop.f32.mrf.mxu0
        %v3223 = vadd.f32 %v2625, %v3222
        %v3224 = vpop.f32.mrf.mxu0
        %v3225 = vadd.f32 %v2625, %v3224
        %3226 = vdwg.mxu0
        %3227 = vmatprep.subr.mxu0 0.0
        %3228 = vmatpush1.xpose.msra.mxu0 %v2964
        %3229 = vmatprep.subr.mxu0 0.0
        %3230 = vmatpush1.xpose.msra.mxu0 %v2961
        %3231 = vmatprep.subr.mxu0 0.0
        %3232 = vmatpush1.xpose.msra.mxu0 %v2958
        %3233 = vmatprep.subr.mxu0 0.0
        %3234 = vmatpush1.xpose.msra.mxu0 %v2955
        %3235 = vmatprep.subr.mxu0 0.0
        %3236 = vmatpush1.xpose.msra.mxu0 %v2952
        %3237 = vmatprep.subr.mxu0 0.0
        %3238 = vmatpush1.xpose.msra.mxu0 %v2949
        %3239 = vmatprep.subr.mxu0 0.0
        %3240 = vmatpush1.xpose.msra.mxu0 %v2946
        %3241 = vmatprep.subr.mxu0 0.0
        %3242 = vmatpush1.xpose.msra.mxu0 %v2943
        %3243 = vmatprep.subr.mxu0 0.0
        %3244 = vmatpush1.xpose.msra.mxu0 %v2940
        %3245 = vmatprep.subr.mxu0 0.0
        %3246 = vmatpush1.xpose.msra.mxu0 %v2937
        %3247 = vmatprep.subr.mxu0 0.0
        %3248 = vmatpush1.xpose.msra.mxu0 %v2934
        %3249 = vmatprep.subr.mxu0 0.0
        %3250 = vmatpush1.xpose.msra.mxu0 %v2931
        %3251 = vmatprep.subr.mxu0 0.0
        %3252 = vmatpush1.xpose.msra.mxu0 %v2928
        %3253 = vmatprep.subr.mxu0 0.0
        %3254 = vmatpush1.xpose.msra.mxu0 %v2925
        %3255 = vmatprep.subr.mxu0 0.0
        %3256 = vmatpush1.xpose.msra.mxu0 %v2922
        %3257 = vmatprep.subr.mxu0 0.0
        %3258 = vmatpush1.xpose.msra.mxu0 %v2919
        %3259 = vmatprep.subr.mxu0 0.0
        %3260 = vmatpush2.xpose.msra.mxu0 %v3012
        %3261 = vmatprep.subr.mxu0 0.0
        %3262 = vmatpush2.xpose.msra.mxu0 %v3009
        %3263 = vmatprep.subr.mxu0 0.0
        %3264 = vmatpush2.xpose.msra.mxu0 %v3006
        %3265 = vmatprep.subr.mxu0 0.0
        %3266 = vmatpush2.xpose.msra.mxu0 %v3003
        %3267 = vmatprep.subr.mxu0 0.0
        %3268 = vmatpush2.xpose.msra.mxu0 %v3000
        %3269 = vmatprep.subr.mxu0 0.0
        %3270 = vmatpush2.xpose.msra.mxu0 %v2997
        %3271 = vmatprep.subr.mxu0 0.0
        %3272 = vmatpush2.xpose.msra.mxu0 %v2994
        %3273 = vmatprep.subr.mxu0 0.0
        %3274 = vmatpush2.xpose.msra.mxu0 %v2991
        %3275 = vmatprep.subr.mxu0 0.0
        %3276 = vmatpush2.xpose.msra.mxu0 %v2988
        %3277 = vmatprep.subr.mxu0 0.0
        %3278 = vmatpush2.xpose.msra.mxu0 %v2985
        %3279 = vmatprep.subr.mxu0 0.0
        %3280 = vmatpush2.xpose.msra.mxu0 %v2982
        %3281 = vmatprep.subr.mxu0 0.0
        %3282 = vmatpush2.xpose.msra.mxu0 %v2979
        %3283 = vmatprep.subr.mxu0 0.0
        %3284 = vmatpush2.xpose.msra.mxu0 %v2976
        %3285 = vmatprep.subr.mxu0 0.0
        %3286 = vmatpush2.xpose.msra.mxu0 %v2973
        %3287 = vmatprep.subr.mxu0 0.0
        %3288 = vmatpush2.xpose.msra.mxu0 %v2970
        %3289 = vmatprep.subr.mxu0 0.0
        %3290 = vmatpush2.xpose.msra.mxu0 %v2967
        %3291 = vmatprep.mubr.f32.mxu0 0.0
        %3292 = vmatmul.mubr.f32.gmra.mxu0 %v2628
        %v3293 = vpop.f32.mrf.mxu0
        %v3294 = vadd.f32 %v2625, %v3293
        %v3295 = vpop.f32.mrf.mxu0
        %v3296 = vadd.f32 %v2625, %v3295
        %3297 = vdwg.mxu0
        %v3298 = vxor.u32 %v3081, 2147483648
        %v3299 = vxor.u32 %v3083, 2147483648
        %v3300 = vxor.u32 %v3152, 2147483648
        %v3301 = vxor.u32 %v3154, 2147483648
        %v3302 = vxor.u32 %v3223, 2147483648
        %v3303 = vxor.u32 %v3225, 2147483648
        %v3304 = vxor.u32 %v3294, 2147483648
        %v3305 = vxor.u32 %v3296, 2147483648
        %v3306 = vmul.f32 %v3298, 1.442695
        %v3307 = vpow.pop %v3306
        %v3308 = vmul.f32 %v3299, 1.442695
        %v3309 = vpow.pop %v3308
        %v3310 = vmul.f32 %v3300, 1.442695
        %v3311 = vpow.pop %v3310
        %v3312 = vmul.f32 %v3301, 1.442695
        %v3313 = vpow.pop %v3312
        %v3314 = vmul.f32 %v3302, 1.442695
        %v3315 = vpow.pop %v3314
        %v3316 = vmul.f32 %v3303, 1.442695
        %v3317 = vpow.pop %v3316
        %v3318 = vmul.f32 %v3304, 1.442695
        %v3319 = vpow.pop %v3318
        %v3320 = vmul.f32 %v3305, 1.442695
        %v3321 = vpow.pop %v3320
        %v3322 = vadd.f32 %v3307, 1.0
        %v3323 = vadd.f32 %v3309, 1.0
        %v3324 = vadd.f32 %v3311, 1.0
        %v3325 = vadd.f32 %v3313, 1.0
        %v3326 = vadd.f32 %v3315, 1.0
        %v3327 = vadd.f32 %v3317, 1.0
        %v3328 = vadd.f32 %v3319, 1.0
        %v3329 = vadd.f32 %v3321, 1.0
        %v3330 = vrcp.pop %v3322
        %v3331 = vmul.f32 1.0, %v3330
        %v3332 = vrcp.pop %v3323
        %v3333 = vmul.f32 1.0, %v3332
        %v3334 = vrcp.pop %v3324
        %v3335 = vmul.f32 1.0, %v3334
        %v3336 = vrcp.pop %v3325
        %v3337 = vmul.f32 1.0, %v3336
        %v3338 = vrcp.pop %v3326
        %v3339 = vmul.f32 1.0, %v3338
        %v3340 = vrcp.pop %v3327
        %v3341 = vmul.f32 1.0, %v3340
        %v3342 = vrcp.pop %v3328
        %v3343 = vmul.f32 1.0, %v3342
        %v3344 = vrcp.pop %v3329
        %v3345 = vmul.f32 1.0, %v3344
        %v3346 = vmul.f32 %v3331, 1.002
        %v3347 = vmul.f32 %v3333, 1.002
        %v3348 = vmul.f32 %v3335, 1.002
        %v3349 = vmul.f32 %v3337, 1.002
        %v3350 = vmul.f32 %v3339, 1.002
        %v3351 = vmul.f32 %v3341, 1.002
        %v3352 = vmul.f32 %v3343, 1.002
        %v3353 = vmul.f32 %v3345, 1.002
        %v3354 = vsub.f32 %v3346, 0.001
        %v3355 = vsub.f32 %v3347, 0.001
        %v3356 = vsub.f32 %v3348, 0.001
        %v3357 = vsub.f32 %v3349, 0.001
        %v3358 = vsub.f32 %v3350, 0.001
        %v3359 = vsub.f32 %v3351, 0.001
        %v3360 = vsub.f32 %v3352, 0.001
        %v3361 = vsub.f32 %v3353, 0.001
        %v3362 = vlaneseq
        %v3363 = vshrl.u32 %v3362, 7
        %vm3364 = vcmp.lt.s32.totalorder %v3363, 3
        %v3365 = vsel %vm3364, %v3354, %v3081
        %v3366 = vsel %vm3364, %v3355, %v3083
        %v3367 = vsel %vm3364, %v3356, %v3152
        %v3368 = vsel %vm3364, %v3357, %v3154
        %v3369 = vsel %vm3364, %v3358, %v3223
        %v3370 = vsel %vm3364, %v3359, %v3225
        %v3371 = vsel %vm3364, %v3360, %v3294
        %v3372 = vsel %vm3364, %v3361, %v3296
        %v3381 = vcombine.low %v3365, %v3366
        %v3382 = vcombine.low %v3367, %v3368
        %v3383 = vcombine.low %v3369, %v3370
        %v3384 = vcombine.low %v3371, %v3372
        %3389 = vst [vmem:[%s618] sm:$0xff] %v3381
        %3390 = vst [vmem:[%s618 + $0x8] sm:$0xff] %v3382
        %3391 = vst [vmem:[%s618 + $0x10] sm:$0xff] %v3383
        %3392 = vst [vmem:[%s618 + $0x18] sm:$0xff] %v3384
        %s3393 = sand.u32 %s153, 1
        %s3394 = scalar_lea.sflag [#allocation4], %s3393
        %s3395 = sand.u32 %s153, 1
        %s3396 = smul.addr %s3395, 32
        %s3397 = scalar_lea.vmem [#allocation3], %s3396
        // Predicated region
        $region93: #{tpu_custom_call.1} parent=87 // pred_check
          %p3398 = pneg %p163
        $region94: #{tpu_custom_call.1} parent=87 // pred_check_branch
          %3400 = sbr.rel (%p3398) target = $region96
        $region95: #{tpu_custom_call.1} parent=87 // pred_region
          %s3401 = smul.u32 8, %s24
          %s3403 = ssub.s32 512, 512
          %3404 = vsyncadd %s3394, %s3403
          %s3405 = smul.addr %s23, 8
          %s3406 = sadd.s32 %s3401, %s3405
          %s3407 = smul.addr %s3406, 64
          %s3408 = scalar_lea.hbm %s5, %s3407
          %s3410 = sshll.u32 %s3397, 4
          %s3411 = int_to_ptr.vmem [resolvable:$true] %s3410
          %3413 = dma.vmem_to_hbm [thread:$0]  %s3411, 512, %s3408, %s3394
        $region96: #{tpu_custom_call.1} parent=87 // pred_fallthru
          _
      $region88: #{tpu_custom_call.1} parent=5 // pred_fallthru
        _
      %p3414 = scmp.le.s32.totalorder 2, %s14
      // Predicated region
      $region97: #{tpu_custom_call.1} parent=5 // pred_check
        %p3415 = pneg %p3414
      $region98: #{tpu_custom_call.1} parent=5 // pred_check_branch
        %3417 = sbr.rel (%p3415) target = $region100
      $region99: #{tpu_custom_call.1} parent=5 // pred_region
        %s3418 = ssub.s32 %s14, 2
        // Predicated region
        $region101: #{tpu_custom_call.1} parent=99 // pred_check
          %p3419 = pneg %p169
        $region102: #{tpu_custom_call.1} parent=99 // pred_check_branch
          %3421 = sbr.rel (%p3419) target = $region104
        $region103: #{tpu_custom_call.1} parent=99 // pred_region
          %s3422 = sand.u32 %s154, 1
          %s3423 = scalar_lea.sflag [#allocation4], %s3422
          %s3424 = sand.u32 %s154, 1
          %s3425 = smul.addr %s3424, 32
          %s3426 = scalar_lea.vmem [#allocation3], %s3425
          %3427 = dma.done %s3423, 512
        $region104: #{tpu_custom_call.1} parent=99 // pred_fallthru
          _
      $region100: #{tpu_custom_call.1} parent=5 // pred_fallthru
        _
    $region6: #{tpu_custom_call.1} parent=1 // loop_footer
      %s18 = sadd.s32 1, %s14
    $region7: #{tpu_custom_call.1} parent=1 // loop_footer_branch
      %13 = sbr.rel target = $region3
    $region8: #{tpu_custom_call.1} parent=1 // loop_exit
      _
    %3428 = vsyncpa [#allocation4], 1
    %s3429 = scalar_lea.sflag [#allocation4], 1
    %3430 = vsyncpa %s3429, 1

</llo_original>
